<compile_context>
chip_gen: v7x
topology: tpu7x:2x2x1
jax: 0.10.0
libtpu: 0.0.40
codegen_flags: <defaults>
</compile_context>

<pallas_src>
import numpy as np
import jax
import jax.numpy as jnp
from jax import lax
from jax.experimental import pallas as pl
from jax.experimental.pallas import tpu as pltpu

SC_PAD = 16  # padded width of the scalar group [beta, g, s0, s1, s2, gamma]


def ntm_write_head_seq_kernel(
    x_ref,       # (T, B, C)   controller features, whole sequence in VMEM
    wT_ref,      # (C, Lp)     fused / padded head Linear weight (transposed)
    b_ref,       # (1, Lp)     fused / padded head Linear bias
    perm_ref,    # (N, 2N)     [P_plus | P_minus] circular-shift matrices
    w0_ref,      # (B, N)      initial addressing weights
    mem0_ref,    # (B, N, M)   initial memory (aliased with mem_ref)
    w_seq_ref,   # (T, B, N)   output: per-step addressing weights
    mem_ref,     # (B, N, M)   output: memory after the final write
):
    T = x_ref.shape[0]
    B, N, M = mem_ref.shape
    sc0 = M                  # scalar-group lane offset
    e0 = M + SC_PAD          # erase-vector lane offset
    a0 = e0 + M              # add-vector lane offset

    # Memory becomes VMEM-resident state for the whole sequence; the HBM
    # writeback of the output block happens once at the end of the call.
    mem_ref[...] = mem0_ref[...]

    wT = wT_ref[...]
    bias = b_ref[...]
    perm = perm_ref[...]

    def step(t, w_prev):
        x = x_ref[t]                                              # (B, C)

        # ---- fused head Linear: one MXU push per step ---------------------
        out = jnp.dot(x, wT, preferred_element_type=jnp.float32) + bias

        # ---- fine_tune_params ---------------------------------------------
        k = jnp.tanh(out[:, 0:M])                                 # (B, M)
        beta = jax.nn.softplus(out[:, sc0:sc0 + 1])               # (B, 1)
        g = jax.nn.sigmoid(out[:, sc0 + 1:sc0 + 2])               # (B, 1)
        s_raw = out[:, sc0 + 2:sc0 + 5]                           # (B, 3)
        gamma = 1.0 + jax.nn.softplus(out[:, sc0 + 5:sc0 + 6])    # (B, 1)
        e = jax.nn.sigmoid(out[:, e0:e0 + M])                     # (B, M)
        a = jnp.tanh(out[:, a0:a0 + M])                           # (B, M)

        # shift softmax (exact division: the error feeds the recurrence)
        s_exp = jnp.exp(s_raw - jnp.max(s_raw, axis=1, keepdims=True))
        s = s_exp / jnp.sum(s_exp, axis=1, keepdims=True)

        # ---- content addressing: softmax(beta * cosine_similarity) --------
        mem = mem_ref[...]                                        # (B, N, M)
        mem_e = mem + 1e-16
        k_e = (k + 1e-16)[:, None, :]                             # (B, 1, M)
        dots = jnp.sum(mem_e * k_e, axis=-1)                      # (B, N)
        mem_norm = jnp.sqrt(jnp.sum(mem_e * mem_e, axis=-1))      # (B, N)
        k_norm = jnp.sqrt(jnp.sum(k_e * k_e, axis=-1))            # (B, 1)
        denom = jnp.maximum(mem_norm, 1e-8) * jnp.maximum(k_norm, 1e-8)
        cos = dots / denom

        z = beta * cos
        z_exp = jnp.exp(z - jnp.max(z, axis=1, keepdims=True))
        wc = z_exp / jnp.sum(z_exp, axis=1, keepdims=True)

        # ---- interpolation with gate g --------------------------------------
        wg = g * wc + (1.0 - g) * w_prev                          # (B, N)

        # ---- circular 3-tap shift via one fused permutation matmul ----------
        rolls = jnp.dot(wg, perm, preferred_element_type=jnp.float32)  # (B, 2N)
        w_shift = (rolls[:, 0:N] * s[:, 0:1]
                   + wg * s[:, 1:2]
                   + rolls[:, N:2 * N] * s[:, 2:3])

        # ---- sharpening (guard the pow: it lowers to exp(gamma*log(x))) -----
        w_sharp = jnp.maximum(w_shift, 0.0) ** gamma
        w = w_sharp / (jnp.sum(w_sharp, axis=1, keepdims=True) + 1e-16)

        # ---- outputs + erase/add memory write -------------------------------
        w_seq_ref[t] = w
        erase = w[:, :, None] * e[:, None, :]                     # (B, N, M)
        add = w[:, :, None] * a[:, None, :]                       # (B, N, M)
        mem_ref[...] = mem * (1.0 - erase) + add
        return w

    lax.fori_loop(0, T, step, w0_ref[...], unroll=bool(T <= 16))


def ntm_write_head_sequence(x_seq, head_w, head_b, W_init, memory_init):
    """Run T chained NTM_write_head.forward() steps in one pallas_call.

    Returns (W_seq, new_memory): per-step addressing weights and final memory.
    """
    T, B, C = x_seq.shape
    Bm, N, M = memory_init.shape
    L = 3 * M + 6
    assert Bm == B and head_w.shape == (L, C) and head_b.shape == (L,)

    f32 = jnp.float32
    hw = head_w.astype(f32)
    hb = head_b.astype(f32)
    Lp = 3 * M + SC_PAD

    # Fuse the head Linear into one lane-padded (C, Lp) weight / (1, Lp) bias:
    #   [ k (M) | beta,g,s0..s2,gamma (6, padded to SC_PAD) | e (M) | a (M) ]
    wT = jnp.zeros((C, Lp), f32)
    wT = wT.at[:, 0:M].set(hw[0:M].T)
    wT = wT.at[:, M:M + 6].set(hw[M:M + 6].T)
    wT = wT.at[:, M + SC_PAD:M + SC_PAD + M].set(hw[M + 6:M + 6 + M].T)
    wT = wT.at[:, M + SC_PAD + M:Lp].set(hw[M + 6 + M:L].T)
    b = jnp.zeros((1, Lp), f32)
    b = b.at[0, 0:M].set(hb[0:M])
    b = b.at[0, M:M + 6].set(hb[M:M + 6])
    b = b.at[0, M + SC_PAD:M + SC_PAD + M].set(hb[M + 6:M + 6 + M])
    b = b.at[0, M + SC_PAD + M:Lp].set(hb[M + 6 + M:L])

    # [P+ | P-] circular-shift permutation matrices, built once on the host.
    row = np.arange(N)[:, None]
    col = np.arange(N)[None, :]
    p_plus = (col == (row + 1) % N).astype(np.float32)    # wg @ P+ = roll(wg, +1)
    p_minus = (col == (row - 1) % N).astype(np.float32)   # wg @ P- = roll(wg, -1)
    perm = jnp.asarray(np.concatenate([p_plus, p_minus], axis=1))  # (N, 2N)

    x_seq = x_seq.astype(f32)
    W_init = W_init.astype(f32)
    memory_init = memory_init.astype(f32)

    cost = pl.CostEstimate(
        flops=int(T * (2 * B * C * Lp + 4 * B * N * N + 10 * B * N * M)),
        transcendentals=int(T * B * (3 * M + 3 * N + 16)),
        bytes_accessed=int(4 * (T * B * C + C * Lp + Lp + 2 * N * N + B * N
                                + 2 * B * N * M + T * B * N)),
    )

    # No grid: the whole problem (a few KiB) is pinned in VMEM and the time
    # recurrence is an in-kernel loop, so HBM traffic is one load per input
    # and one store per output for the entire sequence.
    # TODO(synk): for very long T, block the time axis (Tb blocks of 128-512)
    # so x_seq / W_seq don't exceed the scoped-VMEM limit.
    W_seq, new_memory = pl.pallas_call(
        ntm_write_head_seq_kernel,
        out_shape=(
            jax.ShapeDtypeStruct((T, B, N), f32),
            jax.ShapeDtypeStruct((B, N, M), f32),
        ),
        input_output_aliases={5: 1},   # memory_init buffer reused for new_memory
        compiler_params=pltpu.CompilerParams(vmem_limit_bytes=32 * 1024 * 1024),
        cost_estimate=cost,
    )(x_seq, wT, b, perm, W_init, memory_init)
    # TODO(synk): wrap call sites in jax.jit(..., donate_argnums=...) for
    # memory_init to make the alias a true in-place HBM update; not done here
    # because the test reuses the original memory buffer after the call.
    return W_seq, new_memory


def ntm_write_head_forward(rnn_embeddings, head_w, head_b, W_old, memory):
    """Single-step API matching the PyTorch module's forward(): returns (W, new_memory)."""
    W_seq, new_memory = ntm_write_head_sequence(
        rnn_embeddings[None], head_w, head_b, W_old, memory)
    return W_seq[0], new_memory


# TODO(synk): on v7x with production batch sizes (B >= 16), add a leading batch
# grid axis marked "parallel" to shard across the two TensorCores; skipped at
# B=2 where the batch block would be sub-(8,128).


def _reference_step(x, head_w, head_b, W_old, memory):
    """Pure-JAX reference mirroring one PyTorch forward() step."""
    N, M = memory.shape[1], memory.shape[2]
    out = x @ head_w.T + head_b
    k = jnp.tanh(out[:, 0:M])
    beta = jax.nn.softplus(out[:, M:M + 1])
    g = jax.nn.sigmoid(out[:, M + 1:M + 2])
    s = jax.nn.softmax(out[:, M + 2:M + 5], axis=1)
    gamma = 1.0 + jax.nn.softplus(out[:, M + 5:M + 6])
    e = jax.nn.sigmoid(out[:, M + 6:M + 6 + M])
    a = jnp.tanh(out[:, M + 6 + M:])
    mem_e = memory + 1e-16
    k_e = (k + 1e-16)[:, None, :]
    cos = jnp.sum(mem_e * k_e, -1) / (
        jnp.maximum(jnp.linalg.norm(mem_e, axis=-1), 1e-8)
        * jnp.maximum(jnp.linalg.norm(k_e, axis=-1), 1e-8))
    wc = jax.nn.softmax(beta * cos, axis=1)
    wg = g * wc + (1 - g) * W_old
    w_shift = (jnp.roll(wg, 1, axis=1) * s[:, 0:1] + wg * s[:, 1:2]
               + jnp.roll(wg, -1, axis=1) * s[:, 2:3])
    w_sharp = w_shift ** gamma
    w = w_sharp / (jnp.sum(w_sharp, axis=1, keepdims=True) + 1e-16)
    new_mem = (memory * (1 - w[:, :, None] * e[:, None, :])
               + w[:, :, None] * a[:, None, :])
    return w, new_mem


if __name__ == "__main__":
    B, C = 2, 32          # batch, controller_size
    N, M = 8, 16          # memory.memory_size()
    L = 3 * M + 6         # sum(write_lengths) = M+1+1+3+1+M+M = 54
    T = 8                 # fused sequence length

    key = jax.random.PRNGKey(0)
    k1, k2, k3, k4, k5 = jax.random.split(key, 5)

    # xavier_uniform_(weight, gain=1.4), normal_(bias, std=0.01)
    bound = 1.4 * np.sqrt(6.0 / (C + L))
    head_w = jax.random.uniform(k1, (L, C), minval=-bound, maxval=bound, dtype=jnp.float32)
    head_b = 0.01 * jax.random.normal(k2, (L,), dtype=jnp.float32)
    # TODO(synk): self.weight_init (Linear(1, N)) only feeds create_new_state(),
    # not forward(); W_init is supplied directly as a normalized weighting.

    x_seq = jax.random.normal(k3, (T, B, C), dtype=jnp.float32)
    W_init = jax.nn.softmax(jax.random.normal(k4, (B, N), dtype=jnp.float32), axis=1)
    memory0 = 0.1 * jax.random.normal(k5, (B, N, M), dtype=jnp.float32)

    # Pure-JAX references.
    W_ref1, mem_ref1 = _reference_step(x_seq[0], head_w, head_b, W_init, memory0)
    w_r, m_r, W_seq_ref = W_init, memory0, []
    for t in range(T):
        w_r, m_r = _reference_step(x_seq[t], head_w, head_b, w_r, m_r)
        W_seq_ref.append(w_r)
    W_seq_ref = jnp.stack(W_seq_ref)
    mem_final_ref = m_r

    # Fused sequence kernel (main path).
    W_seq, mem_final = ntm_write_head_sequence(x_seq, head_w, head_b, W_init, memory0)
    jax.block_until_ready((W_seq, mem_final))

    # Single-step API (module forward semantics).
    W1, mem1 = ntm_write_head_forward(x_seq[0], head_w, head_b, W_init, memory0)
    jax.block_until_ready((W1, mem1))

    np.testing.assert_allclose(np.asarray(W1), np.asarray(W_ref1), rtol=5e-3, atol=2e-4)
    np.testing.assert_allclose(np.asarray(mem1), np.asarray(mem_ref1), rtol=5e-3, atol=2e-4)
    np.testing.assert_allclose(np.asarray(W_seq), np.asarray(W_seq_ref), rtol=5e-3, atol=2e-4)
    np.testing.assert_allclose(np.asarray(mem_final), np.asarray(mem_final_ref), rtol=5e-3, atol=2e-4)

    print("KERNEL_OK")
</pallas_src>

<mosaic_0001>
module attributes {stable_mosaic.version = 11 : i64} {
  func.func @ntm_write_head_seq_kernel(%arg0: memref<8x2x32xf32, #tpu.memory_space<vmem>>, %arg1: memref<32x64xf32, #tpu.memory_space<vmem>>, %arg2: memref<1x64xf32, #tpu.memory_space<vmem>>, %arg3: memref<8x16xf32, #tpu.memory_space<vmem>>, %arg4: memref<2x8xf32, #tpu.memory_space<vmem>>, %arg5: memref<2x8x16xf32, #tpu.memory_space<vmem>>, %arg6: memref<8x2x8xf32, #tpu.memory_space<vmem>>, %arg7: memref<2x8x16xf32, #tpu.memory_space<vmem>>) attributes {dimension_semantics = [], scalar_prefetch = 0 : i64, scratch_operands = 0 : i64, tpu.core_type = #tpu.core_type<tc>} {
    %c0 = arith.constant 0 : index
    %c0_0 = arith.constant 0 : index
    %c0_1 = arith.constant 0 : index
    %0 = vector.load %arg5[%c0, %c0_0, %c0_1] : memref<2x8x16xf32, #tpu.memory_space<vmem>>, vector<2x8x16xf32>
    %c0_2 = arith.constant 0 : index
    %c0_3 = arith.constant 0 : index
    %c0_4 = arith.constant 0 : index
    %1 = vector.load %arg7[%c0_2, %c0_3, %c0_4] : memref<2x8x16xf32, #tpu.memory_space<vmem>>, vector<2x8x16xf32>
    tpu.vector_store %arg7[%c0_2, %c0_3, %c0_4], %0 {strides = array<i32>} : memref<2x8x16xf32, #tpu.memory_space<vmem>>, vector<2x8x16xf32>,
    %c0_5 = arith.constant 0 : index
    %c0_6 = arith.constant 0 : index
    %2 = vector.load %arg1[%c0_5, %c0_6] : memref<32x64xf32, #tpu.memory_space<vmem>>, vector<32x64xf32>
    %c0_7 = arith.constant 0 : index
    %c0_8 = arith.constant 0 : index
    %3 = vector.load %arg2[%c0_7, %c0_8] : memref<1x64xf32, #tpu.memory_space<vmem>>, vector<1x64xf32>
    %c0_9 = arith.constant 0 : index
    %c0_10 = arith.constant 0 : index
    %4 = vector.load %arg3[%c0_9, %c0_10] : memref<8x16xf32, #tpu.memory_space<vmem>>, vector<8x16xf32>
    %c0_11 = arith.constant 0 : index
    %c0_12 = arith.constant 0 : index
    %5 = vector.load %arg4[%c0_11, %c0_12] : memref<2x8xf32, #tpu.memory_space<vmem>>, vector<2x8xf32>
    %c0_i32 = arith.constant 0 : i32
    %6 = arith.index_cast %c0_i32 : i32 to index
    %c0_13 = arith.constant 0 : index
    %c0_14 = arith.constant 0 : index
    %7 = vector.load %arg0[%6, %c0_13, %c0_14] : memref<8x2x32xf32, #tpu.memory_space<vmem>>, vector<1x2x32xf32>
    %8 = vector.shape_cast %7 : vector<1x2x32xf32> to vector<2x32xf32>
    %cst = arith.constant dense<0.000000e+00> : vector<2x64xf32>
    %9 = tpu.matmul %8, %2, %cst {dimension_numbers = #tpu.dot_dimension_numbers<[1], [0], [0], [1], [0, 0, 1, 1], [], []>} : vector<2x32xf32>, vector<32x64xf32>, vector<2x64xf32> -> vector<2x64xf32>
    %10 = vector.broadcast %3 : vector<1x64xf32> to vector<2x64xf32>
    %11 = arith.addf %9, %10 : vector<2x64xf32>
    %12 = vector.extract_strided_slice %11 {offsets = [0, 0], sizes = [2, 16], strides = [1, 1]} : vector<2x64xf32> to vector<2x16xf32>
    %13 = math.tanh %12 : vector<2x16xf32>
    %14 = vector.extract_strided_slice %11 {offsets = [0, 16], sizes = [2, 1], strides = [1, 1]} : vector<2x64xf32> to vector<2x1xf32>
    %cst_15 = arith.constant 0.000000e+00 : f32
    %15 = vector.broadcast %cst_15 : f32 to vector<2x1xf32>
    %16 = arith.maximumf %14, %15 : vector<2x1xf32>
    %17 = vector.broadcast %cst_15 : f32 to vector<2x1xf32>
    %18 = arith.subf %14, %17 : vector<2x1xf32>
    %19 = arith.cmpf one, %18, %18 : vector<2x1xf32>
    %20 = vector.broadcast %cst_15 : f32 to vector<2x1xf32>
    %21 = arith.addf %14, %20 : vector<2x1xf32>
    %22 = math.absf %18 : vector<2x1xf32>
    %cst_16 = arith.constant 0.000000e+00 : f32
    %23 = vector.broadcast %cst_16 : f32 to vector<2x1xf32>
    %24 = arith.subf %23, %22 : vector<2x1xf32>
    %25 = math.exp %24 : vector<2x1xf32>
    %26 = math.log1p %25 : vector<2x1xf32>
    %27 = arith.addf %16, %26 : vector<2x1xf32>
    %28 = arith.select %19, %21, %27 : vector<2x1xi1>, vector<2x1xf32>
    %29 = vector.extract_strided_slice %11 {offsets = [0, 17], sizes = [2, 1], strides = [1, 1]} : vector<2x64xf32> to vector<2x1xf32>
    %30 = arith.negf %29 : vector<2x1xf32>
    %31 = math.exp %30 : vector<2x1xf32>
    %cst_17 = arith.constant 1.000000e+00 : f32
    %32 = vector.broadcast %cst_17 : f32 to vector<2x1xf32>
    %33 = arith.addf %32, %31 : vector<2x1xf32>
    %34 = arith.divf %32, %33 : vector<2x1xf32>
    %35 = vector.extract_strided_slice %11 {offsets = [0, 18], sizes = [2, 3], strides = [1, 1]} : vector<2x64xf32> to vector<2x3xf32>
    %36 = vector.extract_strided_slice %11 {offsets = [0, 21], sizes = [2, 1], strides = [1, 1]} : vector<2x64xf32> to vector<2x1xf32>
    %cst_18 = arith.constant 0.000000e+00 : f32
    %37 = vector.broadcast %cst_18 : f32 to vector<2x1xf32>
    %38 = arith.maximumf %36, %37 : vector<2x1xf32>
    %39 = vector.broadcast %cst_18 : f32 to vector<2x1xf32>
    %40 = arith.subf %36, %39 : vector<2x1xf32>
    %41 = arith.cmpf one, %40, %40 : vector<2x1xf32>
    %42 = vector.broadcast %cst_18 : f32 to vector<2x1xf32>
    %43 = arith.addf %36, %42 : vector<2x1xf32>
    %44 = math.absf %40 : vector<2x1xf32>
    %cst_19 = arith.constant 0.000000e+00 : f32
    %45 = vector.broadcast %cst_19 : f32 to vector<2x1xf32>
    %46 = arith.subf %45, %44 : vector<2x1xf32>
    %47 = math.exp %46 : vector<2x1xf32>
    %48 = math.log1p %47 : vector<2x1xf32>
    %49 = arith.addf %38, %48 : vector<2x1xf32>
    %50 = arith.select %41, %43, %49 : vector<2x1xi1>, vector<2x1xf32>
    %cst_20 = arith.constant 1.000000e+00 : f32
    %51 = vector.broadcast %cst_20 : f32 to vector<2x1xf32>
    %52 = arith.addf %51, %50 : vector<2x1xf32>
    %53 = vector.extract_strided_slice %11 {offsets = [0, 32], sizes = [2, 16], strides = [1, 1]} : vector<2x64xf32> to vector<2x16xf32>
    %54 = arith.negf %53 : vector<2x16xf32>
    %55 = math.exp %54 : vector<2x16xf32>
    %cst_21 = arith.constant 1.000000e+00 : f32
    %56 = vector.broadcast %cst_21 : f32 to vector<2x16xf32>
    %57 = arith.addf %56, %55 : vector<2x16xf32>
    %58 = arith.divf %56, %57 : vector<2x16xf32>
    %59 = vector.extract_strided_slice %11 {offsets = [0, 48], sizes = [2, 16], strides = [1, 1]} : vector<2x64xf32> to vector<2x16xf32>
    %60 = math.tanh %59 : vector<2x16xf32>
    %cst_22 = arith.constant dense<0xFF800000> : vector<2xf32>
    %61 = vector.multi_reduction <maximumf>, %35, %cst_22 [1] : vector<2x3xf32> to vector<2xf32>
    %62 = vector.shape_cast %61 : vector<2xf32> to vector<2x1xf32>
    %63 = vector.broadcast %62 : vector<2x1xf32> to vector<2x3xf32>
    %64 = arith.subf %35, %63 : vector<2x3xf32>
    %65 = math.exp %64 : vector<2x3xf32>
    %cst_23 = arith.constant dense<0.000000e+00> : vector<2xf32>
    %66 = vector.multi_reduction <add>, %65, %cst_23 [1] : vector<2x3xf32> to vector<2xf32>
    %67 = vector.shape_cast %66 : vector<2xf32> to vector<2x1xf32>
    %68 = vector.broadcast %67 : vector<2x1xf32> to vector<2x3xf32>
    %69 = arith.divf %65, %68 : vector<2x3xf32>
    %c0_24 = arith.constant 0 : index
    %c0_25 = arith.constant 0 : index
    %c0_26 = arith.constant 0 : index
    %70 = vector.load %arg7[%c0_24, %c0_25, %c0_26] : memref<2x8x16xf32, #tpu.memory_space<vmem>>, vector<2x8x16xf32>
    %cst_27 = arith.constant 1.000000e-16 : f32
    %71 = vector.broadcast %cst_27 : f32 to vector<2x8x16xf32>
    %72 = arith.addf %70, %71 : vector<2x8x16xf32>
    %cst_28 = arith.constant 1.000000e-16 : f32
    %73 = vector.broadcast %cst_28 : f32 to vector<2x16xf32>
    %74 = arith.addf %13, %73 : vector<2x16xf32>
    %75 = vector.shape_cast %74 : vector<2x16xf32> to vector<2x1x16xf32>
    %76 = vector.broadcast %75 : vector<2x1x16xf32> to vector<2x8x16xf32>
    %77 = arith.mulf %72, %76 : vector<2x8x16xf32>
    %cst_29 = arith.constant dense<0.000000e+00> : vector<2x8xf32>
    %78 = vector.multi_reduction <add>, %77, %cst_29 [2] : vector<2x8x16xf32> to vector<2x8xf32>
    %79 = arith.mulf %72, %72 : vector<2x8x16xf32>
    %cst_30 = arith.constant dense<0.000000e+00> : vector<2x8xf32>
    %80 = vector.multi_reduction <add>, %79, %cst_30 [2] : vector<2x8x16xf32> to vector<2x8xf32>
    %81 = math.sqrt %80 : vector<2x8xf32>
    %82 = arith.mulf %75, %75 : vector<2x1x16xf32>
    %cst_31 = arith.constant dense<0.000000e+00> : vector<2x1xf32>
    %83 = vector.multi_reduction <add>, %82, %cst_31 [2] : vector<2x1x16xf32> to vector<2x1xf32>
    %84 = math.sqrt %83 : vector<2x1xf32>
    %cst_32 = arith.constant 9.99999993E-9 : f32
    %85 = vector.broadcast %cst_32 : f32 to vector<2x8xf32>
    %86 = arith.maximumf %81, %85 : vector<2x8xf32>
    %cst_33 = arith.constant 9.99999993E-9 : f32
    %87 = vector.broadcast %cst_33 : f32 to vector<2x1xf32>
    %88 = arith.maximumf %84, %87 : vector<2x1xf32>
    %89 = vector.broadcast %88 : vector<2x1xf32> to vector<2x8xf32>
    %90 = arith.mulf %86, %89 : vector<2x8xf32>
    %91 = arith.divf %78, %90 : vector<2x8xf32>
    %92 = vector.broadcast %28 : vector<2x1xf32> to vector<2x8xf32>
    %93 = arith.mulf %92, %91 : vector<2x8xf32>
    %cst_34 = arith.constant dense<0xFF800000> : vector<2xf32>
    %94 = vector.multi_reduction <maximumf>, %93, %cst_34 [1] : vector<2x8xf32> to vector<2xf32>
    %95 = vector.shape_cast %94 : vector<2xf32> to vector<2x1xf32>
    %96 = vector.broadcast %95 : vector<2x1xf32> to vector<2x8xf32>
    %97 = arith.subf %93, %96 : vector<2x8xf32>
    %98 = math.exp %97 : vector<2x8xf32>
    %cst_35 = arith.constant dense<0.000000e+00> : vector<2xf32>
    %99 = vector.multi_reduction <add>, %98, %cst_35 [1] : vector<2x8xf32> to vector<2xf32>
    %100 = vector.shape_cast %99 : vector<2xf32> to vector<2x1xf32>
    %101 = vector.broadcast %100 : vector<2x1xf32> to vector<2x8xf32>
    %102 = arith.divf %98, %101 : vector<2x8xf32>
    %103 = vector.broadcast %34 : vector<2x1xf32> to vector<2x8xf32>
    %104 = arith.mulf %103, %102 : vector<2x8xf32>
    %cst_36 = arith.constant 1.000000e+00 : f32
    %105 = vector.broadcast %cst_36 : f32 to vector<2x1xf32>
    %106 = arith.subf %105, %34 : vector<2x1xf32>
    %107 = vector.broadcast %106 : vector<2x1xf32> to vector<2x8xf32>
    %108 = arith.mulf %107, %5 : vector<2x8xf32>
    %109 = arith.addf %104, %108 : vector<2x8xf32>
    %cst_37 = arith.constant dense<0.000000e+00> : vector<2x16xf32>
    %110 = tpu.matmul %109, %4, %cst_37 {dimension_numbers = #tpu.dot_dimension_numbers<[1], [0], [0], [1], [0, 0, 1, 1], [], []>} : vector<2x8xf32>, vector<8x16xf32>, vector<2x16xf32> -> vector<2x16xf32>
    %111 = vector.extract_strided_slice %110 {offsets = [0, 0], sizes = [2, 8], strides = [1, 1]} : vector<2x16xf32> to vector<2x8xf32>
    %112 = vector.extract_strided_slice %69 {offsets = [0, 0], sizes = [2, 1], strides = [1, 1]} : vector<2x3xf32> to vector<2x1xf32>
    %113 = vector.broadcast %112 : vector<2x1xf32> to vector<2x8xf32>
    %114 = arith.mulf %111, %113 : vector<2x8xf32>
    %115 = vector.extract_strided_slice %69 {offsets = [0, 1], sizes = [2, 1], strides = [1, 1]} : vector<2x3xf32> to vector<2x1xf32>
    %116 = vector.broadcast %115 : vector<2x1xf32> to vector<2x8xf32>
    %117 = arith.mulf %109, %116 : vector<2x8xf32>
    %118 = arith.addf %114, %117 : vector<2x8xf32>
    %119 = vector.extract_strided_slice %110 {offsets = [0, 8], sizes = [2, 8], strides = [1, 1]} : vector<2x16xf32> to vector<2x8xf32>
    %120 = vector.extract_strided_slice %69 {offsets = [0, 2], sizes = [2, 1], strides = [1, 1]} : vector<2x3xf32> to vector<2x1xf32>
    %121 = vector.broadcast %120 : vector<2x1xf32> to vector<2x8xf32>
    %122 = arith.mulf %119, %121 : vector<2x8xf32>
    %123 = arith.addf %118, %122 : vector<2x8xf32>
    %cst_38 = arith.constant 0.000000e+00 : f32
    %124 = vector.broadcast %cst_38 : f32 to vector<2x8xf32>
    %125 = arith.maximumf %123, %124 : vector<2x8xf32>
    %126 = vector.broadcast %52 : vector<2x1xf32> to vector<2x8xf32>
    %127 = math.powf %125, %126 : vector<2x8xf32>
    %cst_39 = arith.constant dense<0.000000e+00> : vector<2xf32>
    %128 = vector.multi_reduction <add>, %127, %cst_39 [1] : vector<2x8xf32> to vector<2xf32>
    %129 = vector.shape_cast %128 : vector<2xf32> to vector<2x1xf32>
    %cst_40 = arith.constant 1.000000e-16 : f32
    %130 = vector.broadcast %cst_40 : f32 to vector<2x1xf32>
    %131 = arith.addf %129, %130 : vector<2x1xf32>
    %132 = vector.broadcast %131 : vector<2x1xf32> to vector<2x8xf32>
    %133 = arith.divf %127, %132 : vector<2x8xf32>
    %134 = arith.index_cast %c0_i32 : i32 to index
    %c0_41 = arith.constant 0 : index
    %c0_42 = arith.constant 0 : index
    %135 = vector.load %arg6[%134, %c0_41, %c0_42] : memref<8x2x8xf32, #tpu.memory_space<vmem>>, vector<1x2x8xf32>
    %136 = vector.shape_cast %135 : vector<1x2x8xf32> to vector<2x8xf32>
    %137 = vector.shape_cast %133 : vector<2x8xf32> to vector<1x2x8xf32>
    tpu.vector_store %arg6[%134, %c0_41, %c0_42], %137 {strides = array<i32>} : memref<8x2x8xf32, #tpu.memory_space<vmem>>, vector<1x2x8xf32>,
    %138 = vector.shape_cast %133 : vector<2x8xf32> to vector<2x8x1xf32>
    %139 = vector.shape_cast %58 : vector<2x16xf32> to vector<2x1x16xf32>
    %140 = vector.broadcast %138 : vector<2x8x1xf32> to vector<2x8x16xf32>
    %141 = vector.broadcast %139 : vector<2x1x16xf32> to vector<2x8x16xf32>
    %142 = arith.mulf %140, %141 : vector<2x8x16xf32>
    %143 = vector.shape_cast %133 : vector<2x8xf32> to vector<2x8x1xf32>
    %144 = vector.shape_cast %60 : vector<2x16xf32> to vector<2x1x16xf32>
    %145 = vector.broadcast %143 : vector<2x8x1xf32> to vector<2x8x16xf32>
    %146 = vector.broadcast %144 : vector<2x1x16xf32> to vector<2x8x16xf32>
    %147 = arith.mulf %145, %146 : vector<2x8x16xf32>
    %cst_43 = arith.constant 1.000000e+00 : f32
    %148 = vector.broadcast %cst_43 : f32 to vector<2x8x16xf32>
    %149 = arith.subf %148, %142 : vector<2x8x16xf32>
    %150 = arith.mulf %70, %149 : vector<2x8x16xf32>
    %151 = arith.addf %150, %147 : vector<2x8x16xf32>
    %c0_44 = arith.constant 0 : index
    %c0_45 = arith.constant 0 : index
    %c0_46 = arith.constant 0 : index
    %152 = vector.load %arg7[%c0_44, %c0_45, %c0_46] : memref<2x8x16xf32, #tpu.memory_space<vmem>>, vector<2x8x16xf32>
    tpu.vector_store %arg7[%c0_44, %c0_45, %c0_46], %151 {strides = array<i32>} : memref<2x8x16xf32, #tpu.memory_space<vmem>>, vector<2x8x16xf32>,
    %c1_i32 = arith.constant 1 : i32
    %153 = arith.index_cast %c1_i32 : i32 to index
    %c0_47 = arith.constant 0 : index
    %c0_48 = arith.constant 0 : index
    %154 = vector.load %arg0[%153, %c0_47, %c0_48] : memref<8x2x32xf32, #tpu.memory_space<vmem>>, vector<1x2x32xf32>
    %155 = vector.shape_cast %154 : vector<1x2x32xf32> to vector<2x32xf32>
    %cst_49 = arith.constant dense<0.000000e+00> : vector<2x64xf32>
    %156 = tpu.matmul %155, %2, %cst_49 {dimension_numbers = #tpu.dot_dimension_numbers<[1], [0], [0], [1], [0, 0, 1, 1], [], []>} : vector<2x32xf32>, vector<32x64xf32>, vector<2x64xf32> -> vector<2x64xf32>
    %157 = vector.broadcast %3 : vector<1x64xf32> to vector<2x64xf32>
    %158 = arith.addf %156, %157 : vector<2x64xf32>
    %159 = vector.extract_strided_slice %158 {offsets = [0, 0], sizes = [2, 16], strides = [1, 1]} : vector<2x64xf32> to vector<2x16xf32>
    %160 = math.tanh %159 : vector<2x16xf32>
    %161 = vector.extract_strided_slice %158 {offsets = [0, 16], sizes = [2, 1], strides = [1, 1]} : vector<2x64xf32> to vector<2x1xf32>
    %cst_50 = arith.constant 0.000000e+00 : f32
    %162 = vector.broadcast %cst_50 : f32 to vector<2x1xf32>
    %163 = arith.maximumf %161, %162 : vector<2x1xf32>
    %164 = vector.broadcast %cst_50 : f32 to vector<2x1xf32>
    %165 = arith.subf %161, %164 : vector<2x1xf32>
    %166 = arith.cmpf one, %165, %165 : vector<2x1xf32>
    %167 = vector.broadcast %cst_50 : f32 to vector<2x1xf32>
    %168 = arith.addf %161, %167 : vector<2x1xf32>
    %169 = math.absf %165 : vector<2x1xf32>
    %cst_51 = arith.constant 0.000000e+00 : f32
    %170 = vector.broadcast %cst_51 : f32 to vector<2x1xf32>
    %171 = arith.subf %170, %169 : vector<2x1xf32>
    %172 = math.exp %171 : vector<2x1xf32>
    %173 = math.log1p %172 : vector<2x1xf32>
    %174 = arith.addf %163, %173 : vector<2x1xf32>
    %175 = arith.select %166, %168, %174 : vector<2x1xi1>, vector<2x1xf32>
    %176 = vector.extract_strided_slice %158 {offsets = [0, 17], sizes = [2, 1], strides = [1, 1]} : vector<2x64xf32> to vector<2x1xf32>
    %177 = arith.negf %176 : vector<2x1xf32>
    %178 = math.exp %177 : vector<2x1xf32>
    %cst_52 = arith.constant 1.000000e+00 : f32
    %179 = vector.broadcast %cst_52 : f32 to vector<2x1xf32>
    %180 = arith.addf %179, %178 : vector<2x1xf32>
    %181 = arith.divf %179, %180 : vector<2x1xf32>
    %182 = vector.extract_strided_slice %158 {offsets = [0, 18], sizes = [2, 3], strides = [1, 1]} : vector<2x64xf32> to vector<2x3xf32>
    %183 = vector.extract_strided_slice %158 {offsets = [0, 21], sizes = [2, 1], strides = [1, 1]} : vector<2x64xf32> to vector<2x1xf32>
    %cst_53 = arith.constant 0.000000e+00 : f32
    %184 = vector.broadcast %cst_53 : f32 to vector<2x1xf32>
    %185 = arith.maximumf %183, %184 : vector<2x1xf32>
    %186 = vector.broadcast %cst_53 : f32 to vector<2x1xf32>
    %187 = arith.subf %183, %186 : vector<2x1xf32>
    %188 = arith.cmpf one, %187, %187 : vector<2x1xf32>
    %189 = vector.broadcast %cst_53 : f32 to vector<2x1xf32>
    %190 = arith.addf %183, %189 : vector<2x1xf32>
    %191 = math.absf %187 : vector<2x1xf32>
    %cst_54 = arith.constant 0.000000e+00 : f32
    %192 = vector.broadcast %cst_54 : f32 to vector<2x1xf32>
    %193 = arith.subf %192, %191 : vector<2x1xf32>
    %194 = math.exp %193 : vector<2x1xf32>
    %195 = math.log1p %194 : vector<2x1xf32>
    %196 = arith.addf %185, %195 : vector<2x1xf32>
    %197 = arith.select %188, %190, %196 : vector<2x1xi1>, vector<2x1xf32>
    %cst_55 = arith.constant 1.000000e+00 : f32
    %198 = vector.broadcast %cst_55 : f32 to vector<2x1xf32>
    %199 = arith.addf %198, %197 : vector<2x1xf32>
    %200 = vector.extract_strided_slice %158 {offsets = [0, 32], sizes = [2, 16], strides = [1, 1]} : vector<2x64xf32> to vector<2x16xf32>
    %201 = arith.negf %200 : vector<2x16xf32>
    %202 = math.exp %201 : vector<2x16xf32>
    %cst_56 = arith.constant 1.000000e+00 : f32
    %203 = vector.broadcast %cst_56 : f32 to vector<2x16xf32>
    %204 = arith.addf %203, %202 : vector<2x16xf32>
    %205 = arith.divf %203, %204 : vector<2x16xf32>
    %206 = vector.extract_strided_slice %158 {offsets = [0, 48], sizes = [2, 16], strides = [1, 1]} : vector<2x64xf32> to vector<2x16xf32>
    %207 = math.tanh %206 : vector<2x16xf32>
    %cst_57 = arith.constant dense<0xFF800000> : vector<2xf32>
    %208 = vector.multi_reduction <maximumf>, %182, %cst_57 [1] : vector<2x3xf32> to vector<2xf32>
    %209 = vector.shape_cast %208 : vector<2xf32> to vector<2x1xf32>
    %210 = vector.broadcast %209 : vector<2x1xf32> to vector<2x3xf32>
    %211 = arith.subf %182, %210 : vector<2x3xf32>
    %212 = math.exp %211 : vector<2x3xf32>
    %cst_58 = arith.constant dense<0.000000e+00> : vector<2xf32>
    %213 = vector.multi_reduction <add>, %212, %cst_58 [1] : vector<2x3xf32> to vector<2xf32>
    %214 = vector.shape_cast %213 : vector<2xf32> to vector<2x1xf32>
    %215 = vector.broadcast %214 : vector<2x1xf32> to vector<2x3xf32>
    %216 = arith.divf %212, %215 : vector<2x3xf32>
    %c0_59 = arith.constant 0 : index
    %c0_60 = arith.constant 0 : index
    %c0_61 = arith.constant 0 : index
    %217 = vector.load %arg7[%c0_59, %c0_60, %c0_61] : memref<2x8x16xf32, #tpu.memory_space<vmem>>, vector<2x8x16xf32>
    %cst_62 = arith.constant 1.000000e-16 : f32
    %218 = vector.broadcast %cst_62 : f32 to vector<2x8x16xf32>
    %219 = arith.addf %217, %218 : vector<2x8x16xf32>
    %cst_63 = arith.constant 1.000000e-16 : f32
    %220 = vector.broadcast %cst_63 : f32 to vector<2x16xf32>
    %221 = arith.addf %160, %220 : vector<2x16xf32>
    %222 = vector.shape_cast %221 : vector<2x16xf32> to vector<2x1x16xf32>
    %223 = vector.broadcast %222 : vector<2x1x16xf32> to vector<2x8x16xf32>
    %224 = arith.mulf %219, %223 : vector<2x8x16xf32>
    %cst_64 = arith.constant dense<0.000000e+00> : vector<2x8xf32>
    %225 = vector.multi_reduction <add>, %224, %cst_64 [2] : vector<2x8x16xf32> to vector<2x8xf32>
    %226 = arith.mulf %219, %219 : vector<2x8x16xf32>
    %cst_65 = arith.constant dense<0.000000e+00> : vector<2x8xf32>
    %227 = vector.multi_reduction <add>, %226, %cst_65 [2] : vector<2x8x16xf32> to vector<2x8xf32>
    %228 = math.sqrt %227 : vector<2x8xf32>
    %229 = arith.mulf %222, %222 : vector<2x1x16xf32>
    %cst_66 = arith.constant dense<0.000000e+00> : vector<2x1xf32>
    %230 = vector.multi_reduction <add>, %229, %cst_66 [2] : vector<2x1x16xf32> to vector<2x1xf32>
    %231 = math.sqrt %230 : vector<2x1xf32>
    %cst_67 = arith.constant 9.99999993E-9 : f32
    %232 = vector.broadcast %cst_67 : f32 to vector<2x8xf32>
    %233 = arith.maximumf %228, %232 : vector<2x8xf32>
    %cst_68 = arith.constant 9.99999993E-9 : f32
    %234 = vector.broadcast %cst_68 : f32 to vector<2x1xf32>
    %235 = arith.maximumf %231, %234 : vector<2x1xf32>
    %236 = vector.broadcast %235 : vector<2x1xf32> to vector<2x8xf32>
    %237 = arith.mulf %233, %236 : vector<2x8xf32>
    %238 = arith.divf %225, %237 : vector<2x8xf32>
    %239 = vector.broadcast %175 : vector<2x1xf32> to vector<2x8xf32>
    %240 = arith.mulf %239, %238 : vector<2x8xf32>
    %cst_69 = arith.constant dense<0xFF800000> : vector<2xf32>
    %241 = vector.multi_reduction <maximumf>, %240, %cst_69 [1] : vector<2x8xf32> to vector<2xf32>
    %242 = vector.shape_cast %241 : vector<2xf32> to vector<2x1xf32>
    %243 = vector.broadcast %242 : vector<2x1xf32> to vector<2x8xf32>
    %244 = arith.subf %240, %243 : vector<2x8xf32>
    %245 = math.exp %244 : vector<2x8xf32>
    %cst_70 = arith.constant dense<0.000000e+00> : vector<2xf32>
    %246 = vector.multi_reduction <add>, %245, %cst_70 [1] : vector<2x8xf32> to vector<2xf32>
    %247 = vector.shape_cast %246 : vector<2xf32> to vector<2x1xf32>
    %248 = vector.broadcast %247 : vector<2x1xf32> to vector<2x8xf32>
    %249 = arith.divf %245, %248 : vector<2x8xf32>
    %250 = vector.broadcast %181 : vector<2x1xf32> to vector<2x8xf32>
    %251 = arith.mulf %250, %249 : vector<2x8xf32>
    %cst_71 = arith.constant 1.000000e+00 : f32
    %252 = vector.broadcast %cst_71 : f32 to vector<2x1xf32>
    %253 = arith.subf %252, %181 : vector<2x1xf32>
    %254 = vector.broadcast %253 : vector<2x1xf32> to vector<2x8xf32>
    %255 = arith.mulf %254, %133 : vector<2x8xf32>
    %256 = arith.addf %251, %255 : vector<2x8xf32>
    %cst_72 = arith.constant dense<0.000000e+00> : vector<2x16xf32>
    %257 = tpu.matmul %256, %4, %cst_72 {dimension_numbers = #tpu.dot_dimension_numbers<[1], [0], [0], [1], [0, 0, 1, 1], [], []>} : vector<2x8xf32>, vector<8x16xf32>, vector<2x16xf32> -> vector<2x16xf32>
    %258 = vector.extract_strided_slice %257 {offsets = [0, 0], sizes = [2, 8], strides = [1, 1]} : vector<2x16xf32> to vector<2x8xf32>
    %259 = vector.extract_strided_slice %216 {offsets = [0, 0], sizes = [2, 1], strides = [1, 1]} : vector<2x3xf32> to vector<2x1xf32>
    %260 = vector.broadcast %259 : vector<2x1xf32> to vector<2x8xf32>
    %261 = arith.mulf %258, %260 : vector<2x8xf32>
    %262 = vector.extract_strided_slice %216 {offsets = [0, 1], sizes = [2, 1], strides = [1, 1]} : vector<2x3xf32> to vector<2x1xf32>
    %263 = vector.broadcast %262 : vector<2x1xf32> to vector<2x8xf32>
    %264 = arith.mulf %256, %263 : vector<2x8xf32>
    %265 = arith.addf %261, %264 : vector<2x8xf32>
    %266 = vector.extract_strided_slice %257 {offsets = [0, 8], sizes = [2, 8], strides = [1, 1]} : vector<2x16xf32> to vector<2x8xf32>
    %267 = vector.extract_strided_slice %216 {offsets = [0, 2], sizes = [2, 1], strides = [1, 1]} : vector<2x3xf32> to vector<2x1xf32>
    %268 = vector.broadcast %267 : vector<2x1xf32> to vector<2x8xf32>
    %269 = arith.mulf %266, %268 : vector<2x8xf32>
    %270 = arith.addf %265, %269 : vector<2x8xf32>
    %cst_73 = arith.constant 0.000000e+00 : f32
    %271 = vector.broadcast %cst_73 : f32 to vector<2x8xf32>
    %272 = arith.maximumf %270, %271 : vector<2x8xf32>
    %273 = vector.broadcast %199 : vector<2x1xf32> to vector<2x8xf32>
    %274 = math.powf %272, %273 : vector<2x8xf32>
    %cst_74 = arith.constant dense<0.000000e+00> : vector<2xf32>
    %275 = vector.multi_reduction <add>, %274, %cst_74 [1] : vector<2x8xf32> to vector<2xf32>
    %276 = vector.shape_cast %275 : vector<2xf32> to vector<2x1xf32>
    %cst_75 = arith.constant 1.000000e-16 : f32
    %277 = vector.broadcast %cst_75 : f32 to vector<2x1xf32>
    %278 = arith.addf %276, %277 : vector<2x1xf32>
    %279 = vector.broadcast %278 : vector<2x1xf32> to vector<2x8xf32>
    %280 = arith.divf %274, %279 : vector<2x8xf32>
    %281 = arith.index_cast %c1_i32 : i32 to index
    %c0_76 = arith.constant 0 : index
    %c0_77 = arith.constant 0 : index
    %282 = vector.load %arg6[%281, %c0_76, %c0_77] : memref<8x2x8xf32, #tpu.memory_space<vmem>>, vector<1x2x8xf32>
    %283 = vector.shape_cast %282 : vector<1x2x8xf32> to vector<2x8xf32>
    %284 = vector.shape_cast %280 : vector<2x8xf32> to vector<1x2x8xf32>
    tpu.vector_store %arg6[%281, %c0_76, %c0_77], %284 {strides = array<i32>} : memref<8x2x8xf32, #tpu.memory_space<vmem>>, vector<1x2x8xf32>,
    %285 = vector.shape_cast %280 : vector<2x8xf32> to vector<2x8x1xf32>
    %286 = vector.shape_cast %205 : vector<2x16xf32> to vector<2x1x16xf32>
    %287 = vector.broadcast %285 : vector<2x8x1xf32> to vector<2x8x16xf32>
    %288 = vector.broadcast %286 : vector<2x1x16xf32> to vector<2x8x16xf32>
    %289 = arith.mulf %287, %288 : vector<2x8x16xf32>
    %290 = vector.shape_cast %280 : vector<2x8xf32> to vector<2x8x1xf32>
    %291 = vector.shape_cast %207 : vector<2x16xf32> to vector<2x1x16xf32>
    %292 = vector.broadcast %290 : vector<2x8x1xf32> to vector<2x8x16xf32>
    %293 = vector.broadcast %291 : vector<2x1x16xf32> to vector<2x8x16xf32>
    %294 = arith.mulf %292, %293 : vector<2x8x16xf32>
    %cst_78 = arith.constant 1.000000e+00 : f32
    %295 = vector.broadcast %cst_78 : f32 to vector<2x8x16xf32>
    %296 = arith.subf %295, %289 : vector<2x8x16xf32>
    %297 = arith.mulf %217, %296 : vector<2x8x16xf32>
    %298 = arith.addf %297, %294 : vector<2x8x16xf32>
    %c0_79 = arith.constant 0 : index
    %c0_80 = arith.constant 0 : index
    %c0_81 = arith.constant 0 : index
    %299 = vector.load %arg7[%c0_79, %c0_80, %c0_81] : memref<2x8x16xf32, #tpu.memory_space<vmem>>, vector<2x8x16xf32>
    tpu.vector_store %arg7[%c0_79, %c0_80, %c0_81], %298 {strides = array<i32>} : memref<2x8x16xf32, #tpu.memory_space<vmem>>, vector<2x8x16xf32>,
    %c2_i32 = arith.constant 2 : i32
    %300 = arith.index_cast %c2_i32 : i32 to index
    %c0_82 = arith.constant 0 : index
    %c0_83 = arith.constant 0 : index
    %301 = vector.load %arg0[%300, %c0_82, %c0_83] : memref<8x2x32xf32, #tpu.memory_space<vmem>>, vector<1x2x32xf32>
    %302 = vector.shape_cast %301 : vector<1x2x32xf32> to vector<2x32xf32>
    %cst_84 = arith.constant dense<0.000000e+00> : vector<2x64xf32>
    %303 = tpu.matmul %302, %2, %cst_84 {dimension_numbers = #tpu.dot_dimension_numbers<[1], [0], [0], [1], [0, 0, 1, 1], [], []>} : vector<2x32xf32>, vector<32x64xf32>, vector<2x64xf32> -> vector<2x64xf32>
    %304 = vector.broadcast %3 : vector<1x64xf32> to vector<2x64xf32>
    %305 = arith.addf %303, %304 : vector<2x64xf32>
    %306 = vector.extract_strided_slice %305 {offsets = [0, 0], sizes = [2, 16], strides = [1, 1]} : vector<2x64xf32> to vector<2x16xf32>
    %307 = math.tanh %306 : vector<2x16xf32>
    %308 = vector.extract_strided_slice %305 {offsets = [0, 16], sizes = [2, 1], strides = [1, 1]} : vector<2x64xf32> to vector<2x1xf32>
    %cst_85 = arith.constant 0.000000e+00 : f32
    %309 = vector.broadcast %cst_85 : f32 to vector<2x1xf32>
    %310 = arith.maximumf %308, %309 : vector<2x1xf32>
    %311 = vector.broadcast %cst_85 : f32 to vector<2x1xf32>
    %312 = arith.subf %308, %311 : vector<2x1xf32>
    %313 = arith.cmpf one, %312, %312 : vector<2x1xf32>
    %314 = vector.broadcast %cst_85 : f32 to vector<2x1xf32>
    %315 = arith.addf %308, %314 : vector<2x1xf32>
    %316 = math.absf %312 : vector<2x1xf32>
    %cst_86 = arith.constant 0.000000e+00 : f32
    %317 = vector.broadcast %cst_86 : f32 to vector<2x1xf32>
    %318 = arith.subf %317, %316 : vector<2x1xf32>
    %319 = math.exp %318 : vector<2x1xf32>
    %320 = math.log1p %319 : vector<2x1xf32>
    %321 = arith.addf %310, %320 : vector<2x1xf32>
    %322 = arith.select %313, %315, %321 : vector<2x1xi1>, vector<2x1xf32>
    %323 = vector.extract_strided_slice %305 {offsets = [0, 17], sizes = [2, 1], strides = [1, 1]} : vector<2x64xf32> to vector<2x1xf32>
    %324 = arith.negf %323 : vector<2x1xf32>
    %325 = math.exp %324 : vector<2x1xf32>
    %cst_87 = arith.constant 1.000000e+00 : f32
    %326 = vector.broadcast %cst_87 : f32 to vector<2x1xf32>
    %327 = arith.addf %326, %325 : vector<2x1xf32>
    %328 = arith.divf %326, %327 : vector<2x1xf32>
    %329 = vector.extract_strided_slice %305 {offsets = [0, 18], sizes = [2, 3], strides = [1, 1]} : vector<2x64xf32> to vector<2x3xf32>
    %330 = vector.extract_strided_slice %305 {offsets = [0, 21], sizes = [2, 1], strides = [1, 1]} : vector<2x64xf32> to vector<2x1xf32>
    %cst_88 = arith.constant 0.000000e+00 : f32
    %331 = vector.broadcast %cst_88 : f32 to vector<2x1xf32>
    %332 = arith.maximumf %330, %331 : vector<2x1xf32>
    %333 = vector.broadcast %cst_88 : f32 to vector<2x1xf32>
    %334 = arith.subf %330, %333 : vector<2x1xf32>
    %335 = arith.cmpf one, %334, %334 : vector<2x1xf32>
    %336 = vector.broadcast %cst_88 : f32 to vector<2x1xf32>
    %337 = arith.addf %330, %336 : vector<2x1xf32>
    %338 = math.absf %334 : vector<2x1xf32>
    %cst_89 = arith.constant 0.000000e+00 : f32
    %339 = vector.broadcast %cst_89 : f32 to vector<2x1xf32>
    %340 = arith.subf %339, %338 : vector<2x1xf32>
    %341 = math.exp %340 : vector<2x1xf32>
    %342 = math.log1p %341 : vector<2x1xf32>
    %343 = arith.addf %332, %342 : vector<2x1xf32>
    %344 = arith.select %335, %337, %343 : vector<2x1xi1>, vector<2x1xf32>
    %cst_90 = arith.constant 1.000000e+00 : f32
    %345 = vector.broadcast %cst_90 : f32 to vector<2x1xf32>
    %346 = arith.addf %345, %344 : vector<2x1xf32>
    %347 = vector.extract_strided_slice %305 {offsets = [0, 32], sizes = [2, 16], strides = [1, 1]} : vector<2x64xf32> to vector<2x16xf32>
    %348 = arith.negf %347 : vector<2x16xf32>
    %349 = math.exp %348 : vector<2x16xf32>
    %cst_91 = arith.constant 1.000000e+00 : f32
    %350 = vector.broadcast %cst_91 : f32 to vector<2x16xf32>
    %351 = arith.addf %350, %349 : vector<2x16xf32>
    %352 = arith.divf %350, %351 : vector<2x16xf32>
    %353 = vector.extract_strided_slice %305 {offsets = [0, 48], sizes = [2, 16], strides = [1, 1]} : vector<2x64xf32> to vector<2x16xf32>
    %354 = math.tanh %353 : vector<2x16xf32>
    %cst_92 = arith.constant dense<0xFF800000> : vector<2xf32>
    %355 = vector.multi_reduction <maximumf>, %329, %cst_92 [1] : vector<2x3xf32> to vector<2xf32>
    %356 = vector.shape_cast %355 : vector<2xf32> to vector<2x1xf32>
    %357 = vector.broadcast %356 : vector<2x1xf32> to vector<2x3xf32>
    %358 = arith.subf %329, %357 : vector<2x3xf32>
    %359 = math.exp %358 : vector<2x3xf32>
    %cst_93 = arith.constant dense<0.000000e+00> : vector<2xf32>
    %360 = vector.multi_reduction <add>, %359, %cst_93 [1] : vector<2x3xf32> to vector<2xf32>
    %361 = vector.shape_cast %360 : vector<2xf32> to vector<2x1xf32>
    %362 = vector.broadcast %361 : vector<2x1xf32> to vector<2x3xf32>
    %363 = arith.divf %359, %362 : vector<2x3xf32>
    %c0_94 = arith.constant 0 : index
    %c0_95 = arith.constant 0 : index
    %c0_96 = arith.constant 0 : index
    %364 = vector.load %arg7[%c0_94, %c0_95, %c0_96] : memref<2x8x16xf32, #tpu.memory_space<vmem>>, vector<2x8x16xf32>
    %cst_97 = arith.constant 1.000000e-16 : f32
    %365 = vector.broadcast %cst_97 : f32 to vector<2x8x16xf32>
    %366 = arith.addf %364, %365 : vector<2x8x16xf32>
    %cst_98 = arith.constant 1.000000e-16 : f32
    %367 = vector.broadcast %cst_98 : f32 to vector<2x16xf32>
    %368 = arith.addf %307, %367 : vector<2x16xf32>
    %369 = vector.shape_cast %368 : vector<2x16xf32> to vector<2x1x16xf32>
    %370 = vector.broadcast %369 : vector<2x1x16xf32> to vector<2x8x16xf32>
    %371 = arith.mulf %366, %370 : vector<2x8x16xf32>
    %cst_99 = arith.constant dense<0.000000e+00> : vector<2x8xf32>
    %372 = vector.multi_reduction <add>, %371, %cst_99 [2] : vector<2x8x16xf32> to vector<2x8xf32>
    %373 = arith.mulf %366, %366 : vector<2x8x16xf32>
    %cst_100 = arith.constant dense<0.000000e+00> : vector<2x8xf32>
    %374 = vector.multi_reduction <add>, %373, %cst_100 [2] : vector<2x8x16xf32> to vector<2x8xf32>
    %375 = math.sqrt %374 : vector<2x8xf32>
    %376 = arith.mulf %369, %369 : vector<2x1x16xf32>
    %cst_101 = arith.constant dense<0.000000e+00> : vector<2x1xf32>
    %377 = vector.multi_reduction <add>, %376, %cst_101 [2] : vector<2x1x16xf32> to vector<2x1xf32>
    %378 = math.sqrt %377 : vector<2x1xf32>
    %cst_102 = arith.constant 9.99999993E-9 : f32
    %379 = vector.broadcast %cst_102 : f32 to vector<2x8xf32>
    %380 = arith.maximumf %375, %379 : vector<2x8xf32>
    %cst_103 = arith.constant 9.99999993E-9 : f32
    %381 = vector.broadcast %cst_103 : f32 to vector<2x1xf32>
    %382 = arith.maximumf %378, %381 : vector<2x1xf32>
    %383 = vector.broadcast %382 : vector<2x1xf32> to vector<2x8xf32>
    %384 = arith.mulf %380, %383 : vector<2x8xf32>
    %385 = arith.divf %372, %384 : vector<2x8xf32>
    %386 = vector.broadcast %322 : vector<2x1xf32> to vector<2x8xf32>
    %387 = arith.mulf %386, %385 : vector<2x8xf32>
    %cst_104 = arith.constant dense<0xFF800000> : vector<2xf32>
    %388 = vector.multi_reduction <maximumf>, %387, %cst_104 [1] : vector<2x8xf32> to vector<2xf32>
    %389 = vector.shape_cast %388 : vector<2xf32> to vector<2x1xf32>
    %390 = vector.broadcast %389 : vector<2x1xf32> to vector<2x8xf32>
    %391 = arith.subf %387, %390 : vector<2x8xf32>
    %392 = math.exp %391 : vector<2x8xf32>
    %cst_105 = arith.constant dense<0.000000e+00> : vector<2xf32>
    %393 = vector.multi_reduction <add>, %392, %cst_105 [1] : vector<2x8xf32> to vector<2xf32>
    %394 = vector.shape_cast %393 : vector<2xf32> to vector<2x1xf32>
    %395 = vector.broadcast %394 : vector<2x1xf32> to vector<2x8xf32>
    %396 = arith.divf %392, %395 : vector<2x8xf32>
    %397 = vector.broadcast %328 : vector<2x1xf32> to vector<2x8xf32>
    %398 = arith.mulf %397, %396 : vector<2x8xf32>
    %cst_106 = arith.constant 1.000000e+00 : f32
    %399 = vector.broadcast %cst_106 : f32 to vector<2x1xf32>
    %400 = arith.subf %399, %328 : vector<2x1xf32>
    %401 = vector.broadcast %400 : vector<2x1xf32> to vector<2x8xf32>
    %402 = arith.mulf %401, %280 : vector<2x8xf32>
    %403 = arith.addf %398, %402 : vector<2x8xf32>
    %cst_107 = arith.constant dense<0.000000e+00> : vector<2x16xf32>
    %404 = tpu.matmul %403, %4, %cst_107 {dimension_numbers = #tpu.dot_dimension_numbers<[1], [0], [0], [1], [0, 0, 1, 1], [], []>} : vector<2x8xf32>, vector<8x16xf32>, vector<2x16xf32> -> vector<2x16xf32>
    %405 = vector.extract_strided_slice %404 {offsets = [0, 0], sizes = [2, 8], strides = [1, 1]} : vector<2x16xf32> to vector<2x8xf32>
    %406 = vector.extract_strided_slice %363 {offsets = [0, 0], sizes = [2, 1], strides = [1, 1]} : vector<2x3xf32> to vector<2x1xf32>
    %407 = vector.broadcast %406 : vector<2x1xf32> to vector<2x8xf32>
    %408 = arith.mulf %405, %407 : vector<2x8xf32>
    %409 = vector.extract_strided_slice %363 {offsets = [0, 1], sizes = [2, 1], strides = [1, 1]} : vector<2x3xf32> to vector<2x1xf32>
    %410 = vector.broadcast %409 : vector<2x1xf32> to vector<2x8xf32>
    %411 = arith.mulf %403, %410 : vector<2x8xf32>
    %412 = arith.addf %408, %411 : vector<2x8xf32>
    %413 = vector.extract_strided_slice %404 {offsets = [0, 8], sizes = [2, 8], strides = [1, 1]} : vector<2x16xf32> to vector<2x8xf32>
    %414 = vector.extract_strided_slice %363 {offsets = [0, 2], sizes = [2, 1], strides = [1, 1]} : vector<2x3xf32> to vector<2x1xf32>
    %415 = vector.broadcast %414 : vector<2x1xf32> to vector<2x8xf32>
    %416 = arith.mulf %413, %415 : vector<2x8xf32>
    %417 = arith.addf %412, %416 : vector<2x8xf32>
    %cst_108 = arith.constant 0.000000e+00 : f32
    %418 = vector.broadcast %cst_108 : f32 to vector<2x8xf32>
    %419 = arith.maximumf %417, %418 : vector<2x8xf32>
    %420 = vector.broadcast %346 : vector<2x1xf32> to vector<2x8xf32>
    %421 = math.powf %419, %420 : vector<2x8xf32>
    %cst_109 = arith.constant dense<0.000000e+00> : vector<2xf32>
    %422 = vector.multi_reduction <add>, %421, %cst_109 [1] : vector<2x8xf32> to vector<2xf32>
    %423 = vector.shape_cast %422 : vector<2xf32> to vector<2x1xf32>
    %cst_110 = arith.constant 1.000000e-16 : f32
    %424 = vector.broadcast %cst_110 : f32 to vector<2x1xf32>
    %425 = arith.addf %423, %424 : vector<2x1xf32>
    %426 = vector.broadcast %425 : vector<2x1xf32> to vector<2x8xf32>
    %427 = arith.divf %421, %426 : vector<2x8xf32>
    %428 = arith.index_cast %c2_i32 : i32 to index
    %c0_111 = arith.constant 0 : index
    %c0_112 = arith.constant 0 : index
    %429 = vector.load %arg6[%428, %c0_111, %c0_112] : memref<8x2x8xf32, #tpu.memory_space<vmem>>, vector<1x2x8xf32>
    %430 = vector.shape_cast %429 : vector<1x2x8xf32> to vector<2x8xf32>
    %431 = vector.shape_cast %427 : vector<2x8xf32> to vector<1x2x8xf32>
    tpu.vector_store %arg6[%428, %c0_111, %c0_112], %431 {strides = array<i32>} : memref<8x2x8xf32, #tpu.memory_space<vmem>>, vector<1x2x8xf32>,
    %432 = vector.shape_cast %427 : vector<2x8xf32> to vector<2x8x1xf32>
    %433 = vector.shape_cast %352 : vector<2x16xf32> to vector<2x1x16xf32>
    %434 = vector.broadcast %432 : vector<2x8x1xf32> to vector<2x8x16xf32>
    %435 = vector.broadcast %433 : vector<2x1x16xf32> to vector<2x8x16xf32>
    %436 = arith.mulf %434, %435 : vector<2x8x16xf32>
    %437 = vector.shape_cast %427 : vector<2x8xf32> to vector<2x8x1xf32>
    %438 = vector.shape_cast %354 : vector<2x16xf32> to vector<2x1x16xf32>
    %439 = vector.broadcast %437 : vector<2x8x1xf32> to vector<2x8x16xf32>
    %440 = vector.broadcast %438 : vector<2x1x16xf32> to vector<2x8x16xf32>
    %441 = arith.mulf %439, %440 : vector<2x8x16xf32>
    %cst_113 = arith.constant 1.000000e+00 : f32
    %442 = vector.broadcast %cst_113 : f32 to vector<2x8x16xf32>
    %443 = arith.subf %442, %436 : vector<2x8x16xf32>
    %444 = arith.mulf %364, %443 : vector<2x8x16xf32>
    %445 = arith.addf %444, %441 : vector<2x8x16xf32>
    %c0_114 = arith.constant 0 : index
    %c0_115 = arith.constant 0 : index
    %c0_116 = arith.constant 0 : index
    %446 = vector.load %arg7[%c0_114, %c0_115, %c0_116] : memref<2x8x16xf32, #tpu.memory_space<vmem>>, vector<2x8x16xf32>
    tpu.vector_store %arg7[%c0_114, %c0_115, %c0_116], %445 {strides = array<i32>} : memref<2x8x16xf32, #tpu.memory_space<vmem>>, vector<2x8x16xf32>,
    %c3_i32 = arith.constant 3 : i32
    %447 = arith.index_cast %c3_i32 : i32 to index
    %c0_117 = arith.constant 0 : index
    %c0_118 = arith.constant 0 : index
    %448 = vector.load %arg0[%447, %c0_117, %c0_118] : memref<8x2x32xf32, #tpu.memory_space<vmem>>, vector<1x2x32xf32>
    %449 = vector.shape_cast %448 : vector<1x2x32xf32> to vector<2x32xf32>
    %cst_119 = arith.constant dense<0.000000e+00> : vector<2x64xf32>
    %450 = tpu.matmul %449, %2, %cst_119 {dimension_numbers = #tpu.dot_dimension_numbers<[1], [0], [0], [1], [0, 0, 1, 1], [], []>} : vector<2x32xf32>, vector<32x64xf32>, vector<2x64xf32> -> vector<2x64xf32>
    %451 = vector.broadcast %3 : vector<1x64xf32> to vector<2x64xf32>
    %452 = arith.addf %450, %451 : vector<2x64xf32>
    %453 = vector.extract_strided_slice %452 {offsets = [0, 0], sizes = [2, 16], strides = [1, 1]} : vector<2x64xf32> to vector<2x16xf32>
    %454 = math.tanh %453 : vector<2x16xf32>
    %455 = vector.extract_strided_slice %452 {offsets = [0, 16], sizes = [2, 1], strides = [1, 1]} : vector<2x64xf32> to vector<2x1xf32>
    %cst_120 = arith.constant 0.000000e+00 : f32
    %456 = vector.broadcast %cst_120 : f32 to vector<2x1xf32>
    %457 = arith.maximumf %455, %456 : vector<2x1xf32>
    %458 = vector.broadcast %cst_120 : f32 to vector<2x1xf32>
    %459 = arith.subf %455, %458 : vector<2x1xf32>
    %460 = arith.cmpf one, %459, %459 : vector<2x1xf32>
    %461 = vector.broadcast %cst_120 : f32 to vector<2x1xf32>
    %462 = arith.addf %455, %461 : vector<2x1xf32>
    %463 = math.absf %459 : vector<2x1xf32>
    %cst_121 = arith.constant 0.000000e+00 : f32
    %464 = vector.broadcast %cst_121 : f32 to vector<2x1xf32>
    %465 = arith.subf %464, %463 : vector<2x1xf32>
    %466 = math.exp %465 : vector<2x1xf32>
    %467 = math.log1p %466 : vector<2x1xf32>
    %468 = arith.addf %457, %467 : vector<2x1xf32>
    %469 = arith.select %460, %462, %468 : vector<2x1xi1>, vector<2x1xf32>
    %470 = vector.extract_strided_slice %452 {offsets = [0, 17], sizes = [2, 1], strides = [1, 1]} : vector<2x64xf32> to vector<2x1xf32>
    %471 = arith.negf %470 : vector<2x1xf32>
    %472 = math.exp %471 : vector<2x1xf32>
    %cst_122 = arith.constant 1.000000e+00 : f32
    %473 = vector.broadcast %cst_122 : f32 to vector<2x1xf32>
    %474 = arith.addf %473, %472 : vector<2x1xf32>
    %475 = arith.divf %473, %474 : vector<2x1xf32>
    %476 = vector.extract_strided_slice %452 {offsets = [0, 18], sizes = [2, 3], strides = [1, 1]} : vector<2x64xf32> to vector<2x3xf32>
    %477 = vector.extract_strided_slice %452 {offsets = [0, 21], sizes = [2, 1], strides = [1, 1]} : vector<2x64xf32> to vector<2x1xf32>
    %cst_123 = arith.constant 0.000000e+00 : f32
    %478 = vector.broadcast %cst_123 : f32 to vector<2x1xf32>
    %479 = arith.maximumf %477, %478 : vector<2x1xf32>
    %480 = vector.broadcast %cst_123 : f32 to vector<2x1xf32>
    %481 = arith.subf %477, %480 : vector<2x1xf32>
    %482 = arith.cmpf one, %481, %481 : vector<2x1xf32>
    %483 = vector.broadcast %cst_123 : f32 to vector<2x1xf32>
    %484 = arith.addf %477, %483 : vector<2x1xf32>
    %485 = math.absf %481 : vector<2x1xf32>
    %cst_124 = arith.constant 0.000000e+00 : f32
    %486 = vector.broadcast %cst_124 : f32 to vector<2x1xf32>
    %487 = arith.subf %486, %485 : vector<2x1xf32>
    %488 = math.exp %487 : vector<2x1xf32>
    %489 = math.log1p %488 : vector<2x1xf32>
    %490 = arith.addf %479, %489 : vector<2x1xf32>
    %491 = arith.select %482, %484, %490 : vector<2x1xi1>, vector<2x1xf32>
    %cst_125 = arith.constant 1.000000e+00 : f32
    %492 = vector.broadcast %cst_125 : f32 to vector<2x1xf32>
    %493 = arith.addf %492, %491 : vector<2x1xf32>
    %494 = vector.extract_strided_slice %452 {offsets = [0, 32], sizes = [2, 16], strides = [1, 1]} : vector<2x64xf32> to vector<2x16xf32>
    %495 = arith.negf %494 : vector<2x16xf32>
    %496 = math.exp %495 : vector<2x16xf32>
    %cst_126 = arith.constant 1.000000e+00 : f32
    %497 = vector.broadcast %cst_126 : f32 to vector<2x16xf32>
    %498 = arith.addf %497, %496 : vector<2x16xf32>
    %499 = arith.divf %497, %498 : vector<2x16xf32>
    %500 = vector.extract_strided_slice %452 {offsets = [0, 48], sizes = [2, 16], strides = [1, 1]} : vector<2x64xf32> to vector<2x16xf32>
    %501 = math.tanh %500 : vector<2x16xf32>
    %cst_127 = arith.constant dense<0xFF800000> : vector<2xf32>
    %502 = vector.multi_reduction <maximumf>, %476, %cst_127 [1] : vector<2x3xf32> to vector<2xf32>
    %503 = vector.shape_cast %502 : vector<2xf32> to vector<2x1xf32>
    %504 = vector.broadcast %503 : vector<2x1xf32> to vector<2x3xf32>
    %505 = arith.subf %476, %504 : vector<2x3xf32>
    %506 = math.exp %505 : vector<2x3xf32>
    %cst_128 = arith.constant dense<0.000000e+00> : vector<2xf32>
    %507 = vector.multi_reduction <add>, %506, %cst_128 [1] : vector<2x3xf32> to vector<2xf32>
    %508 = vector.shape_cast %507 : vector<2xf32> to vector<2x1xf32>
    %509 = vector.broadcast %508 : vector<2x1xf32> to vector<2x3xf32>
    %510 = arith.divf %506, %509 : vector<2x3xf32>
    %c0_129 = arith.constant 0 : index
    %c0_130 = arith.constant 0 : index
    %c0_131 = arith.constant 0 : index
    %511 = vector.load %arg7[%c0_129, %c0_130, %c0_131] : memref<2x8x16xf32, #tpu.memory_space<vmem>>, vector<2x8x16xf32>
    %cst_132 = arith.constant 1.000000e-16 : f32
    %512 = vector.broadcast %cst_132 : f32 to vector<2x8x16xf32>
    %513 = arith.addf %511, %512 : vector<2x8x16xf32>
    %cst_133 = arith.constant 1.000000e-16 : f32
    %514 = vector.broadcast %cst_133 : f32 to vector<2x16xf32>
    %515 = arith.addf %454, %514 : vector<2x16xf32>
    %516 = vector.shape_cast %515 : vector<2x16xf32> to vector<2x1x16xf32>
    %517 = vector.broadcast %516 : vector<2x1x16xf32> to vector<2x8x16xf32>
    %518 = arith.mulf %513, %517 : vector<2x8x16xf32>
    %cst_134 = arith.constant dense<0.000000e+00> : vector<2x8xf32>
    %519 = vector.multi_reduction <add>, %518, %cst_134 [2] : vector<2x8x16xf32> to vector<2x8xf32>
    %520 = arith.mulf %513, %513 : vector<2x8x16xf32>
    %cst_135 = arith.constant dense<0.000000e+00> : vector<2x8xf32>
    %521 = vector.multi_reduction <add>, %520, %cst_135 [2] : vector<2x8x16xf32> to vector<2x8xf32>
    %522 = math.sqrt %521 : vector<2x8xf32>
    %523 = arith.mulf %516, %516 : vector<2x1x16xf32>
    %cst_136 = arith.constant dense<0.000000e+00> : vector<2x1xf32>
    %524 = vector.multi_reduction <add>, %523, %cst_136 [2] : vector<2x1x16xf32> to vector<2x1xf32>
    %525 = math.sqrt %524 : vector<2x1xf32>
    %cst_137 = arith.constant 9.99999993E-9 : f32
    %526 = vector.broadcast %cst_137 : f32 to vector<2x8xf32>
    %527 = arith.maximumf %522, %526 : vector<2x8xf32>
    %cst_138 = arith.constant 9.99999993E-9 : f32
    %528 = vector.broadcast %cst_138 : f32 to vector<2x1xf32>
    %529 = arith.maximumf %525, %528 : vector<2x1xf32>
    %530 = vector.broadcast %529 : vector<2x1xf32> to vector<2x8xf32>
    %531 = arith.mulf %527, %530 : vector<2x8xf32>
    %532 = arith.divf %519, %531 : vector<2x8xf32>
    %533 = vector.broadcast %469 : vector<2x1xf32> to vector<2x8xf32>
    %534 = arith.mulf %533, %532 : vector<2x8xf32>
    %cst_139 = arith.constant dense<0xFF800000> : vector<2xf32>
    %535 = vector.multi_reduction <maximumf>, %534, %cst_139 [1] : vector<2x8xf32> to vector<2xf32>
    %536 = vector.shape_cast %535 : vector<2xf32> to vector<2x1xf32>
    %537 = vector.broadcast %536 : vector<2x1xf32> to vector<2x8xf32>
    %538 = arith.subf %534, %537 : vector<2x8xf32>
    %539 = math.exp %538 : vector<2x8xf32>
    %cst_140 = arith.constant dense<0.000000e+00> : vector<2xf32>
    %540 = vector.multi_reduction <add>, %539, %cst_140 [1] : vector<2x8xf32> to vector<2xf32>
    %541 = vector.shape_cast %540 : vector<2xf32> to vector<2x1xf32>
    %542 = vector.broadcast %541 : vector<2x1xf32> to vector<2x8xf32>
    %543 = arith.divf %539, %542 : vector<2x8xf32>
    %544 = vector.broadcast %475 : vector<2x1xf32> to vector<2x8xf32>
    %545 = arith.mulf %544, %543 : vector<2x8xf32>
    %cst_141 = arith.constant 1.000000e+00 : f32
    %546 = vector.broadcast %cst_141 : f32 to vector<2x1xf32>
    %547 = arith.subf %546, %475 : vector<2x1xf32>
    %548 = vector.broadcast %547 : vector<2x1xf32> to vector<2x8xf32>
    %549 = arith.mulf %548, %427 : vector<2x8xf32>
    %550 = arith.addf %545, %549 : vector<2x8xf32>
    %cst_142 = arith.constant dense<0.000000e+00> : vector<2x16xf32>
    %551 = tpu.matmul %550, %4, %cst_142 {dimension_numbers = #tpu.dot_dimension_numbers<[1], [0], [0], [1], [0, 0, 1, 1], [], []>} : vector<2x8xf32>, vector<8x16xf32>, vector<2x16xf32> -> vector<2x16xf32>
    %552 = vector.extract_strided_slice %551 {offsets = [0, 0], sizes = [2, 8], strides = [1, 1]} : vector<2x16xf32> to vector<2x8xf32>
    %553 = vector.extract_strided_slice %510 {offsets = [0, 0], sizes = [2, 1], strides = [1, 1]} : vector<2x3xf32> to vector<2x1xf32>
    %554 = vector.broadcast %553 : vector<2x1xf32> to vector<2x8xf32>
    %555 = arith.mulf %552, %554 : vector<2x8xf32>
    %556 = vector.extract_strided_slice %510 {offsets = [0, 1], sizes = [2, 1], strides = [1, 1]} : vector<2x3xf32> to vector<2x1xf32>
    %557 = vector.broadcast %556 : vector<2x1xf32> to vector<2x8xf32>
    %558 = arith.mulf %550, %557 : vector<2x8xf32>
    %559 = arith.addf %555, %558 : vector<2x8xf32>
    %560 = vector.extract_strided_slice %551 {offsets = [0, 8], sizes = [2, 8], strides = [1, 1]} : vector<2x16xf32> to vector<2x8xf32>
    %561 = vector.extract_strided_slice %510 {offsets = [0, 2], sizes = [2, 1], strides = [1, 1]} : vector<2x3xf32> to vector<2x1xf32>
    %562 = vector.broadcast %561 : vector<2x1xf32> to vector<2x8xf32>
    %563 = arith.mulf %560, %562 : vector<2x8xf32>
    %564 = arith.addf %559, %563 : vector<2x8xf32>
    %cst_143 = arith.constant 0.000000e+00 : f32
    %565 = vector.broadcast %cst_143 : f32 to vector<2x8xf32>
    %566 = arith.maximumf %564, %565 : vector<2x8xf32>
    %567 = vector.broadcast %493 : vector<2x1xf32> to vector<2x8xf32>
    %568 = math.powf %566, %567 : vector<2x8xf32>
    %cst_144 = arith.constant dense<0.000000e+00> : vector<2xf32>
    %569 = vector.multi_reduction <add>, %568, %cst_144 [1] : vector<2x8xf32> to vector<2xf32>
    %570 = vector.shape_cast %569 : vector<2xf32> to vector<2x1xf32>
    %cst_145 = arith.constant 1.000000e-16 : f32
    %571 = vector.broadcast %cst_145 : f32 to vector<2x1xf32>
    %572 = arith.addf %570, %571 : vector<2x1xf32>
    %573 = vector.broadcast %572 : vector<2x1xf32> to vector<2x8xf32>
    %574 = arith.divf %568, %573 : vector<2x8xf32>
    %575 = arith.index_cast %c3_i32 : i32 to index
    %c0_146 = arith.constant 0 : index
    %c0_147 = arith.constant 0 : index
    %576 = vector.load %arg6[%575, %c0_146, %c0_147] : memref<8x2x8xf32, #tpu.memory_space<vmem>>, vector<1x2x8xf32>
    %577 = vector.shape_cast %576 : vector<1x2x8xf32> to vector<2x8xf32>
    %578 = vector.shape_cast %574 : vector<2x8xf32> to vector<1x2x8xf32>
    tpu.vector_store %arg6[%575, %c0_146, %c0_147], %578 {strides = array<i32>} : memref<8x2x8xf32, #tpu.memory_space<vmem>>, vector<1x2x8xf32>,
    %579 = vector.shape_cast %574 : vector<2x8xf32> to vector<2x8x1xf32>
    %580 = vector.shape_cast %499 : vector<2x16xf32> to vector<2x1x16xf32>
    %581 = vector.broadcast %579 : vector<2x8x1xf32> to vector<2x8x16xf32>
    %582 = vector.broadcast %580 : vector<2x1x16xf32> to vector<2x8x16xf32>
    %583 = arith.mulf %581, %582 : vector<2x8x16xf32>
    %584 = vector.shape_cast %574 : vector<2x8xf32> to vector<2x8x1xf32>
    %585 = vector.shape_cast %501 : vector<2x16xf32> to vector<2x1x16xf32>
    %586 = vector.broadcast %584 : vector<2x8x1xf32> to vector<2x8x16xf32>
    %587 = vector.broadcast %585 : vector<2x1x16xf32> to vector<2x8x16xf32>
    %588 = arith.mulf %586, %587 : vector<2x8x16xf32>
    %cst_148 = arith.constant 1.000000e+00 : f32
    %589 = vector.broadcast %cst_148 : f32 to vector<2x8x16xf32>
    %590 = arith.subf %589, %583 : vector<2x8x16xf32>
    %591 = arith.mulf %511, %590 : vector<2x8x16xf32>
    %592 = arith.addf %591, %588 : vector<2x8x16xf32>
    %c0_149 = arith.constant 0 : index
    %c0_150 = arith.constant 0 : index
    %c0_151 = arith.constant 0 : index
    %593 = vector.load %arg7[%c0_149, %c0_150, %c0_151] : memref<2x8x16xf32, #tpu.memory_space<vmem>>, vector<2x8x16xf32>
    tpu.vector_store %arg7[%c0_149, %c0_150, %c0_151], %592 {strides = array<i32>} : memref<2x8x16xf32, #tpu.memory_space<vmem>>, vector<2x8x16xf32>,
    %c4_i32 = arith.constant 4 : i32
    %594 = arith.index_cast %c4_i32 : i32 to index
    %c0_152 = arith.constant 0 : index
    %c0_153 = arith.constant 0 : index
    %595 = vector.load %arg0[%594, %c0_152, %c0_153] : memref<8x2x32xf32, #tpu.memory_space<vmem>>, vector<1x2x32xf32>
    %596 = vector.shape_cast %595 : vector<1x2x32xf32> to vector<2x32xf32>
    %cst_154 = arith.constant dense<0.000000e+00> : vector<2x64xf32>
    %597 = tpu.matmul %596, %2, %cst_154 {dimension_numbers = #tpu.dot_dimension_numbers<[1], [0], [0], [1], [0, 0, 1, 1], [], []>} : vector<2x32xf32>, vector<32x64xf32>, vector<2x64xf32> -> vector<2x64xf32>
    %598 = vector.broadcast %3 : vector<1x64xf32> to vector<2x64xf32>
    %599 = arith.addf %597, %598 : vector<2x64xf32>
    %600 = vector.extract_strided_slice %599 {offsets = [0, 0], sizes = [2, 16], strides = [1, 1]} : vector<2x64xf32> to vector<2x16xf32>
    %601 = math.tanh %600 : vector<2x16xf32>
    %602 = vector.extract_strided_slice %599 {offsets = [0, 16], sizes = [2, 1], strides = [1, 1]} : vector<2x64xf32> to vector<2x1xf32>
    %cst_155 = arith.constant 0.000000e+00 : f32
    %603 = vector.broadcast %cst_155 : f32 to vector<2x1xf32>
    %604 = arith.maximumf %602, %603 : vector<2x1xf32>
    %605 = vector.broadcast %cst_155 : f32 to vector<2x1xf32>
    %606 = arith.subf %602, %605 : vector<2x1xf32>
    %607 = arith.cmpf one, %606, %606 : vector<2x1xf32>
    %608 = vector.broadcast %cst_155 : f32 to vector<2x1xf32>
    %609 = arith.addf %602, %608 : vector<2x1xf32>
    %610 = math.absf %606 : vector<2x1xf32>
    %cst_156 = arith.constant 0.000000e+00 : f32
    %611 = vector.broadcast %cst_156 : f32 to vector<2x1xf32>
    %612 = arith.subf %611, %610 : vector<2x1xf32>
    %613 = math.exp %612 : vector<2x1xf32>
    %614 = math.log1p %613 : vector<2x1xf32>
    %615 = arith.addf %604, %614 : vector<2x1xf32>
    %616 = arith.select %607, %609, %615 : vector<2x1xi1>, vector<2x1xf32>
    %617 = vector.extract_strided_slice %599 {offsets = [0, 17], sizes = [2, 1], strides = [1, 1]} : vector<2x64xf32> to vector<2x1xf32>
    %618 = arith.negf %617 : vector<2x1xf32>
    %619 = math.exp %618 : vector<2x1xf32>
    %cst_157 = arith.constant 1.000000e+00 : f32
    %620 = vector.broadcast %cst_157 : f32 to vector<2x1xf32>
    %621 = arith.addf %620, %619 : vector<2x1xf32>
    %622 = arith.divf %620, %621 : vector<2x1xf32>
    %623 = vector.extract_strided_slice %599 {offsets = [0, 18], sizes = [2, 3], strides = [1, 1]} : vector<2x64xf32> to vector<2x3xf32>
    %624 = vector.extract_strided_slice %599 {offsets = [0, 21], sizes = [2, 1], strides = [1, 1]} : vector<2x64xf32> to vector<2x1xf32>
    %cst_158 = arith.constant 0.000000e+00 : f32
    %625 = vector.broadcast %cst_158 : f32 to vector<2x1xf32>
    %626 = arith.maximumf %624, %625 : vector<2x1xf32>
    %627 = vector.broadcast %cst_158 : f32 to vector<2x1xf32>
    %628 = arith.subf %624, %627 : vector<2x1xf32>
    %629 = arith.cmpf one, %628, %628 : vector<2x1xf32>
    %630 = vector.broadcast %cst_158 : f32 to vector<2x1xf32>
    %631 = arith.addf %624, %630 : vector<2x1xf32>
    %632 = math.absf %628 : vector<2x1xf32>
    %cst_159 = arith.constant 0.000000e+00 : f32
    %633 = vector.broadcast %cst_159 : f32 to vector<2x1xf32>
    %634 = arith.subf %633, %632 : vector<2x1xf32>
    %635 = math.exp %634 : vector<2x1xf32>
    %636 = math.log1p %635 : vector<2x1xf32>
    %637 = arith.addf %626, %636 : vector<2x1xf32>
    %638 = arith.select %629, %631, %637 : vector<2x1xi1>, vector<2x1xf32>
    %cst_160 = arith.constant 1.000000e+00 : f32
    %639 = vector.broadcast %cst_160 : f32 to vector<2x1xf32>
    %640 = arith.addf %639, %638 : vector<2x1xf32>
    %641 = vector.extract_strided_slice %599 {offsets = [0, 32], sizes = [2, 16], strides = [1, 1]} : vector<2x64xf32> to vector<2x16xf32>
    %642 = arith.negf %641 : vector<2x16xf32>
    %643 = math.exp %642 : vector<2x16xf32>
    %cst_161 = arith.constant 1.000000e+00 : f32
    %644 = vector.broadcast %cst_161 : f32 to vector<2x16xf32>
    %645 = arith.addf %644, %643 : vector<2x16xf32>
    %646 = arith.divf %644, %645 : vector<2x16xf32>
    %647 = vector.extract_strided_slice %599 {offsets = [0, 48], sizes = [2, 16], strides = [1, 1]} : vector<2x64xf32> to vector<2x16xf32>
    %648 = math.tanh %647 : vector<2x16xf32>
    %cst_162 = arith.constant dense<0xFF800000> : vector<2xf32>
    %649 = vector.multi_reduction <maximumf>, %623, %cst_162 [1] : vector<2x3xf32> to vector<2xf32>
    %650 = vector.shape_cast %649 : vector<2xf32> to vector<2x1xf32>
    %651 = vector.broadcast %650 : vector<2x1xf32> to vector<2x3xf32>
    %652 = arith.subf %623, %651 : vector<2x3xf32>
    %653 = math.exp %652 : vector<2x3xf32>
    %cst_163 = arith.constant dense<0.000000e+00> : vector<2xf32>
    %654 = vector.multi_reduction <add>, %653, %cst_163 [1] : vector<2x3xf32> to vector<2xf32>
    %655 = vector.shape_cast %654 : vector<2xf32> to vector<2x1xf32>
    %656 = vector.broadcast %655 : vector<2x1xf32> to vector<2x3xf32>
    %657 = arith.divf %653, %656 : vector<2x3xf32>
    %c0_164 = arith.constant 0 : index
    %c0_165 = arith.constant 0 : index
    %c0_166 = arith.constant 0 : index
    %658 = vector.load %arg7[%c0_164, %c0_165, %c0_166] : memref<2x8x16xf32, #tpu.memory_space<vmem>>, vector<2x8x16xf32>
    %cst_167 = arith.constant 1.000000e-16 : f32
    %659 = vector.broadcast %cst_167 : f32 to vector<2x8x16xf32>
    %660 = arith.addf %658, %659 : vector<2x8x16xf32>
    %cst_168 = arith.constant 1.000000e-16 : f32
    %661 = vector.broadcast %cst_168 : f32 to vector<2x16xf32>
    %662 = arith.addf %601, %661 : vector<2x16xf32>
    %663 = vector.shape_cast %662 : vector<2x16xf32> to vector<2x1x16xf32>
    %664 = vector.broadcast %663 : vector<2x1x16xf32> to vector<2x8x16xf32>
    %665 = arith.mulf %660, %664 : vector<2x8x16xf32>
    %cst_169 = arith.constant dense<0.000000e+00> : vector<2x8xf32>
    %666 = vector.multi_reduction <add>, %665, %cst_169 [2] : vector<2x8x16xf32> to vector<2x8xf32>
    %667 = arith.mulf %660, %660 : vector<2x8x16xf32>
    %cst_170 = arith.constant dense<0.000000e+00> : vector<2x8xf32>
    %668 = vector.multi_reduction <add>, %667, %cst_170 [2] : vector<2x8x16xf32> to vector<2x8xf32>
    %669 = math.sqrt %668 : vector<2x8xf32>
    %670 = arith.mulf %663, %663 : vector<2x1x16xf32>
    %cst_171 = arith.constant dense<0.000000e+00> : vector<2x1xf32>
    %671 = vector.multi_reduction <add>, %670, %cst_171 [2] : vector<2x1x16xf32> to vector<2x1xf32>
    %672 = math.sqrt %671 : vector<2x1xf32>
    %cst_172 = arith.constant 9.99999993E-9 : f32
    %673 = vector.broadcast %cst_172 : f32 to vector<2x8xf32>
    %674 = arith.maximumf %669, %673 : vector<2x8xf32>
    %cst_173 = arith.constant 9.99999993E-9 : f32
    %675 = vector.broadcast %cst_173 : f32 to vector<2x1xf32>
    %676 = arith.maximumf %672, %675 : vector<2x1xf32>
    %677 = vector.broadcast %676 : vector<2x1xf32> to vector<2x8xf32>
    %678 = arith.mulf %674, %677 : vector<2x8xf32>
    %679 = arith.divf %666, %678 : vector<2x8xf32>
    %680 = vector.broadcast %616 : vector<2x1xf32> to vector<2x8xf32>
    %681 = arith.mulf %680, %679 : vector<2x8xf32>
    %cst_174 = arith.constant dense<0xFF800000> : vector<2xf32>
    %682 = vector.multi_reduction <maximumf>, %681, %cst_174 [1] : vector<2x8xf32> to vector<2xf32>
    %683 = vector.shape_cast %682 : vector<2xf32> to vector<2x1xf32>
    %684 = vector.broadcast %683 : vector<2x1xf32> to vector<2x8xf32>
    %685 = arith.subf %681, %684 : vector<2x8xf32>
    %686 = math.exp %685 : vector<2x8xf32>
    %cst_175 = arith.constant dense<0.000000e+00> : vector<2xf32>
    %687 = vector.multi_reduction <add>, %686, %cst_175 [1] : vector<2x8xf32> to vector<2xf32>
    %688 = vector.shape_cast %687 : vector<2xf32> to vector<2x1xf32>
    %689 = vector.broadcast %688 : vector<2x1xf32> to vector<2x8xf32>
    %690 = arith.divf %686, %689 : vector<2x8xf32>
    %691 = vector.broadcast %622 : vector<2x1xf32> to vector<2x8xf32>
    %692 = arith.mulf %691, %690 : vector<2x8xf32>
    %cst_176 = arith.constant 1.000000e+00 : f32
    %693 = vector.broadcast %cst_176 : f32 to vector<2x1xf32>
    %694 = arith.subf %693, %622 : vector<2x1xf32>
    %695 = vector.broadcast %694 : vector<2x1xf32> to vector<2x8xf32>
    %696 = arith.mulf %695, %574 : vector<2x8xf32>
    %697 = arith.addf %692, %696 : vector<2x8xf32>
    %cst_177 = arith.constant dense<0.000000e+00> : vector<2x16xf32>
    %698 = tpu.matmul %697, %4, %cst_177 {dimension_numbers = #tpu.dot_dimension_numbers<[1], [0], [0], [1], [0, 0, 1, 1], [], []>} : vector<2x8xf32>, vector<8x16xf32>, vector<2x16xf32> -> vector<2x16xf32>
    %699 = vector.extract_strided_slice %698 {offsets = [0, 0], sizes = [2, 8], strides = [1, 1]} : vector<2x16xf32> to vector<2x8xf32>
    %700 = vector.extract_strided_slice %657 {offsets = [0, 0], sizes = [2, 1], strides = [1, 1]} : vector<2x3xf32> to vector<2x1xf32>
    %701 = vector.broadcast %700 : vector<2x1xf32> to vector<2x8xf32>
    %702 = arith.mulf %699, %701 : vector<2x8xf32>
    %703 = vector.extract_strided_slice %657 {offsets = [0, 1], sizes = [2, 1], strides = [1, 1]} : vector<2x3xf32> to vector<2x1xf32>
    %704 = vector.broadcast %703 : vector<2x1xf32> to vector<2x8xf32>
    %705 = arith.mulf %697, %704 : vector<2x8xf32>
    %706 = arith.addf %702, %705 : vector<2x8xf32>
    %707 = vector.extract_strided_slice %698 {offsets = [0, 8], sizes = [2, 8], strides = [1, 1]} : vector<2x16xf32> to vector<2x8xf32>
    %708 = vector.extract_strided_slice %657 {offsets = [0, 2], sizes = [2, 1], strides = [1, 1]} : vector<2x3xf32> to vector<2x1xf32>
    %709 = vector.broadcast %708 : vector<2x1xf32> to vector<2x8xf32>
    %710 = arith.mulf %707, %709 : vector<2x8xf32>
    %711 = arith.addf %706, %710 : vector<2x8xf32>
    %cst_178 = arith.constant 0.000000e+00 : f32
    %712 = vector.broadcast %cst_178 : f32 to vector<2x8xf32>
    %713 = arith.maximumf %711, %712 : vector<2x8xf32>
    %714 = vector.broadcast %640 : vector<2x1xf32> to vector<2x8xf32>
    %715 = math.powf %713, %714 : vector<2x8xf32>
    %cst_179 = arith.constant dense<0.000000e+00> : vector<2xf32>
    %716 = vector.multi_reduction <add>, %715, %cst_179 [1] : vector<2x8xf32> to vector<2xf32>
    %717 = vector.shape_cast %716 : vector<2xf32> to vector<2x1xf32>
    %cst_180 = arith.constant 1.000000e-16 : f32
    %718 = vector.broadcast %cst_180 : f32 to vector<2x1xf32>
    %719 = arith.addf %717, %718 : vector<2x1xf32>
    %720 = vector.broadcast %719 : vector<2x1xf32> to vector<2x8xf32>
    %721 = arith.divf %715, %720 : vector<2x8xf32>
    %722 = arith.index_cast %c4_i32 : i32 to index
    %c0_181 = arith.constant 0 : index
    %c0_182 = arith.constant 0 : index
    %723 = vector.load %arg6[%722, %c0_181, %c0_182] : memref<8x2x8xf32, #tpu.memory_space<vmem>>, vector<1x2x8xf32>
    %724 = vector.shape_cast %723 : vector<1x2x8xf32> to vector<2x8xf32>
    %725 = vector.shape_cast %721 : vector<2x8xf32> to vector<1x2x8xf32>
    tpu.vector_store %arg6[%722, %c0_181, %c0_182], %725 {strides = array<i32>} : memref<8x2x8xf32, #tpu.memory_space<vmem>>, vector<1x2x8xf32>,
    %726 = vector.shape_cast %721 : vector<2x8xf32> to vector<2x8x1xf32>
    %727 = vector.shape_cast %646 : vector<2x16xf32> to vector<2x1x16xf32>
    %728 = vector.broadcast %726 : vector<2x8x1xf32> to vector<2x8x16xf32>
    %729 = vector.broadcast %727 : vector<2x1x16xf32> to vector<2x8x16xf32>
    %730 = arith.mulf %728, %729 : vector<2x8x16xf32>
    %731 = vector.shape_cast %721 : vector<2x8xf32> to vector<2x8x1xf32>
    %732 = vector.shape_cast %648 : vector<2x16xf32> to vector<2x1x16xf32>
    %733 = vector.broadcast %731 : vector<2x8x1xf32> to vector<2x8x16xf32>
    %734 = vector.broadcast %732 : vector<2x1x16xf32> to vector<2x8x16xf32>
    %735 = arith.mulf %733, %734 : vector<2x8x16xf32>
    %cst_183 = arith.constant 1.000000e+00 : f32
    %736 = vector.broadcast %cst_183 : f32 to vector<2x8x16xf32>
    %737 = arith.subf %736, %730 : vector<2x8x16xf32>
    %738 = arith.mulf %658, %737 : vector<2x8x16xf32>
    %739 = arith.addf %738, %735 : vector<2x8x16xf32>
    %c0_184 = arith.constant 0 : index
    %c0_185 = arith.constant 0 : index
    %c0_186 = arith.constant 0 : index
    %740 = vector.load %arg7[%c0_184, %c0_185, %c0_186] : memref<2x8x16xf32, #tpu.memory_space<vmem>>, vector<2x8x16xf32>
    tpu.vector_store %arg7[%c0_184, %c0_185, %c0_186], %739 {strides = array<i32>} : memref<2x8x16xf32, #tpu.memory_space<vmem>>, vector<2x8x16xf32>,
    %c5_i32 = arith.constant 5 : i32
    %741 = arith.index_cast %c5_i32 : i32 to index
    %c0_187 = arith.constant 0 : index
    %c0_188 = arith.constant 0 : index
    %742 = vector.load %arg0[%741, %c0_187, %c0_188] : memref<8x2x32xf32, #tpu.memory_space<vmem>>, vector<1x2x32xf32>
    %743 = vector.shape_cast %742 : vector<1x2x32xf32> to vector<2x32xf32>
    %cst_189 = arith.constant dense<0.000000e+00> : vector<2x64xf32>
    %744 = tpu.matmul %743, %2, %cst_189 {dimension_numbers = #tpu.dot_dimension_numbers<[1], [0], [0], [1], [0, 0, 1, 1], [], []>} : vector<2x32xf32>, vector<32x64xf32>, vector<2x64xf32> -> vector<2x64xf32>
    %745 = vector.broadcast %3 : vector<1x64xf32> to vector<2x64xf32>
    %746 = arith.addf %744, %745 : vector<2x64xf32>
    %747 = vector.extract_strided_slice %746 {offsets = [0, 0], sizes = [2, 16], strides = [1, 1]} : vector<2x64xf32> to vector<2x16xf32>
    %748 = math.tanh %747 : vector<2x16xf32>
    %749 = vector.extract_strided_slice %746 {offsets = [0, 16], sizes = [2, 1], strides = [1, 1]} : vector<2x64xf32> to vector<2x1xf32>
    %cst_190 = arith.constant 0.000000e+00 : f32
    %750 = vector.broadcast %cst_190 : f32 to vector<2x1xf32>
    %751 = arith.maximumf %749, %750 : vector<2x1xf32>
    %752 = vector.broadcast %cst_190 : f32 to vector<2x1xf32>
    %753 = arith.subf %749, %752 : vector<2x1xf32>
    %754 = arith.cmpf one, %753, %753 : vector<2x1xf32>
    %755 = vector.broadcast %cst_190 : f32 to vector<2x1xf32>
    %756 = arith.addf %749, %755 : vector<2x1xf32>
    %757 = math.absf %753 : vector<2x1xf32>
    %cst_191 = arith.constant 0.000000e+00 : f32
    %758 = vector.broadcast %cst_191 : f32 to vector<2x1xf32>
    %759 = arith.subf %758, %757 : vector<2x1xf32>
    %760 = math.exp %759 : vector<2x1xf32>
    %761 = math.log1p %760 : vector<2x1xf32>
    %762 = arith.addf %751, %761 : vector<2x1xf32>
    %763 = arith.select %754, %756, %762 : vector<2x1xi1>, vector<2x1xf32>
    %764 = vector.extract_strided_slice %746 {offsets = [0, 17], sizes = [2, 1], strides = [1, 1]} : vector<2x64xf32> to vector<2x1xf32>
    %765 = arith.negf %764 : vector<2x1xf32>
    %766 = math.exp %765 : vector<2x1xf32>
    %cst_192 = arith.constant 1.000000e+00 : f32
    %767 = vector.broadcast %cst_192 : f32 to vector<2x1xf32>
    %768 = arith.addf %767, %766 : vector<2x1xf32>
    %769 = arith.divf %767, %768 : vector<2x1xf32>
    %770 = vector.extract_strided_slice %746 {offsets = [0, 18], sizes = [2, 3], strides = [1, 1]} : vector<2x64xf32> to vector<2x3xf32>
    %771 = vector.extract_strided_slice %746 {offsets = [0, 21], sizes = [2, 1], strides = [1, 1]} : vector<2x64xf32> to vector<2x1xf32>
    %cst_193 = arith.constant 0.000000e+00 : f32
    %772 = vector.broadcast %cst_193 : f32 to vector<2x1xf32>
    %773 = arith.maximumf %771, %772 : vector<2x1xf32>
    %774 = vector.broadcast %cst_193 : f32 to vector<2x1xf32>
    %775 = arith.subf %771, %774 : vector<2x1xf32>
    %776 = arith.cmpf one, %775, %775 : vector<2x1xf32>
    %777 = vector.broadcast %cst_193 : f32 to vector<2x1xf32>
    %778 = arith.addf %771, %777 : vector<2x1xf32>
    %779 = math.absf %775 : vector<2x1xf32>
    %cst_194 = arith.constant 0.000000e+00 : f32
    %780 = vector.broadcast %cst_194 : f32 to vector<2x1xf32>
    %781 = arith.subf %780, %779 : vector<2x1xf32>
    %782 = math.exp %781 : vector<2x1xf32>
    %783 = math.log1p %782 : vector<2x1xf32>
    %784 = arith.addf %773, %783 : vector<2x1xf32>
    %785 = arith.select %776, %778, %784 : vector<2x1xi1>, vector<2x1xf32>
    %cst_195 = arith.constant 1.000000e+00 : f32
    %786 = vector.broadcast %cst_195 : f32 to vector<2x1xf32>
    %787 = arith.addf %786, %785 : vector<2x1xf32>
    %788 = vector.extract_strided_slice %746 {offsets = [0, 32], sizes = [2, 16], strides = [1, 1]} : vector<2x64xf32> to vector<2x16xf32>
    %789 = arith.negf %788 : vector<2x16xf32>
    %790 = math.exp %789 : vector<2x16xf32>
    %cst_196 = arith.constant 1.000000e+00 : f32
    %791 = vector.broadcast %cst_196 : f32 to vector<2x16xf32>
    %792 = arith.addf %791, %790 : vector<2x16xf32>
    %793 = arith.divf %791, %792 : vector<2x16xf32>
    %794 = vector.extract_strided_slice %746 {offsets = [0, 48], sizes = [2, 16], strides = [1, 1]} : vector<2x64xf32> to vector<2x16xf32>
    %795 = math.tanh %794 : vector<2x16xf32>
    %cst_197 = arith.constant dense<0xFF800000> : vector<2xf32>
    %796 = vector.multi_reduction <maximumf>, %770, %cst_197 [1] : vector<2x3xf32> to vector<2xf32>
    %797 = vector.shape_cast %796 : vector<2xf32> to vector<2x1xf32>
    %798 = vector.broadcast %797 : vector<2x1xf32> to vector<2x3xf32>
    %799 = arith.subf %770, %798 : vector<2x3xf32>
    %800 = math.exp %799 : vector<2x3xf32>
    %cst_198 = arith.constant dense<0.000000e+00> : vector<2xf32>
    %801 = vector.multi_reduction <add>, %800, %cst_198 [1] : vector<2x3xf32> to vector<2xf32>
    %802 = vector.shape_cast %801 : vector<2xf32> to vector<2x1xf32>
    %803 = vector.broadcast %802 : vector<2x1xf32> to vector<2x3xf32>
    %804 = arith.divf %800, %803 : vector<2x3xf32>
    %c0_199 = arith.constant 0 : index
    %c0_200 = arith.constant 0 : index
    %c0_201 = arith.constant 0 : index
    %805 = vector.load %arg7[%c0_199, %c0_200, %c0_201] : memref<2x8x16xf32, #tpu.memory_space<vmem>>, vector<2x8x16xf32>
    %cst_202 = arith.constant 1.000000e-16 : f32
    %806 = vector.broadcast %cst_202 : f32 to vector<2x8x16xf32>
    %807 = arith.addf %805, %806 : vector<2x8x16xf32>
    %cst_203 = arith.constant 1.000000e-16 : f32
    %808 = vector.broadcast %cst_203 : f32 to vector<2x16xf32>
    %809 = arith.addf %748, %808 : vector<2x16xf32>
    %810 = vector.shape_cast %809 : vector<2x16xf32> to vector<2x1x16xf32>
    %811 = vector.broadcast %810 : vector<2x1x16xf32> to vector<2x8x16xf32>
    %812 = arith.mulf %807, %811 : vector<2x8x16xf32>
    %cst_204 = arith.constant dense<0.000000e+00> : vector<2x8xf32>
    %813 = vector.multi_reduction <add>, %812, %cst_204 [2] : vector<2x8x16xf32> to vector<2x8xf32>
    %814 = arith.mulf %807, %807 : vector<2x8x16xf32>
    %cst_205 = arith.constant dense<0.000000e+00> : vector<2x8xf32>
    %815 = vector.multi_reduction <add>, %814, %cst_205 [2] : vector<2x8x16xf32> to vector<2x8xf32>
    %816 = math.sqrt %815 : vector<2x8xf32>
    %817 = arith.mulf %810, %810 : vector<2x1x16xf32>
    %cst_206 = arith.constant dense<0.000000e+00> : vector<2x1xf32>
    %818 = vector.multi_reduction <add>, %817, %cst_206 [2] : vector<2x1x16xf32> to vector<2x1xf32>
    %819 = math.sqrt %818 : vector<2x1xf32>
    %cst_207 = arith.constant 9.99999993E-9 : f32
    %820 = vector.broadcast %cst_207 : f32 to vector<2x8xf32>
    %821 = arith.maximumf %816, %820 : vector<2x8xf32>
    %cst_208 = arith.constant 9.99999993E-9 : f32
    %822 = vector.broadcast %cst_208 : f32 to vector<2x1xf32>
    %823 = arith.maximumf %819, %822 : vector<2x1xf32>
    %824 = vector.broadcast %823 : vector<2x1xf32> to vector<2x8xf32>
    %825 = arith.mulf %821, %824 : vector<2x8xf32>
    %826 = arith.divf %813, %825 : vector<2x8xf32>
    %827 = vector.broadcast %763 : vector<2x1xf32> to vector<2x8xf32>
    %828 = arith.mulf %827, %826 : vector<2x8xf32>
    %cst_209 = arith.constant dense<0xFF800000> : vector<2xf32>
    %829 = vector.multi_reduction <maximumf>, %828, %cst_209 [1] : vector<2x8xf32> to vector<2xf32>
    %830 = vector.shape_cast %829 : vector<2xf32> to vector<2x1xf32>
    %831 = vector.broadcast %830 : vector<2x1xf32> to vector<2x8xf32>
    %832 = arith.subf %828, %831 : vector<2x8xf32>
    %833 = math.exp %832 : vector<2x8xf32>
    %cst_210 = arith.constant dense<0.000000e+00> : vector<2xf32>
    %834 = vector.multi_reduction <add>, %833, %cst_210 [1] : vector<2x8xf32> to vector<2xf32>
    %835 = vector.shape_cast %834 : vector<2xf32> to vector<2x1xf32>
    %836 = vector.broadcast %835 : vector<2x1xf32> to vector<2x8xf32>
    %837 = arith.divf %833, %836 : vector<2x8xf32>
    %838 = vector.broadcast %769 : vector<2x1xf32> to vector<2x8xf32>
    %839 = arith.mulf %838, %837 : vector<2x8xf32>
    %cst_211 = arith.constant 1.000000e+00 : f32
    %840 = vector.broadcast %cst_211 : f32 to vector<2x1xf32>
    %841 = arith.subf %840, %769 : vector<2x1xf32>
    %842 = vector.broadcast %841 : vector<2x1xf32> to vector<2x8xf32>
    %843 = arith.mulf %842, %721 : vector<2x8xf32>
    %844 = arith.addf %839, %843 : vector<2x8xf32>
    %cst_212 = arith.constant dense<0.000000e+00> : vector<2x16xf32>
    %845 = tpu.matmul %844, %4, %cst_212 {dimension_numbers = #tpu.dot_dimension_numbers<[1], [0], [0], [1], [0, 0, 1, 1], [], []>} : vector<2x8xf32>, vector<8x16xf32>, vector<2x16xf32> -> vector<2x16xf32>
    %846 = vector.extract_strided_slice %845 {offsets = [0, 0], sizes = [2, 8], strides = [1, 1]} : vector<2x16xf32> to vector<2x8xf32>
    %847 = vector.extract_strided_slice %804 {offsets = [0, 0], sizes = [2, 1], strides = [1, 1]} : vector<2x3xf32> to vector<2x1xf32>
    %848 = vector.broadcast %847 : vector<2x1xf32> to vector<2x8xf32>
    %849 = arith.mulf %846, %848 : vector<2x8xf32>
    %850 = vector.extract_strided_slice %804 {offsets = [0, 1], sizes = [2, 1], strides = [1, 1]} : vector<2x3xf32> to vector<2x1xf32>
    %851 = vector.broadcast %850 : vector<2x1xf32> to vector<2x8xf32>
    %852 = arith.mulf %844, %851 : vector<2x8xf32>
    %853 = arith.addf %849, %852 : vector<2x8xf32>
    %854 = vector.extract_strided_slice %845 {offsets = [0, 8], sizes = [2, 8], strides = [1, 1]} : vector<2x16xf32> to vector<2x8xf32>
    %855 = vector.extract_strided_slice %804 {offsets = [0, 2], sizes = [2, 1], strides = [1, 1]} : vector<2x3xf32> to vector<2x1xf32>
    %856 = vector.broadcast %855 : vector<2x1xf32> to vector<2x8xf32>
    %857 = arith.mulf %854, %856 : vector<2x8xf32>
    %858 = arith.addf %853, %857 : vector<2x8xf32>
    %cst_213 = arith.constant 0.000000e+00 : f32
    %859 = vector.broadcast %cst_213 : f32 to vector<2x8xf32>
    %860 = arith.maximumf %858, %859 : vector<2x8xf32>
    %861 = vector.broadcast %787 : vector<2x1xf32> to vector<2x8xf32>
    %862 = math.powf %860, %861 : vector<2x8xf32>
    %cst_214 = arith.constant dense<0.000000e+00> : vector<2xf32>
    %863 = vector.multi_reduction <add>, %862, %cst_214 [1] : vector<2x8xf32> to vector<2xf32>
    %864 = vector.shape_cast %863 : vector<2xf32> to vector<2x1xf32>
    %cst_215 = arith.constant 1.000000e-16 : f32
    %865 = vector.broadcast %cst_215 : f32 to vector<2x1xf32>
    %866 = arith.addf %864, %865 : vector<2x1xf32>
    %867 = vector.broadcast %866 : vector<2x1xf32> to vector<2x8xf32>
    %868 = arith.divf %862, %867 : vector<2x8xf32>
    %869 = arith.index_cast %c5_i32 : i32 to index
    %c0_216 = arith.constant 0 : index
    %c0_217 = arith.constant 0 : index
    %870 = vector.load %arg6[%869, %c0_216, %c0_217] : memref<8x2x8xf32, #tpu.memory_space<vmem>>, vector<1x2x8xf32>
    %871 = vector.shape_cast %870 : vector<1x2x8xf32> to vector<2x8xf32>
    %872 = vector.shape_cast %868 : vector<2x8xf32> to vector<1x2x8xf32>
    tpu.vector_store %arg6[%869, %c0_216, %c0_217], %872 {strides = array<i32>} : memref<8x2x8xf32, #tpu.memory_space<vmem>>, vector<1x2x8xf32>,
    %873 = vector.shape_cast %868 : vector<2x8xf32> to vector<2x8x1xf32>
    %874 = vector.shape_cast %793 : vector<2x16xf32> to vector<2x1x16xf32>
    %875 = vector.broadcast %873 : vector<2x8x1xf32> to vector<2x8x16xf32>
    %876 = vector.broadcast %874 : vector<2x1x16xf32> to vector<2x8x16xf32>
    %877 = arith.mulf %875, %876 : vector<2x8x16xf32>
    %878 = vector.shape_cast %868 : vector<2x8xf32> to vector<2x8x1xf32>
    %879 = vector.shape_cast %795 : vector<2x16xf32> to vector<2x1x16xf32>
    %880 = vector.broadcast %878 : vector<2x8x1xf32> to vector<2x8x16xf32>
    %881 = vector.broadcast %879 : vector<2x1x16xf32> to vector<2x8x16xf32>
    %882 = arith.mulf %880, %881 : vector<2x8x16xf32>
    %cst_218 = arith.constant 1.000000e+00 : f32
    %883 = vector.broadcast %cst_218 : f32 to vector<2x8x16xf32>
    %884 = arith.subf %883, %877 : vector<2x8x16xf32>
    %885 = arith.mulf %805, %884 : vector<2x8x16xf32>
    %886 = arith.addf %885, %882 : vector<2x8x16xf32>
    %c0_219 = arith.constant 0 : index
    %c0_220 = arith.constant 0 : index
    %c0_221 = arith.constant 0 : index
    %887 = vector.load %arg7[%c0_219, %c0_220, %c0_221] : memref<2x8x16xf32, #tpu.memory_space<vmem>>, vector<2x8x16xf32>
    tpu.vector_store %arg7[%c0_219, %c0_220, %c0_221], %886 {strides = array<i32>} : memref<2x8x16xf32, #tpu.memory_space<vmem>>, vector<2x8x16xf32>,
    %c6_i32 = arith.constant 6 : i32
    %888 = arith.index_cast %c6_i32 : i32 to index
    %c0_222 = arith.constant 0 : index
    %c0_223 = arith.constant 0 : index
    %889 = vector.load %arg0[%888, %c0_222, %c0_223] : memref<8x2x32xf32, #tpu.memory_space<vmem>>, vector<1x2x32xf32>
    %890 = vector.shape_cast %889 : vector<1x2x32xf32> to vector<2x32xf32>
    %cst_224 = arith.constant dense<0.000000e+00> : vector<2x64xf32>
    %891 = tpu.matmul %890, %2, %cst_224 {dimension_numbers = #tpu.dot_dimension_numbers<[1], [0], [0], [1], [0, 0, 1, 1], [], []>} : vector<2x32xf32>, vector<32x64xf32>, vector<2x64xf32> -> vector<2x64xf32>
    %892 = vector.broadcast %3 : vector<1x64xf32> to vector<2x64xf32>
    %893 = arith.addf %891, %892 : vector<2x64xf32>
    %894 = vector.extract_strided_slice %893 {offsets = [0, 0], sizes = [2, 16], strides = [1, 1]} : vector<2x64xf32> to vector<2x16xf32>
    %895 = math.tanh %894 : vector<2x16xf32>
    %896 = vector.extract_strided_slice %893 {offsets = [0, 16], sizes = [2, 1], strides = [1, 1]} : vector<2x64xf32> to vector<2x1xf32>
    %cst_225 = arith.constant 0.000000e+00 : f32
    %897 = vector.broadcast %cst_225 : f32 to vector<2x1xf32>
    %898 = arith.maximumf %896, %897 : vector<2x1xf32>
    %899 = vector.broadcast %cst_225 : f32 to vector<2x1xf32>
    %900 = arith.subf %896, %899 : vector<2x1xf32>
    %901 = arith.cmpf one, %900, %900 : vector<2x1xf32>
    %902 = vector.broadcast %cst_225 : f32 to vector<2x1xf32>
    %903 = arith.addf %896, %902 : vector<2x1xf32>
    %904 = math.absf %900 : vector<2x1xf32>
    %cst_226 = arith.constant 0.000000e+00 : f32
    %905 = vector.broadcast %cst_226 : f32 to vector<2x1xf32>
    %906 = arith.subf %905, %904 : vector<2x1xf32>
    %907 = math.exp %906 : vector<2x1xf32>
    %908 = math.log1p %907 : vector<2x1xf32>
    %909 = arith.addf %898, %908 : vector<2x1xf32>
    %910 = arith.select %901, %903, %909 : vector<2x1xi1>, vector<2x1xf32>
    %911 = vector.extract_strided_slice %893 {offsets = [0, 17], sizes = [2, 1], strides = [1, 1]} : vector<2x64xf32> to vector<2x1xf32>
    %912 = arith.negf %911 : vector<2x1xf32>
    %913 = math.exp %912 : vector<2x1xf32>
    %cst_227 = arith.constant 1.000000e+00 : f32
    %914 = vector.broadcast %cst_227 : f32 to vector<2x1xf32>
    %915 = arith.addf %914, %913 : vector<2x1xf32>
    %916 = arith.divf %914, %915 : vector<2x1xf32>
    %917 = vector.extract_strided_slice %893 {offsets = [0, 18], sizes = [2, 3], strides = [1, 1]} : vector<2x64xf32> to vector<2x3xf32>
    %918 = vector.extract_strided_slice %893 {offsets = [0, 21], sizes = [2, 1], strides = [1, 1]} : vector<2x64xf32> to vector<2x1xf32>
    %cst_228 = arith.constant 0.000000e+00 : f32
    %919 = vector.broadcast %cst_228 : f32 to vector<2x1xf32>
    %920 = arith.maximumf %918, %919 : vector<2x1xf32>
    %921 = vector.broadcast %cst_228 : f32 to vector<2x1xf32>
    %922 = arith.subf %918, %921 : vector<2x1xf32>
    %923 = arith.cmpf one, %922, %922 : vector<2x1xf32>
    %924 = vector.broadcast %cst_228 : f32 to vector<2x1xf32>
    %925 = arith.addf %918, %924 : vector<2x1xf32>
    %926 = math.absf %922 : vector<2x1xf32>
    %cst_229 = arith.constant 0.000000e+00 : f32
    %927 = vector.broadcast %cst_229 : f32 to vector<2x1xf32>
    %928 = arith.subf %927, %926 : vector<2x1xf32>
    %929 = math.exp %928 : vector<2x1xf32>
    %930 = math.log1p %929 : vector<2x1xf32>
    %931 = arith.addf %920, %930 : vector<2x1xf32>
    %932 = arith.select %923, %925, %931 : vector<2x1xi1>, vector<2x1xf32>
    %cst_230 = arith.constant 1.000000e+00 : f32
    %933 = vector.broadcast %cst_230 : f32 to vector<2x1xf32>
    %934 = arith.addf %933, %932 : vector<2x1xf32>
    %935 = vector.extract_strided_slice %893 {offsets = [0, 32], sizes = [2, 16], strides = [1, 1]} : vector<2x64xf32> to vector<2x16xf32>
    %936 = arith.negf %935 : vector<2x16xf32>
    %937 = math.exp %936 : vector<2x16xf32>
    %cst_231 = arith.constant 1.000000e+00 : f32
    %938 = vector.broadcast %cst_231 : f32 to vector<2x16xf32>
    %939 = arith.addf %938, %937 : vector<2x16xf32>
    %940 = arith.divf %938, %939 : vector<2x16xf32>
    %941 = vector.extract_strided_slice %893 {offsets = [0, 48], sizes = [2, 16], strides = [1, 1]} : vector<2x64xf32> to vector<2x16xf32>
    %942 = math.tanh %941 : vector<2x16xf32>
    %cst_232 = arith.constant dense<0xFF800000> : vector<2xf32>
    %943 = vector.multi_reduction <maximumf>, %917, %cst_232 [1] : vector<2x3xf32> to vector<2xf32>
    %944 = vector.shape_cast %943 : vector<2xf32> to vector<2x1xf32>
    %945 = vector.broadcast %944 : vector<2x1xf32> to vector<2x3xf32>
    %946 = arith.subf %917, %945 : vector<2x3xf32>
    %947 = math.exp %946 : vector<2x3xf32>
    %cst_233 = arith.constant dense<0.000000e+00> : vector<2xf32>
    %948 = vector.multi_reduction <add>, %947, %cst_233 [1] : vector<2x3xf32> to vector<2xf32>
    %949 = vector.shape_cast %948 : vector<2xf32> to vector<2x1xf32>
    %950 = vector.broadcast %949 : vector<2x1xf32> to vector<2x3xf32>
    %951 = arith.divf %947, %950 : vector<2x3xf32>
    %c0_234 = arith.constant 0 : index
    %c0_235 = arith.constant 0 : index
    %c0_236 = arith.constant 0 : index
    %952 = vector.load %arg7[%c0_234, %c0_235, %c0_236] : memref<2x8x16xf32, #tpu.memory_space<vmem>>, vector<2x8x16xf32>
    %cst_237 = arith.constant 1.000000e-16 : f32
    %953 = vector.broadcast %cst_237 : f32 to vector<2x8x16xf32>
    %954 = arith.addf %952, %953 : vector<2x8x16xf32>
    %cst_238 = arith.constant 1.000000e-16 : f32
    %955 = vector.broadcast %cst_238 : f32 to vector<2x16xf32>
    %956 = arith.addf %895, %955 : vector<2x16xf32>
    %957 = vector.shape_cast %956 : vector<2x16xf32> to vector<2x1x16xf32>
    %958 = vector.broadcast %957 : vector<2x1x16xf32> to vector<2x8x16xf32>
    %959 = arith.mulf %954, %958 : vector<2x8x16xf32>
    %cst_239 = arith.constant dense<0.000000e+00> : vector<2x8xf32>
    %960 = vector.multi_reduction <add>, %959, %cst_239 [2] : vector<2x8x16xf32> to vector<2x8xf32>
    %961 = arith.mulf %954, %954 : vector<2x8x16xf32>
    %cst_240 = arith.constant dense<0.000000e+00> : vector<2x8xf32>
    %962 = vector.multi_reduction <add>, %961, %cst_240 [2] : vector<2x8x16xf32> to vector<2x8xf32>
    %963 = math.sqrt %962 : vector<2x8xf32>
    %964 = arith.mulf %957, %957 : vector<2x1x16xf32>
    %cst_241 = arith.constant dense<0.000000e+00> : vector<2x1xf32>
    %965 = vector.multi_reduction <add>, %964, %cst_241 [2] : vector<2x1x16xf32> to vector<2x1xf32>
    %966 = math.sqrt %965 : vector<2x1xf32>
    %cst_242 = arith.constant 9.99999993E-9 : f32
    %967 = vector.broadcast %cst_242 : f32 to vector<2x8xf32>
    %968 = arith.maximumf %963, %967 : vector<2x8xf32>
    %cst_243 = arith.constant 9.99999993E-9 : f32
    %969 = vector.broadcast %cst_243 : f32 to vector<2x1xf32>
    %970 = arith.maximumf %966, %969 : vector<2x1xf32>
    %971 = vector.broadcast %970 : vector<2x1xf32> to vector<2x8xf32>
    %972 = arith.mulf %968, %971 : vector<2x8xf32>
    %973 = arith.divf %960, %972 : vector<2x8xf32>
    %974 = vector.broadcast %910 : vector<2x1xf32> to vector<2x8xf32>
    %975 = arith.mulf %974, %973 : vector<2x8xf32>
    %cst_244 = arith.constant dense<0xFF800000> : vector<2xf32>
    %976 = vector.multi_reduction <maximumf>, %975, %cst_244 [1] : vector<2x8xf32> to vector<2xf32>
    %977 = vector.shape_cast %976 : vector<2xf32> to vector<2x1xf32>
    %978 = vector.broadcast %977 : vector<2x1xf32> to vector<2x8xf32>
    %979 = arith.subf %975, %978 : vector<2x8xf32>
    %980 = math.exp %979 : vector<2x8xf32>
    %cst_245 = arith.constant dense<0.000000e+00> : vector<2xf32>
    %981 = vector.multi_reduction <add>, %980, %cst_245 [1] : vector<2x8xf32> to vector<2xf32>
    %982 = vector.shape_cast %981 : vector<2xf32> to vector<2x1xf32>
    %983 = vector.broadcast %982 : vector<2x1xf32> to vector<2x8xf32>
    %984 = arith.divf %980, %983 : vector<2x8xf32>
    %985 = vector.broadcast %916 : vector<2x1xf32> to vector<2x8xf32>
    %986 = arith.mulf %985, %984 : vector<2x8xf32>
    %cst_246 = arith.constant 1.000000e+00 : f32
    %987 = vector.broadcast %cst_246 : f32 to vector<2x1xf32>
    %988 = arith.subf %987, %916 : vector<2x1xf32>
    %989 = vector.broadcast %988 : vector<2x1xf32> to vector<2x8xf32>
    %990 = arith.mulf %989, %868 : vector<2x8xf32>
    %991 = arith.addf %986, %990 : vector<2x8xf32>
    %cst_247 = arith.constant dense<0.000000e+00> : vector<2x16xf32>
    %992 = tpu.matmul %991, %4, %cst_247 {dimension_numbers = #tpu.dot_dimension_numbers<[1], [0], [0], [1], [0, 0, 1, 1], [], []>} : vector<2x8xf32>, vector<8x16xf32>, vector<2x16xf32> -> vector<2x16xf32>
    %993 = vector.extract_strided_slice %992 {offsets = [0, 0], sizes = [2, 8], strides = [1, 1]} : vector<2x16xf32> to vector<2x8xf32>
    %994 = vector.extract_strided_slice %951 {offsets = [0, 0], sizes = [2, 1], strides = [1, 1]} : vector<2x3xf32> to vector<2x1xf32>
    %995 = vector.broadcast %994 : vector<2x1xf32> to vector<2x8xf32>
    %996 = arith.mulf %993, %995 : vector<2x8xf32>
    %997 = vector.extract_strided_slice %951 {offsets = [0, 1], sizes = [2, 1], strides = [1, 1]} : vector<2x3xf32> to vector<2x1xf32>
    %998 = vector.broadcast %997 : vector<2x1xf32> to vector<2x8xf32>
    %999 = arith.mulf %991, %998 : vector<2x8xf32>
    %1000 = arith.addf %996, %999 : vector<2x8xf32>
    %1001 = vector.extract_strided_slice %992 {offsets = [0, 8], sizes = [2, 8], strides = [1, 1]} : vector<2x16xf32> to vector<2x8xf32>
    %1002 = vector.extract_strided_slice %951 {offsets = [0, 2], sizes = [2, 1], strides = [1, 1]} : vector<2x3xf32> to vector<2x1xf32>
    %1003 = vector.broadcast %1002 : vector<2x1xf32> to vector<2x8xf32>
    %1004 = arith.mulf %1001, %1003 : vector<2x8xf32>
    %1005 = arith.addf %1000, %1004 : vector<2x8xf32>
    %cst_248 = arith.constant 0.000000e+00 : f32
    %1006 = vector.broadcast %cst_248 : f32 to vector<2x8xf32>
    %1007 = arith.maximumf %1005, %1006 : vector<2x8xf32>
    %1008 = vector.broadcast %934 : vector<2x1xf32> to vector<2x8xf32>
    %1009 = math.powf %1007, %1008 : vector<2x8xf32>
    %cst_249 = arith.constant dense<0.000000e+00> : vector<2xf32>
    %1010 = vector.multi_reduction <add>, %1009, %cst_249 [1] : vector<2x8xf32> to vector<2xf32>
    %1011 = vector.shape_cast %1010 : vector<2xf32> to vector<2x1xf32>
    %cst_250 = arith.constant 1.000000e-16 : f32
    %1012 = vector.broadcast %cst_250 : f32 to vector<2x1xf32>
    %1013 = arith.addf %1011, %1012 : vector<2x1xf32>
    %1014 = vector.broadcast %1013 : vector<2x1xf32> to vector<2x8xf32>
    %1015 = arith.divf %1009, %1014 : vector<2x8xf32>
    %1016 = arith.index_cast %c6_i32 : i32 to index
    %c0_251 = arith.constant 0 : index
    %c0_252 = arith.constant 0 : index
    %1017 = vector.load %arg6[%1016, %c0_251, %c0_252] : memref<8x2x8xf32, #tpu.memory_space<vmem>>, vector<1x2x8xf32>
    %1018 = vector.shape_cast %1017 : vector<1x2x8xf32> to vector<2x8xf32>
    %1019 = vector.shape_cast %1015 : vector<2x8xf32> to vector<1x2x8xf32>
    tpu.vector_store %arg6[%1016, %c0_251, %c0_252], %1019 {strides = array<i32>} : memref<8x2x8xf32, #tpu.memory_space<vmem>>, vector<1x2x8xf32>,
    %1020 = vector.shape_cast %1015 : vector<2x8xf32> to vector<2x8x1xf32>
    %1021 = vector.shape_cast %940 : vector<2x16xf32> to vector<2x1x16xf32>
    %1022 = vector.broadcast %1020 : vector<2x8x1xf32> to vector<2x8x16xf32>
    %1023 = vector.broadcast %1021 : vector<2x1x16xf32> to vector<2x8x16xf32>
    %1024 = arith.mulf %1022, %1023 : vector<2x8x16xf32>
    %1025 = vector.shape_cast %1015 : vector<2x8xf32> to vector<2x8x1xf32>
    %1026 = vector.shape_cast %942 : vector<2x16xf32> to vector<2x1x16xf32>
    %1027 = vector.broadcast %1025 : vector<2x8x1xf32> to vector<2x8x16xf32>
    %1028 = vector.broadcast %1026 : vector<2x1x16xf32> to vector<2x8x16xf32>
    %1029 = arith.mulf %1027, %1028 : vector<2x8x16xf32>
    %cst_253 = arith.constant 1.000000e+00 : f32
    %1030 = vector.broadcast %cst_253 : f32 to vector<2x8x16xf32>
    %1031 = arith.subf %1030, %1024 : vector<2x8x16xf32>
    %1032 = arith.mulf %952, %1031 : vector<2x8x16xf32>
    %1033 = arith.addf %1032, %1029 : vector<2x8x16xf32>
    %c0_254 = arith.constant 0 : index
    %c0_255 = arith.constant 0 : index
    %c0_256 = arith.constant 0 : index
    %1034 = vector.load %arg7[%c0_254, %c0_255, %c0_256] : memref<2x8x16xf32, #tpu.memory_space<vmem>>, vector<2x8x16xf32>
    tpu.vector_store %arg7[%c0_254, %c0_255, %c0_256], %1033 {strides = array<i32>} : memref<2x8x16xf32, #tpu.memory_space<vmem>>, vector<2x8x16xf32>,
    %c7_i32 = arith.constant 7 : i32
    %1035 = arith.index_cast %c7_i32 : i32 to index
    %c0_257 = arith.constant 0 : index
    %c0_258 = arith.constant 0 : index
    %1036 = vector.load %arg0[%1035, %c0_257, %c0_258] : memref<8x2x32xf32, #tpu.memory_space<vmem>>, vector<1x2x32xf32>
    %1037 = vector.shape_cast %1036 : vector<1x2x32xf32> to vector<2x32xf32>
    %cst_259 = arith.constant dense<0.000000e+00> : vector<2x64xf32>
    %1038 = tpu.matmul %1037, %2, %cst_259 {dimension_numbers = #tpu.dot_dimension_numbers<[1], [0], [0], [1], [0, 0, 1, 1], [], []>} : vector<2x32xf32>, vector<32x64xf32>, vector<2x64xf32> -> vector<2x64xf32>
    %1039 = vector.broadcast %3 : vector<1x64xf32> to vector<2x64xf32>
    %1040 = arith.addf %1038, %1039 : vector<2x64xf32>
    %1041 = vector.extract_strided_slice %1040 {offsets = [0, 0], sizes = [2, 16], strides = [1, 1]} : vector<2x64xf32> to vector<2x16xf32>
    %1042 = math.tanh %1041 : vector<2x16xf32>
    %1043 = vector.extract_strided_slice %1040 {offsets = [0, 16], sizes = [2, 1], strides = [1, 1]} : vector<2x64xf32> to vector<2x1xf32>
    %cst_260 = arith.constant 0.000000e+00 : f32
    %1044 = vector.broadcast %cst_260 : f32 to vector<2x1xf32>
    %1045 = arith.maximumf %1043, %1044 : vector<2x1xf32>
    %1046 = vector.broadcast %cst_260 : f32 to vector<2x1xf32>
    %1047 = arith.subf %1043, %1046 : vector<2x1xf32>
    %1048 = arith.cmpf one, %1047, %1047 : vector<2x1xf32>
    %1049 = vector.broadcast %cst_260 : f32 to vector<2x1xf32>
    %1050 = arith.addf %1043, %1049 : vector<2x1xf32>
    %1051 = math.absf %1047 : vector<2x1xf32>
    %cst_261 = arith.constant 0.000000e+00 : f32
    %1052 = vector.broadcast %cst_261 : f32 to vector<2x1xf32>
    %1053 = arith.subf %1052, %1051 : vector<2x1xf32>
    %1054 = math.exp %1053 : vector<2x1xf32>
    %1055 = math.log1p %1054 : vector<2x1xf32>
    %1056 = arith.addf %1045, %1055 : vector<2x1xf32>
    %1057 = arith.select %1048, %1050, %1056 : vector<2x1xi1>, vector<2x1xf32>
    %1058 = vector.extract_strided_slice %1040 {offsets = [0, 17], sizes = [2, 1], strides = [1, 1]} : vector<2x64xf32> to vector<2x1xf32>
    %1059 = arith.negf %1058 : vector<2x1xf32>
    %1060 = math.exp %1059 : vector<2x1xf32>
    %cst_262 = arith.constant 1.000000e+00 : f32
    %1061 = vector.broadcast %cst_262 : f32 to vector<2x1xf32>
    %1062 = arith.addf %1061, %1060 : vector<2x1xf32>
    %1063 = arith.divf %1061, %1062 : vector<2x1xf32>
    %1064 = vector.extract_strided_slice %1040 {offsets = [0, 18], sizes = [2, 3], strides = [1, 1]} : vector<2x64xf32> to vector<2x3xf32>
    %1065 = vector.extract_strided_slice %1040 {offsets = [0, 21], sizes = [2, 1], strides = [1, 1]} : vector<2x64xf32> to vector<2x1xf32>
    %cst_263 = arith.constant 0.000000e+00 : f32
    %1066 = vector.broadcast %cst_263 : f32 to vector<2x1xf32>
    %1067 = arith.maximumf %1065, %1066 : vector<2x1xf32>
    %1068 = vector.broadcast %cst_263 : f32 to vector<2x1xf32>
    %1069 = arith.subf %1065, %1068 : vector<2x1xf32>
    %1070 = arith.cmpf one, %1069, %1069 : vector<2x1xf32>
    %1071 = vector.broadcast %cst_263 : f32 to vector<2x1xf32>
    %1072 = arith.addf %1065, %1071 : vector<2x1xf32>
    %1073 = math.absf %1069 : vector<2x1xf32>
    %cst_264 = arith.constant 0.000000e+00 : f32
    %1074 = vector.broadcast %cst_264 : f32 to vector<2x1xf32>
    %1075 = arith.subf %1074, %1073 : vector<2x1xf32>
    %1076 = math.exp %1075 : vector<2x1xf32>
    %1077 = math.log1p %1076 : vector<2x1xf32>
    %1078 = arith.addf %1067, %1077 : vector<2x1xf32>
    %1079 = arith.select %1070, %1072, %1078 : vector<2x1xi1>, vector<2x1xf32>
    %cst_265 = arith.constant 1.000000e+00 : f32
    %1080 = vector.broadcast %cst_265 : f32 to vector<2x1xf32>
    %1081 = arith.addf %1080, %1079 : vector<2x1xf32>
    %1082 = vector.extract_strided_slice %1040 {offsets = [0, 32], sizes = [2, 16], strides = [1, 1]} : vector<2x64xf32> to vector<2x16xf32>
    %1083 = arith.negf %1082 : vector<2x16xf32>
    %1084 = math.exp %1083 : vector<2x16xf32>
    %cst_266 = arith.constant 1.000000e+00 : f32
    %1085 = vector.broadcast %cst_266 : f32 to vector<2x16xf32>
    %1086 = arith.addf %1085, %1084 : vector<2x16xf32>
    %1087 = arith.divf %1085, %1086 : vector<2x16xf32>
    %1088 = vector.extract_strided_slice %1040 {offsets = [0, 48], sizes = [2, 16], strides = [1, 1]} : vector<2x64xf32> to vector<2x16xf32>
    %1089 = math.tanh %1088 : vector<2x16xf32>
    %cst_267 = arith.constant dense<0xFF800000> : vector<2xf32>
    %1090 = vector.multi_reduction <maximumf>, %1064, %cst_267 [1] : vector<2x3xf32> to vector<2xf32>
    %1091 = vector.shape_cast %1090 : vector<2xf32> to vector<2x1xf32>
    %1092 = vector.broadcast %1091 : vector<2x1xf32> to vector<2x3xf32>
    %1093 = arith.subf %1064, %1092 : vector<2x3xf32>
    %1094 = math.exp %1093 : vector<2x3xf32>
    %cst_268 = arith.constant dense<0.000000e+00> : vector<2xf32>
    %1095 = vector.multi_reduction <add>, %1094, %cst_268 [1] : vector<2x3xf32> to vector<2xf32>
    %1096 = vector.shape_cast %1095 : vector<2xf32> to vector<2x1xf32>
    %1097 = vector.broadcast %1096 : vector<2x1xf32> to vector<2x3xf32>
    %1098 = arith.divf %1094, %1097 : vector<2x3xf32>
    %c0_269 = arith.constant 0 : index
    %c0_270 = arith.constant 0 : index
    %c0_271 = arith.constant 0 : index
    %1099 = vector.load %arg7[%c0_269, %c0_270, %c0_271] : memref<2x8x16xf32, #tpu.memory_space<vmem>>, vector<2x8x16xf32>
    %cst_272 = arith.constant 1.000000e-16 : f32
    %1100 = vector.broadcast %cst_272 : f32 to vector<2x8x16xf32>
    %1101 = arith.addf %1099, %1100 : vector<2x8x16xf32>
    %cst_273 = arith.constant 1.000000e-16 : f32
    %1102 = vector.broadcast %cst_273 : f32 to vector<2x16xf32>
    %1103 = arith.addf %1042, %1102 : vector<2x16xf32>
    %1104 = vector.shape_cast %1103 : vector<2x16xf32> to vector<2x1x16xf32>
    %1105 = vector.broadcast %1104 : vector<2x1x16xf32> to vector<2x8x16xf32>
    %1106 = arith.mulf %1101, %1105 : vector<2x8x16xf32>
    %cst_274 = arith.constant dense<0.000000e+00> : vector<2x8xf32>
    %1107 = vector.multi_reduction <add>, %1106, %cst_274 [2] : vector<2x8x16xf32> to vector<2x8xf32>
    %1108 = arith.mulf %1101, %1101 : vector<2x8x16xf32>
    %cst_275 = arith.constant dense<0.000000e+00> : vector<2x8xf32>
    %1109 = vector.multi_reduction <add>, %1108, %cst_275 [2] : vector<2x8x16xf32> to vector<2x8xf32>
    %1110 = math.sqrt %1109 : vector<2x8xf32>
    %1111 = arith.mulf %1104, %1104 : vector<2x1x16xf32>
    %cst_276 = arith.constant dense<0.000000e+00> : vector<2x1xf32>
    %1112 = vector.multi_reduction <add>, %1111, %cst_276 [2] : vector<2x1x16xf32> to vector<2x1xf32>
    %1113 = math.sqrt %1112 : vector<2x1xf32>
    %cst_277 = arith.constant 9.99999993E-9 : f32
    %1114 = vector.broadcast %cst_277 : f32 to vector<2x8xf32>
    %1115 = arith.maximumf %1110, %1114 : vector<2x8xf32>
    %cst_278 = arith.constant 9.99999993E-9 : f32
    %1116 = vector.broadcast %cst_278 : f32 to vector<2x1xf32>
    %1117 = arith.maximumf %1113, %1116 : vector<2x1xf32>
    %1118 = vector.broadcast %1117 : vector<2x1xf32> to vector<2x8xf32>
    %1119 = arith.mulf %1115, %1118 : vector<2x8xf32>
    %1120 = arith.divf %1107, %1119 : vector<2x8xf32>
    %1121 = vector.broadcast %1057 : vector<2x1xf32> to vector<2x8xf32>
    %1122 = arith.mulf %1121, %1120 : vector<2x8xf32>
    %cst_279 = arith.constant dense<0xFF800000> : vector<2xf32>
    %1123 = vector.multi_reduction <maximumf>, %1122, %cst_279 [1] : vector<2x8xf32> to vector<2xf32>
    %1124 = vector.shape_cast %1123 : vector<2xf32> to vector<2x1xf32>
    %1125 = vector.broadcast %1124 : vector<2x1xf32> to vector<2x8xf32>
    %1126 = arith.subf %1122, %1125 : vector<2x8xf32>
    %1127 = math.exp %1126 : vector<2x8xf32>
    %cst_280 = arith.constant dense<0.000000e+00> : vector<2xf32>
    %1128 = vector.multi_reduction <add>, %1127, %cst_280 [1] : vector<2x8xf32> to vector<2xf32>
    %1129 = vector.shape_cast %1128 : vector<2xf32> to vector<2x1xf32>
    %1130 = vector.broadcast %1129 : vector<2x1xf32> to vector<2x8xf32>
    %1131 = arith.divf %1127, %1130 : vector<2x8xf32>
    %1132 = vector.broadcast %1063 : vector<2x1xf32> to vector<2x8xf32>
    %1133 = arith.mulf %1132, %1131 : vector<2x8xf32>
    %cst_281 = arith.constant 1.000000e+00 : f32
    %1134 = vector.broadcast %cst_281 : f32 to vector<2x1xf32>
    %1135 = arith.subf %1134, %1063 : vector<2x1xf32>
    %1136 = vector.broadcast %1135 : vector<2x1xf32> to vector<2x8xf32>
    %1137 = arith.mulf %1136, %1015 : vector<2x8xf32>
    %1138 = arith.addf %1133, %1137 : vector<2x8xf32>
    %cst_282 = arith.constant dense<0.000000e+00> : vector<2x16xf32>
    %1139 = tpu.matmul %1138, %4, %cst_282 {dimension_numbers = #tpu.dot_dimension_numbers<[1], [0], [0], [1], [0, 0, 1, 1], [], []>} : vector<2x8xf32>, vector<8x16xf32>, vector<2x16xf32> -> vector<2x16xf32>
    %1140 = vector.extract_strided_slice %1139 {offsets = [0, 0], sizes = [2, 8], strides = [1, 1]} : vector<2x16xf32> to vector<2x8xf32>
    %1141 = vector.extract_strided_slice %1098 {offsets = [0, 0], sizes = [2, 1], strides = [1, 1]} : vector<2x3xf32> to vector<2x1xf32>
    %1142 = vector.broadcast %1141 : vector<2x1xf32> to vector<2x8xf32>
    %1143 = arith.mulf %1140, %1142 : vector<2x8xf32>
    %1144 = vector.extract_strided_slice %1098 {offsets = [0, 1], sizes = [2, 1], strides = [1, 1]} : vector<2x3xf32> to vector<2x1xf32>
    %1145 = vector.broadcast %1144 : vector<2x1xf32> to vector<2x8xf32>
    %1146 = arith.mulf %1138, %1145 : vector<2x8xf32>
    %1147 = arith.addf %1143, %1146 : vector<2x8xf32>
    %1148 = vector.extract_strided_slice %1139 {offsets = [0, 8], sizes = [2, 8], strides = [1, 1]} : vector<2x16xf32> to vector<2x8xf32>
    %1149 = vector.extract_strided_slice %1098 {offsets = [0, 2], sizes = [2, 1], strides = [1, 1]} : vector<2x3xf32> to vector<2x1xf32>
    %1150 = vector.broadcast %1149 : vector<2x1xf32> to vector<2x8xf32>
    %1151 = arith.mulf %1148, %1150 : vector<2x8xf32>
    %1152 = arith.addf %1147, %1151 : vector<2x8xf32>
    %cst_283 = arith.constant 0.000000e+00 : f32
    %1153 = vector.broadcast %cst_283 : f32 to vector<2x8xf32>
    %1154 = arith.maximumf %1152, %1153 : vector<2x8xf32>
    %1155 = vector.broadcast %1081 : vector<2x1xf32> to vector<2x8xf32>
    %1156 = math.powf %1154, %1155 : vector<2x8xf32>
    %cst_284 = arith.constant dense<0.000000e+00> : vector<2xf32>
    %1157 = vector.multi_reduction <add>, %1156, %cst_284 [1] : vector<2x8xf32> to vector<2xf32>
    %1158 = vector.shape_cast %1157 : vector<2xf32> to vector<2x1xf32>
    %cst_285 = arith.constant 1.000000e-16 : f32
    %1159 = vector.broadcast %cst_285 : f32 to vector<2x1xf32>
    %1160 = arith.addf %1158, %1159 : vector<2x1xf32>
    %1161 = vector.broadcast %1160 : vector<2x1xf32> to vector<2x8xf32>
    %1162 = arith.divf %1156, %1161 : vector<2x8xf32>
    %1163 = arith.index_cast %c7_i32 : i32 to index
    %c0_286 = arith.constant 0 : index
    %c0_287 = arith.constant 0 : index
    %1164 = vector.load %arg6[%1163, %c0_286, %c0_287] : memref<8x2x8xf32, #tpu.memory_space<vmem>>, vector<1x2x8xf32>
    %1165 = vector.shape_cast %1164 : vector<1x2x8xf32> to vector<2x8xf32>
    %1166 = vector.shape_cast %1162 : vector<2x8xf32> to vector<1x2x8xf32>
    tpu.vector_store %arg6[%1163, %c0_286, %c0_287], %1166 {strides = array<i32>} : memref<8x2x8xf32, #tpu.memory_space<vmem>>, vector<1x2x8xf32>,
    %1167 = vector.shape_cast %1162 : vector<2x8xf32> to vector<2x8x1xf32>
    %1168 = vector.shape_cast %1087 : vector<2x16xf32> to vector<2x1x16xf32>
    %1169 = vector.broadcast %1167 : vector<2x8x1xf32> to vector<2x8x16xf32>
    %1170 = vector.broadcast %1168 : vector<2x1x16xf32> to vector<2x8x16xf32>
    %1171 = arith.mulf %1169, %1170 : vector<2x8x16xf32>
    %1172 = vector.shape_cast %1162 : vector<2x8xf32> to vector<2x8x1xf32>
    %1173 = vector.shape_cast %1089 : vector<2x16xf32> to vector<2x1x16xf32>
    %1174 = vector.broadcast %1172 : vector<2x8x1xf32> to vector<2x8x16xf32>
    %1175 = vector.broadcast %1173 : vector<2x1x16xf32> to vector<2x8x16xf32>
    %1176 = arith.mulf %1174, %1175 : vector<2x8x16xf32>
    %cst_288 = arith.constant 1.000000e+00 : f32
    %1177 = vector.broadcast %cst_288 : f32 to vector<2x8x16xf32>
    %1178 = arith.subf %1177, %1171 : vector<2x8x16xf32>
    %1179 = arith.mulf %1099, %1178 : vector<2x8x16xf32>
    %1180 = arith.addf %1179, %1176 : vector<2x8x16xf32>
    %c0_289 = arith.constant 0 : index
    %c0_290 = arith.constant 0 : index
    %c0_291 = arith.constant 0 : index
    %1181 = vector.load %arg7[%c0_289, %c0_290, %c0_291] : memref<2x8x16xf32, #tpu.memory_space<vmem>>, vector<2x8x16xf32>
    tpu.vector_store %arg7[%c0_289, %c0_290, %c0_291], %1180 {strides = array<i32>} : memref<2x8x16xf32, #tpu.memory_space<vmem>>, vector<2x8x16xf32>,
    %c8_i32 = arith.constant 8 : i32
    return
  }
}

</mosaic_0001>

<llo_original>
// kernel: tpu_custom_call.1
$region0: #{tpu_custom_call.1}
  #allocation0 [shape = 'u32[]', space=smem, size = 0x4, offset = 0x4, fixed_abs, tag = 'smem constant byte address 0x4 - core index']
  #allocation1 [shape = 'u32[144,128]{1,0:T(1,128)}', space=vmem, size = 0x12000, scoped, tag = 'internal scratch']
  %s0 = inlined_call_operand.vmem [shape: f32[8,2,32], index: 0, kind: input, shape index: {}]
  %s1 = inlined_call_operand.vmem [shape: f32[32,64], index: 1, kind: input, shape index: {}]
  %s2 = inlined_call_operand.hbm [shape: f32[1,64], index: 2, kind: input, shape index: {}]
  %s3 = inlined_call_operand.hbm [shape: f32[8,16], index: 3, kind: input, shape index: {}]
  %s4 = inlined_call_operand.vmem [shape: f32[2,8], index: 4, kind: input, shape index: {}]
  %s5 = inlined_call_operand.hbm [shape: f32[2,8,16], index: 5, kind: input, shape index: {}, may-alias: {5,7}]
  %s6 = inlined_call_operand.hbm [shape: f32[8,2,8], index: 6, kind: output, shape index: {0}]
  %s7 = inlined_call_operand.hbm [shape: f32[2,8,16], index: 7, kind: output, shape index: {1}, may-alias: {5,7}]
  %8 = xla_tuple %s6, %s7
  %s9 = sld [smem:[#allocation0]]
  $region54: #{tpu_custom_call.1} parent=0
    _
  %s11 = ssub.s32 1, %s9
  %s12 = scalar_select 0, %s11, %s9
  $region1: #{tpu_custom_call.1} parent=0
    #allocation2 [shape = 'u8[512]{0}', space=vmem, size = 0x400, scoped, tag = 'input window, operand 2, single buffered']
    #allocation3 [shape = 's32[1]{0}', space=sflag, size = 0x4, scoped, tag = 'scoped memory for tpu_custom_call.1']
    #allocation4 [shape = 's32[1]{0}', space=sflag, size = 0x4, scoped, tag = 'scoped memory for tpu_custom_call.1']
    #allocation5 [shape = 'u8[4096]{0}', space=vmem, size = 0x1000, scoped, tag = 'input window, operand 3, single buffered']
    #allocation6 [shape = 's32[1]{0}', space=sflag, size = 0x4, scoped, tag = 'scoped memory for tpu_custom_call.1']
    #allocation7 [shape = 'u8[8192]{0}', space=vmem, size = 0x2000, scoped, tag = 'input window, operand 5, single buffered']
    #allocation8 [shape = 'u8[8192]{0}', space=vmem, size = 0x2000, scoped, tag = 'output window, operand 0, single buffered']
    #allocation9 [shape = 'u8[8192]{0}', space=vmem, size = 0x2000, scoped, tag = 'output window, operand 1, single buffered']
    #allocation10 [shape = 's32[1]{0}', space=sflag, size = 0x4, scoped, tag = 'scoped memory for tpu_custom_call.1']
    %13 = vsyncpa [#allocation3], 0
    %14 = vsyncpa [#allocation6], 0
    %15 = vsyncpa [#allocation4], 0
    %16 = vsyncpa [#allocation10], 0
    // Predicated region
    $region2: #{tpu_custom_call.1} parent=1 // pred_check
      _
    $region3: #{tpu_custom_call.1} parent=1 // pred_check_branch
      %18 = sbr.rel (0) target = $region5
    $region4: #{tpu_custom_call.1} parent=1 // pred_region
      _
    $region5: #{tpu_custom_call.1} parent=1 // pred_fallthru
      _
    // Predicated region
    $region6: #{tpu_custom_call.1} parent=1 // pred_check
      _
    $region7: #{tpu_custom_call.1} parent=1 // pred_check_branch
      %20 = sbr.rel (0) target = $region9
    $region8: #{tpu_custom_call.1} parent=1 // pred_region
      _
    $region9: #{tpu_custom_call.1} parent=1 // pred_fallthru
      _
    // Predicated region
    $region10: #{tpu_custom_call.1} parent=1 // pred_check
      _
    $region11: #{tpu_custom_call.1} parent=1 // pred_check_branch
      %22 = sbr.rel (0) target = $region13
    $region12: #{tpu_custom_call.1} parent=1 // pred_region
      %s24 = ssub.s32 16, 16
      %25 = vsyncadd [#allocation3], %s24
      %s27 = sshll.u32 [#allocation2], 4
      %s28 = int_to_ptr.vmem [resolvable:$true] %s27
      %30 = dma.hbm_to_vmem [thread:$0]  %s2, 16, %s28, [#allocation3]
    $region13: #{tpu_custom_call.1} parent=1 // pred_fallthru
      _
    // Predicated region
    $region14: #{tpu_custom_call.1} parent=1 // pred_check
      _
    $region15: #{tpu_custom_call.1} parent=1 // pred_check_branch
      %32 = sbr.rel (0) target = $region17
    $region16: #{tpu_custom_call.1} parent=1 // pred_region
      %s34 = ssub.s32 128, 128
      %35 = vsyncadd [#allocation6], %s34
      %s37 = sshll.u32 [#allocation5], 4
      %s38 = int_to_ptr.vmem [resolvable:$true] %s37
      %40 = dma.hbm_to_vmem [thread:$0]  %s3, 128, %s38, [#allocation6]
    $region17: #{tpu_custom_call.1} parent=1 // pred_fallthru
      _
    // Predicated region
    $region18: #{tpu_custom_call.1} parent=1 // pred_check
      _
    $region19: #{tpu_custom_call.1} parent=1 // pred_check_branch
      %42 = sbr.rel (0) target = $region21
    $region20: #{tpu_custom_call.1} parent=1 // pred_region
      _
    $region21: #{tpu_custom_call.1} parent=1 // pred_fallthru
      _
    // Predicated region
    $region22: #{tpu_custom_call.1} parent=1 // pred_check
      _
    $region23: #{tpu_custom_call.1} parent=1 // pred_check_branch
      %44 = sbr.rel (0) target = $region25
    $region24: #{tpu_custom_call.1} parent=1 // pred_region
      %s46 = ssub.s32 256, 256
      %47 = vsyncadd [#allocation6], %s46
      %s48 = sshll.u32 [#allocation7], 4
      %s49 = int_to_ptr.vmem [resolvable:$true] %s48
      %54 = dma.hbm_to_vmem [thread:$0]  %s5, 256, %s49, [#allocation6], 128, 128, 8
    $region25: #{tpu_custom_call.1} parent=1 // pred_fallthru
      _
    // Predicated region
    $region26: #{tpu_custom_call.1} parent=1 // pred_check
      _
    $region27: #{tpu_custom_call.1} parent=1 // pred_check_branch
      %56 = sbr.rel (0) target = $region29
    $region28: #{tpu_custom_call.1} parent=1 // pred_region
      %57 = dma.done [#allocation3], 16
    $region29: #{tpu_custom_call.1} parent=1 // pred_fallthru
      _
    // Predicated region
    $region30: #{tpu_custom_call.1} parent=1 // pred_check
      _
    $region31: #{tpu_custom_call.1} parent=1 // pred_check_branch
      %59 = sbr.rel (0) target = $region33
    $region32: #{tpu_custom_call.1} parent=1 // pred_region
      %60 = dma.done [#allocation6], 128
    $region33: #{tpu_custom_call.1} parent=1 // pred_fallthru
      _
    // Predicated region
    $region34: #{tpu_custom_call.1} parent=1 // pred_check
      _
    $region35: #{tpu_custom_call.1} parent=1 // pred_check_branch
      %62 = sbr.rel (0) target = $region37
    $region36: #{tpu_custom_call.1} parent=1 // pred_region
      %63 = dma.done [#allocation6], 256
    $region37: #{tpu_custom_call.1} parent=1 // pred_fallthru
      _
    %v64 = vld [vmem:[#allocation7] sm:$0xff]
    %v65 = vld [vmem:[#allocation7 + $0x8] sm:$0xff]
    %vm66 = vcmask 130048
    %67 = vst.msk [vmem:[#allocation9] sm:$0xff] %vm66, %v64
    %68 = vst.msk [vmem:[#allocation9 + $0x8] sm:$0xff] %vm66, %v65
    %v69 = vld [vmem:[%s1] sm:$0xff]
    %v70 = vld [vmem:[%s1 + $0x8] sm:$0xff]
    %v71 = vld [vmem:[%s1 + $0x10] sm:$0xff]
    %v72 = vld [vmem:[%s1 + $0x18] sm:$0xff]
    %v73 = vld [vmem:[#allocation2] sm:$0x1]
    %v74 = vld [vmem:[#allocation5] sm:$0xff]
    %v75 = vld [vmem:[%s4] sm:$0x3]
    %v76 = vld [vmem:[%s0] sm:$0x3]
    %v78 = vlaneseq
    %v79 = vshrl.u32 %v78, 7
    %v80 = vsub.s32 0, %v79
    %v81 = vrot.slane %v73, %v80
    %vm83 = vcmask 261120
    %v85 = vsel %vm83, %v76, 0
    %87 = vmatprep.subr.mxu0 0.0
    %88 = vmatpush1.msra.mxu0 %v69
    %89 = vmatprep.subr.mxu0 0.0
    %90 = vmatpush1.msra.mxu0 %v70
    %91 = vmatprep.subr.mxu0 0.0
    %92 = vmatpush1.msra.mxu0 %v71
    %93 = vmatprep.subr.mxu0 0.0
    %94 = vmatpush1.msra.mxu0 %v72
    %95 = vmatprep.subr.mxu0 0.0
    %96 = vmatpush1.msra.mxu0 0.0
    %97 = vmatprep.subr.mxu0 0.0
    %98 = vmatpush1.msra.mxu0 0.0
    %99 = vmatprep.subr.mxu0 0.0
    %100 = vmatpush1.msra.mxu0 0.0
    %101 = vmatprep.subr.mxu0 0.0
    %102 = vmatpush1.msra.mxu0 0.0
    %103 = vmatprep.subr.mxu0 0.0
    %104 = vmatpush1.msra.mxu0 0.0
    %105 = vmatprep.subr.mxu0 0.0
    %106 = vmatpush1.msra.mxu0 0.0
    %107 = vmatprep.subr.mxu0 0.0
    %108 = vmatpush1.msra.mxu0 0.0
    %109 = vmatprep.subr.mxu0 0.0
    %110 = vmatpush1.msra.mxu0 0.0
    %111 = vmatprep.subr.mxu0 0.0
    %112 = vmatpush1.msra.mxu0 0.0
    %113 = vmatprep.subr.mxu0 0.0
    %114 = vmatpush1.msra.mxu0 0.0
    %115 = vmatprep.subr.mxu0 0.0
    %116 = vmatpush1.msra.mxu0 0.0
    %117 = vmatprep.subr.mxu0 0.0
    %118 = vmatpush1.msra.mxu0 0.0
    %119 = vmatprep.subr.mxu0 0.0
    %120 = vmatpush1.msra.mxu0 0.0
    %121 = vmatprep.subr.mxu0 0.0
    %122 = vmatpush1.msra.mxu0 0.0
    %123 = vmatprep.subr.mxu0 0.0
    %124 = vmatpush1.msra.mxu0 0.0
    %125 = vmatprep.subr.mxu0 0.0
    %126 = vmatpush1.msra.mxu0 0.0
    %127 = vmatprep.subr.mxu0 0.0
    %128 = vmatpush1.msra.mxu0 0.0
    %129 = vmatprep.subr.mxu0 0.0
    %130 = vmatpush1.msra.mxu0 0.0
    %131 = vmatprep.subr.mxu0 0.0
    %132 = vmatpush1.msra.mxu0 0.0
    %133 = vmatprep.subr.mxu0 0.0
    %134 = vmatpush1.msra.mxu0 0.0
    %135 = vmatprep.subr.mxu0 0.0
    %136 = vmatpush1.msra.mxu0 0.0
    %137 = vmatprep.subr.mxu0 0.0
    %138 = vmatpush1.msra.mxu0 0.0
    %139 = vmatprep.subr.mxu0 0.0
    %140 = vmatpush1.msra.mxu0 0.0
    %141 = vmatprep.subr.mxu0 0.0
    %142 = vmatpush1.msra.mxu0 0.0
    %143 = vmatprep.subr.mxu0 0.0
    %144 = vmatpush1.msra.mxu0 0.0
    %145 = vmatprep.subr.mxu0 0.0
    %146 = vmatpush1.msra.mxu0 0.0
    %147 = vmatprep.subr.mxu0 0.0
    %148 = vmatpush1.msra.mxu0 0.0
    %149 = vmatprep.subr.mxu0 0.0
    %150 = vmatpush1.msra.mxu0 0.0
    %151 = vmatprep.mubr.f32.mxu0 0.0
    %152 = vmatmul.mubr.f32.gmra.mrb[0].mxu0 %v85
    %v153 = vpop.f32.mrb[0].mxu0
    %v154 = vadd.f32 %v81, %v153
    %v155 = vpop.f32.mrb[0].mxu0
    %156 = vdwg.mxu0
    %v157 = vtanh.pop %v154
    %v158 = vmax.f32 %v154, 0.0
    %vm159 = vcmp.ne.f32.partialorder %v154, %v154
    %v160 = vadd.f32 %v154, 0.0
    %v161 = vand.u32 2147483647, %v154
    %v162 = vsub.f32 0.0, %v161
    %v163 = vmul.f32 %v162, 1.442695
    %v164 = vpow.pop %v163
    %v165 = vadd.f32 %v164, 1.0
    %v166 = vlog2.pop %v165
    %v167 = vmul.f32 %v166, 0.6931472
    %v168 = vmul.f32 -0.5, %v164
    %v169 = vadd.f32 %v168, 1.0
    %v170 = vmul.f32 %v169, %v164
    %v171 = vand.u32 2147483647, %v164
    %vm172 = vcmp.lt.f32.partialorder %v171, 0.0004427343
    %v173 = vsel %vm172, %v170, %v167
    %v174 = vadd.f32 %v158, %v173
    %v175 = vsel %vm159, %v160, %v174
    %v176 = vxor.u32 %v154, 2147483648
    %v177 = vmul.f32 %v176, 1.442695
    %v178 = vpow.pop %v177
    %v179 = vadd.f32 %v178, 1.0
    %v180 = vrcp.pop %v179
    %v181 = vmul.f32 1.0, %v180
    %v182 = vadd.f32 %v175, 1.0
    %vm183 = vcmask 165008
    %v184 = vsel %vm183, %v154, -inf
    %185 = vmax.xlane.f32.xlu0 %v184
    %v186 = vpop.xlane.xlu0 %185
    %v187 = vsub.f32 %v154, %v186
    %v188 = vmul.f32 %v187, 1.442695
    %v189 = vpow.pop %v188
    %191 = vrot.lane.b32.xlu0 %v189, 110
    %v192 = vpop.permute.xlu0 %191
    %vm194 = vcmask 17408
    %v195 = vsel %vm194, %v192, 0.0
    %196 = vadd.xlane.f32.xlu0 %v195
    %v197 = vpop.xlane.xlu0 %196
    %v198 = vrcp.pop %v197
    %v199 = vmul.f32 %v189, %v198
    %v200 = vld [vmem:[#allocation9] sm:$0xff]
    %v201 = vld [vmem:[#allocation9 + $0x8] sm:$0xff]
    %v202 = vadd.f32 %v200, 1e-16
    %v203 = vadd.f32 %v201, 1e-16
    %v204 = vadd.f32 %v157, 1e-16
    %v207 = vunpack.c.l.s4 1966171168
    %v208 = vunpack.c.0.s8 %v207
    %v209 = vlaneseq
    %v210 = vshrl.u32 %v209, 7
    %v211 = vsub.s32 %v208, %v210
    %v212 = vrot.slane %v204, %v211
    %v213 = vcombine.high %v212, %v212
    %v215 = vunpack.c.l.s4 1966171168
    %v216 = vunpack.c.0.s8 %v215
    %v217 = vlaneseq
    %v218 = vshrl.u32 %v217, 7
    %v219 = vsub.s32 %v216, %v218
    %v220 = vrot.slane %v212, %v219
    %v222 = vunpack.c.l.s4 1966171168
    %v223 = vunpack.c.0.s8 %v222
    %v224 = vlaneseq
    %v225 = vshrl.u32 %v224, 7
    %v226 = vsub.s32 %v223, %v225
    %v227 = vrot.slane %v213, %v226
    %v230 = vlaneseq
    %v231 = vshrl.u32 %v230, 7
    %v232 = vsub.s32 0, %v231
    %v233 = vrot.slane %v220, %v232
    %v234 = vlaneseq
    %v235 = vshrl.u32 %v234, 7
    %v236 = vsub.s32 0, %v235
    %v237 = vrot.slane %v227, %v236
    %v240 = vmul.f32 %v202, %v233
    %v241 = vmul.f32 %v203, %v237
    %v242 = vsel %vm66, %v240, 0.0
    %243 = vadd.xlane.f32.xlu0 %v242
    %v244 = vpop.xlane.xlu0 %243
    %v245 = vsel %vm66, %v241, 0.0
    %246 = vadd.xlane.f32.xlu0 %v245
    %v247 = vpop.xlane.xlu0 %246
    %v248 = vmul.f32 %v202, %v202
    %v249 = vmul.f32 %v203, %v203
    %v250 = vsel %vm66, %v248, 0.0
    %251 = vadd.xlane.f32.xlu0 %v250
    %v252 = vpop.xlane.xlu0 %251
    %v253 = vsel %vm66, %v249, 0.0
    %254 = vadd.xlane.f32.xlu0 %v253
    %v255 = vpop.xlane.xlu0 %254
    %v256 = vrsqrt.pop %v252
    %v257 = vmul.f32 %v252, %v256
    %vm258 = vcmp.eq.f32.partialorder %v252, inf
    %v259 = vsel %vm258, %v252, %v257
    %vm260 = vcmp.eq.f32.partialorder %v252, 0.0
    %v261 = vand.u32 %v252, 2147483648
    %v262 = vsel %vm260, %v261, %v259
    %v263 = vrsqrt.pop %v255
    %v264 = vmul.f32 %v255, %v263
    %vm265 = vcmp.eq.f32.partialorder %v255, inf
    %v266 = vsel %vm265, %v255, %v264
    %vm267 = vcmp.eq.f32.partialorder %v255, 0.0
    %v268 = vand.u32 %v255, 2147483648
    %v269 = vsel %vm267, %v268, %v266
    %v270 = vmul.f32 %v220, %v220
    %v271 = vmul.f32 %v227, %v227
    %vm272 = vcmask 122880
    %v273 = vsel %vm272, %v270, 0.0
    %274 = vadd.xlane.f32.xlu0 %v273
    %v275 = vpop.xlane.xlu0 %274
    %v276 = vsel %vm272, %v271, 0.0
    %277 = vadd.xlane.f32.xlu0 %v276
    %v278 = vpop.xlane.xlu0 %277
    %v279 = vrsqrt.pop %v275
    %v280 = vmul.f32 %v275, %v279
    %vm281 = vcmp.eq.f32.partialorder %v275, inf
    %v282 = vsel %vm281, %v275, %v280
    %vm283 = vcmp.eq.f32.partialorder %v275, 0.0
    %v284 = vand.u32 %v275, 2147483648
    %v285 = vsel %vm283, %v284, %v282
    %v286 = vrsqrt.pop %v278
    %v287 = vmul.f32 %v278, %v286
    %vm288 = vcmp.eq.f32.partialorder %v278, inf
    %v289 = vsel %vm288, %v278, %v287
    %vm290 = vcmp.eq.f32.partialorder %v278, 0.0
    %v291 = vand.u32 %v278, 2147483648
    %v292 = vsel %vm290, %v291, %v289
    %v293 = vmax.f32 %v262, 1e-08
    %v294 = vmax.f32 %v269, 1e-08
    %v295 = vmax.f32 %v285, 1e-08
    %v296 = vmax.f32 %v292, 1e-08
    %v297 = vlaneseq
    %v298 = vshrl.u32 %v297, 7
    %v299 = vsub.s32 0, %v298
    %v300 = vrot.slane %v295, %v299
    %v301 = vlaneseq
    %v302 = vshrl.u32 %v301, 7
    %v303 = vsub.s32 0, %v302
    %v304 = vrot.slane %v296, %v303
    %v305 = vmul.f32 %v293, %v300
    %v306 = vmul.f32 %v294, %v304
    %v307 = vrcp.pop %v305
    %v308 = vmul.f32 %v244, %v307
    %v309 = vrcp.pop %v306
    %v310 = vmul.f32 %v247, %v309
    %312 = vset.pattern.permute.xlu0 16
    %313 = vperm.xlu0 %312, %v175
    %v314 = vpop.permute.xlu0 %313
    %v318 = vlaneseq
    %v319 = vand.u32 %v318, 127
    %v320 = vlaneseq
    %v321 = vshrl.u32 %v320, 7
    %v322 = vsub.s32 %v319, %v321
    %v323 = vrot.slane %v308, %v322
    %v324 = vlaneseq
    %v325 = vshrl.u32 %v324, 7
    %v326 = vsub.s32 %v319, %v325
    %v327 = vrot.slane %v310, %v326
    %vm328 = vcmask 1041409
    %v329 = vsel %vm328, %v327, %v323
    %v331 = vmul.f32 %v314, %v329
    %vm332 = vcmask 58368
    %v333 = vsel %vm332, %v331, -inf
    %334 = vmax.xlane.f32.xlu0 %v333
    %v335 = vpop.xlane.xlu0 %334
    %v336 = vsub.f32 %v331, %v335
    %v337 = vmul.f32 %v336, 1.442695
    %v338 = vpow.pop %v337
    %v339 = vsel %vm332, %v338, 0.0
    %340 = vadd.xlane.f32.xlu0 %v339
    %v341 = vpop.xlane.xlu0 %340
    %v342 = vrcp.pop %v341
    %v343 = vmul.f32 %v338, %v342
    %345 = vset.pattern.permute.xlu0 17
    %346 = vperm.xlu0 %345, %v181
    %v347 = vpop.permute.xlu0 %346
    %v349 = vmul.f32 %v347, %v343
    %v350 = vsub.f32 1.0, %v181
    %352 = vset.pattern.permute.xlu0 17
    %353 = vperm.xlu0 %352, %v350
    %v354 = vpop.permute.xlu0 %353
    %v356 = vmul.f32 %v354, %v75
    %v357 = vadd.f32 %v349, %v356
    %vm358 = vcmask 64512
    %v360 = vsel %vm358, %v357, 0
    %362 = vmatprep.subr.mxu0 0.0
    %363 = vmatpush1.msra.mxu0 %v74
    %364 = vmatprep.subr.mxu0 0.0
    %365 = vmatpush1.msra.mxu0 0.0
    %366 = vmatprep.subr.mxu0 0.0
    %367 = vmatpush1.msra.mxu0 0.0
    %368 = vmatprep.subr.mxu0 0.0
    %369 = vmatpush1.msra.mxu0 0.0
    %370 = vmatprep.subr.mxu0 0.0
    %371 = vmatpush1.msra.mxu0 0.0
    %372 = vmatprep.subr.mxu0 0.0
    %373 = vmatpush1.msra.mxu0 0.0
    %374 = vmatprep.subr.mxu0 0.0
    %375 = vmatpush1.msra.mxu0 0.0
    %376 = vmatprep.subr.mxu0 0.0
    %377 = vmatpush1.msra.mxu0 0.0
    %378 = vmatprep.subr.mxu0 0.0
    %379 = vmatpush1.msra.mxu0 0.0
    %380 = vmatprep.subr.mxu0 0.0
    %381 = vmatpush1.msra.mxu0 0.0
    %382 = vmatprep.subr.mxu0 0.0
    %383 = vmatpush1.msra.mxu0 0.0
    %384 = vmatprep.subr.mxu0 0.0
    %385 = vmatpush1.msra.mxu0 0.0
    %386 = vmatprep.subr.mxu0 0.0
    %387 = vmatpush1.msra.mxu0 0.0
    %388 = vmatprep.subr.mxu0 0.0
    %389 = vmatpush1.msra.mxu0 0.0
    %390 = vmatprep.subr.mxu0 0.0
    %391 = vmatpush1.msra.mxu0 0.0
    %392 = vmatprep.subr.mxu0 0.0
    %393 = vmatpush1.msra.mxu0 0.0
    %394 = vmatprep.subr.mxu0 0.0
    %395 = vmatpush1.msra.mxu0 0.0
    %396 = vmatprep.subr.mxu0 0.0
    %397 = vmatpush1.msra.mxu0 0.0
    %398 = vmatprep.subr.mxu0 0.0
    %399 = vmatpush1.msra.mxu0 0.0
    %400 = vmatprep.subr.mxu0 0.0
    %401 = vmatpush1.msra.mxu0 0.0
    %402 = vmatprep.subr.mxu0 0.0
    %403 = vmatpush1.msra.mxu0 0.0
    %404 = vmatprep.subr.mxu0 0.0
    %405 = vmatpush1.msra.mxu0 0.0
    %406 = vmatprep.subr.mxu0 0.0
    %407 = vmatpush1.msra.mxu0 0.0
    %408 = vmatprep.subr.mxu0 0.0
    %409 = vmatpush1.msra.mxu0 0.0
    %410 = vmatprep.subr.mxu0 0.0
    %411 = vmatpush1.msra.mxu0 0.0
    %412 = vmatprep.subr.mxu0 0.0
    %413 = vmatpush1.msra.mxu0 0.0
    %414 = vmatprep.subr.mxu0 0.0
    %415 = vmatpush1.msra.mxu0 0.0
    %416 = vmatprep.subr.mxu0 0.0
    %417 = vmatpush1.msra.mxu0 0.0
    %418 = vmatprep.subr.mxu0 0.0
    %419 = vmatpush1.msra.mxu0 0.0
    %420 = vmatprep.subr.mxu0 0.0
    %421 = vmatpush1.msra.mxu0 0.0
    %422 = vmatprep.subr.mxu0 0.0
    %423 = vmatpush1.msra.mxu0 0.0
    %424 = vmatprep.subr.mxu0 0.0
    %425 = vmatpush1.msra.mxu0 0.0
    %426 = vmatprep.mubr.f32.mxu0 0.0
    %427 = vmatmul.mubr.f32.gmra.mrb[0].mxu0 %v360
    %v428 = vpop.f32.mrb[0].mxu0
    %v429 = vadd.f32 0.0, %v428
    %v430 = vpop.f32.mrb[0].mxu0
    %431 = vdwg.mxu0
    %433 = vset.pattern.permute.xlu0 18
    %434 = vperm.xlu0 %433, %v199
    %v435 = vpop.permute.xlu0 %434
    %v437 = vmul.f32 %v429, %v435
    %438 = vset.pattern.permute.xlu0 19
    %439 = vperm.xlu0 %438, %v199
    %v440 = vpop.permute.xlu0 %439
    %v442 = vmul.f32 %v357, %v440
    %v443 = vadd.f32 %v437, %v442
    %444 = vset.pattern.permute.xlu0 20
    %445 = vperm.xlu0 %444, %v199
    %v446 = vpop.permute.xlu0 %445
    %v448 = vmul.f32 %v429, %v446
    %450 = vrot.lane.b32.xlu0 %v448, 120
    %v451 = vpop.permute.xlu0 %450
    %v453 = vadd.f32 %v443, %v451
    %v454 = vmax.f32 %v453, 0.0
    %456 = vset.pattern.permute.xlu0 21
    %457 = vperm.xlu0 %456, %v182
    %v458 = vpop.permute.xlu0 %457
    %v460 = vpow.f32 %v454, %v458
    %v461 = vsel %vm332, %v460, 0.0
    %462 = vadd.xlane.f32.xlu0 %v461
    %v463 = vpop.xlane.xlu0 %462
    %v464 = vadd.f32 %v463, 1e-16
    %v465 = vrcp.pop %v464
    %v466 = vmul.f32 %v460, %v465
    %467 = vst.msk [vmem:[#allocation8] sm:$0x3] %vm332, %v466
    %v468 = vlaneseq
    %v469 = vshrl.u32 %v468, 7
    %v470 = vsub.s32 0, %v469
    %v471 = vrot.slane %v466, %v470
    %473 = vbcast.lane.b32.xlu0 %v471, 256
    %v474 = vpop.permute.xlu0 %473
    %v475 = vlaneseq
    %v476 = vshrl.u32 %v475, 7
    %v477 = vsub.s32 1, %v476
    %v478 = vrot.slane %v466, %v477
    %480 = vbcast.lane.b32.xlu0 %v478, 256
    %v481 = vpop.permute.xlu0 %480
    %v483 = vunpack.c.l.s4 1966171168
    %v484 = vunpack.c.0.s8 %v483
    %v485 = vlaneseq
    %v486 = vshrl.u32 %v485, 7
    %v487 = vsub.s32 %v484, %v486
    %v488 = vrot.slane %v181, %v487
    %v489 = vcombine.high %v488, %v488
    %v491 = vunpack.c.l.s4 1966171168
    %v492 = vunpack.c.0.s8 %v491
    %v493 = vlaneseq
    %v494 = vshrl.u32 %v493, 7
    %v495 = vsub.s32 %v492, %v494
    %v496 = vrot.slane %v488, %v495
    %v498 = vunpack.c.l.s4 1966171168
    %v499 = vunpack.c.0.s8 %v498
    %v500 = vlaneseq
    %v501 = vshrl.u32 %v500, 7
    %v502 = vsub.s32 %v499, %v501
    %v503 = vrot.slane %v489, %v502
    %v504 = vlaneseq
    %v505 = vshrl.u32 %v504, 7
    %v506 = vsub.s32 0, %v505
    %v507 = vrot.slane %v496, %v506
    %v508 = vlaneseq
    %v509 = vshrl.u32 %v508, 7
    %v510 = vsub.s32 0, %v509
    %v511 = vrot.slane %v503, %v510
    %v514 = vmul.f32 %v474, %v507
    %v515 = vmul.f32 %v481, %v511
    %v518 = vunpack.c.l.s4 1966171168
    %v519 = vunpack.c.0.s8 %v518
    %v520 = vlaneseq
    %v521 = vshrl.u32 %v520, 7
    %v522 = vsub.s32 %v519, %v521
    %v523 = vrot.slane %v157, %v522
    %v524 = vcombine.high %v523, %v523
    %v526 = vunpack.c.l.s4 1966171168
    %v527 = vunpack.c.0.s8 %v526
    %v528 = vlaneseq
    %v529 = vshrl.u32 %v528, 7
    %v530 = vsub.s32 %v527, %v529
    %v531 = vrot.slane %v523, %v530
    %v533 = vunpack.c.l.s4 1966171168
    %v534 = vunpack.c.0.s8 %v533
    %v535 = vlaneseq
    %v536 = vshrl.u32 %v535, 7
    %v537 = vsub.s32 %v534, %v536
    %v538 = vrot.slane %v524, %v537
    %v539 = vlaneseq
    %v540 = vshrl.u32 %v539, 7
    %v541 = vsub.s32 0, %v540
    %v542 = vrot.slane %v531, %v541
    %v543 = vlaneseq
    %v544 = vshrl.u32 %v543, 7
    %v545 = vsub.s32 0, %v544
    %v546 = vrot.slane %v538, %v545
    %v549 = vmul.f32 %v474, %v542
    %v550 = vmul.f32 %v481, %v546
    %v551 = vsub.f32 1.0, %v514
    %v552 = vsub.f32 1.0, %v515
    %555 = vrot.lane.b32.xlu0 %v551, 96
    %v556 = vpop.permute.xlu0 %555
    %557 = vrot.lane.b32.xlu0 %v552, 96
    %v558 = vpop.permute.xlu0 %557
    %v561 = vmul.f32 %v200, %v556
    %v562 = vmul.f32 %v201, %v558
    %565 = vrot.lane.b32.xlu0 %v549, 80
    %v566 = vpop.permute.xlu0 %565
    %567 = vrot.lane.b32.xlu0 %v550, 80
    %v568 = vpop.permute.xlu0 %567
    %v571 = vadd.f32 %v561, %v566
    %v572 = vadd.f32 %v562, %v568
    %573 = vst.msk [vmem:[#allocation9] sm:$0xff] %vm66, %v571
    %574 = vst.msk [vmem:[#allocation9 + $0x8] sm:$0xff] %vm66, %v572
    %s575 = scalar_lea.vmem %s0, 2
    %v576 = vld [vmem:[%s575] sm:$0x3]
    %v578 = vsel %vm83, %v576, 0
    %580 = vmatprep.subr.mxu0 0.0
    %581 = vmatpush1.msra.mxu0 %v69
    %582 = vmatprep.subr.mxu0 0.0
    %583 = vmatpush1.msra.mxu0 %v70
    %584 = vmatprep.subr.mxu0 0.0
    %585 = vmatpush1.msra.mxu0 %v71
    %586 = vmatprep.subr.mxu0 0.0
    %587 = vmatpush1.msra.mxu0 %v72
    %588 = vmatprep.subr.mxu0 0.0
    %589 = vmatpush1.msra.mxu0 0.0
    %590 = vmatprep.subr.mxu0 0.0
    %591 = vmatpush1.msra.mxu0 0.0
    %592 = vmatprep.subr.mxu0 0.0
    %593 = vmatpush1.msra.mxu0 0.0
    %594 = vmatprep.subr.mxu0 0.0
    %595 = vmatpush1.msra.mxu0 0.0
    %596 = vmatprep.subr.mxu0 0.0
    %597 = vmatpush1.msra.mxu0 0.0
    %598 = vmatprep.subr.mxu0 0.0
    %599 = vmatpush1.msra.mxu0 0.0
    %600 = vmatprep.subr.mxu0 0.0
    %601 = vmatpush1.msra.mxu0 0.0
    %602 = vmatprep.subr.mxu0 0.0
    %603 = vmatpush1.msra.mxu0 0.0
    %604 = vmatprep.subr.mxu0 0.0
    %605 = vmatpush1.msra.mxu0 0.0
    %606 = vmatprep.subr.mxu0 0.0
    %607 = vmatpush1.msra.mxu0 0.0
    %608 = vmatprep.subr.mxu0 0.0
    %609 = vmatpush1.msra.mxu0 0.0
    %610 = vmatprep.subr.mxu0 0.0
    %611 = vmatpush1.msra.mxu0 0.0
    %612 = vmatprep.subr.mxu0 0.0
    %613 = vmatpush1.msra.mxu0 0.0
    %614 = vmatprep.subr.mxu0 0.0
    %615 = vmatpush1.msra.mxu0 0.0
    %616 = vmatprep.subr.mxu0 0.0
    %617 = vmatpush1.msra.mxu0 0.0
    %618 = vmatprep.subr.mxu0 0.0
    %619 = vmatpush1.msra.mxu0 0.0
    %620 = vmatprep.subr.mxu0 0.0
    %621 = vmatpush1.msra.mxu0 0.0
    %622 = vmatprep.subr.mxu0 0.0
    %623 = vmatpush1.msra.mxu0 0.0
    %624 = vmatprep.subr.mxu0 0.0
    %625 = vmatpush1.msra.mxu0 0.0
    %626 = vmatprep.subr.mxu0 0.0
    %627 = vmatpush1.msra.mxu0 0.0
    %628 = vmatprep.subr.mxu0 0.0
    %629 = vmatpush1.msra.mxu0 0.0
    %630 = vmatprep.subr.mxu0 0.0
    %631 = vmatpush1.msra.mxu0 0.0
    %632 = vmatprep.subr.mxu0 0.0
    %633 = vmatpush1.msra.mxu0 0.0
    %634 = vmatprep.subr.mxu0 0.0
    %635 = vmatpush1.msra.mxu0 0.0
    %636 = vmatprep.subr.mxu0 0.0
    %637 = vmatpush1.msra.mxu0 0.0
    %638 = vmatprep.subr.mxu0 0.0
    %639 = vmatpush1.msra.mxu0 0.0
    %640 = vmatprep.subr.mxu0 0.0
    %641 = vmatpush1.msra.mxu0 0.0
    %642 = vmatprep.subr.mxu0 0.0
    %643 = vmatpush1.msra.mxu0 0.0
    %644 = vmatprep.mubr.f32.mxu0 0.0
    %645 = vmatmul.mubr.f32.gmra.mrb[0].mxu0 %v578
    %v646 = vpop.f32.mrb[0].mxu0
    %v647 = vadd.f32 %v81, %v646
    %v648 = vpop.f32.mrb[0].mxu0
    %649 = vdwg.mxu0
    %v650 = vtanh.pop %v647
    %v651 = vmax.f32 %v647, 0.0
    %vm652 = vcmp.ne.f32.partialorder %v647, %v647
    %v653 = vadd.f32 %v647, 0.0
    %v654 = vand.u32 2147483647, %v647
    %v655 = vsub.f32 0.0, %v654
    %v656 = vmul.f32 %v655, 1.442695
    %v657 = vpow.pop %v656
    %v658 = vadd.f32 %v657, 1.0
    %v659 = vlog2.pop %v658
    %v660 = vmul.f32 %v659, 0.6931472
    %v661 = vmul.f32 -0.5, %v657
    %v662 = vadd.f32 %v661, 1.0
    %v663 = vmul.f32 %v662, %v657
    %v664 = vand.u32 2147483647, %v657
    %vm665 = vcmp.lt.f32.partialorder %v664, 0.0004427343
    %v666 = vsel %vm665, %v663, %v660
    %v667 = vadd.f32 %v651, %v666
    %v668 = vsel %vm652, %v653, %v667
    %v669 = vxor.u32 %v647, 2147483648
    %v670 = vmul.f32 %v669, 1.442695
    %v671 = vpow.pop %v670
    %v672 = vadd.f32 %v671, 1.0
    %v673 = vrcp.pop %v672
    %v674 = vmul.f32 1.0, %v673
    %v675 = vadd.f32 %v668, 1.0
    %v676 = vsel %vm183, %v647, -inf
    %677 = vmax.xlane.f32.xlu0 %v676
    %v678 = vpop.xlane.xlu0 %677
    %v679 = vsub.f32 %v647, %v678
    %v680 = vmul.f32 %v679, 1.442695
    %v681 = vpow.pop %v680
    %683 = vrot.lane.b32.xlu0 %v681, 110
    %v684 = vpop.permute.xlu0 %683
    %v686 = vsel %vm194, %v684, 0.0
    %687 = vadd.xlane.f32.xlu0 %v686
    %v688 = vpop.xlane.xlu0 %687
    %v689 = vrcp.pop %v688
    %v690 = vmul.f32 %v681, %v689
    %v691 = vld [vmem:[#allocation9] sm:$0xff]
    %v692 = vld [vmem:[#allocation9 + $0x8] sm:$0xff]
    %v693 = vadd.f32 %v691, 1e-16
    %v694 = vadd.f32 %v692, 1e-16
    %v695 = vadd.f32 %v650, 1e-16
    %v698 = vunpack.c.l.s4 1966171168
    %v699 = vunpack.c.0.s8 %v698
    %v700 = vlaneseq
    %v701 = vshrl.u32 %v700, 7
    %v702 = vsub.s32 %v699, %v701
    %v703 = vrot.slane %v695, %v702
    %v704 = vcombine.high %v703, %v703
    %v706 = vunpack.c.l.s4 1966171168
    %v707 = vunpack.c.0.s8 %v706
    %v708 = vlaneseq
    %v709 = vshrl.u32 %v708, 7
    %v710 = vsub.s32 %v707, %v709
    %v711 = vrot.slane %v703, %v710
    %v713 = vunpack.c.l.s4 1966171168
    %v714 = vunpack.c.0.s8 %v713
    %v715 = vlaneseq
    %v716 = vshrl.u32 %v715, 7
    %v717 = vsub.s32 %v714, %v716
    %v718 = vrot.slane %v704, %v717
    %v721 = vlaneseq
    %v722 = vshrl.u32 %v721, 7
    %v723 = vsub.s32 0, %v722
    %v724 = vrot.slane %v711, %v723
    %v725 = vlaneseq
    %v726 = vshrl.u32 %v725, 7
    %v727 = vsub.s32 0, %v726
    %v728 = vrot.slane %v718, %v727
    %v731 = vmul.f32 %v693, %v724
    %v732 = vmul.f32 %v694, %v728
    %v733 = vsel %vm66, %v731, 0.0
    %734 = vadd.xlane.f32.xlu0 %v733
    %v735 = vpop.xlane.xlu0 %734
    %v736 = vsel %vm66, %v732, 0.0
    %737 = vadd.xlane.f32.xlu0 %v736
    %v738 = vpop.xlane.xlu0 %737
    %v739 = vmul.f32 %v693, %v693
    %v740 = vmul.f32 %v694, %v694
    %v741 = vsel %vm66, %v739, 0.0
    %742 = vadd.xlane.f32.xlu0 %v741
    %v743 = vpop.xlane.xlu0 %742
    %v744 = vsel %vm66, %v740, 0.0
    %745 = vadd.xlane.f32.xlu0 %v744
    %v746 = vpop.xlane.xlu0 %745
    %v747 = vrsqrt.pop %v743
    %v748 = vmul.f32 %v743, %v747
    %vm749 = vcmp.eq.f32.partialorder %v743, inf
    %v750 = vsel %vm749, %v743, %v748
    %vm751 = vcmp.eq.f32.partialorder %v743, 0.0
    %v752 = vand.u32 %v743, 2147483648
    %v753 = vsel %vm751, %v752, %v750
    %v754 = vrsqrt.pop %v746
    %v755 = vmul.f32 %v746, %v754
    %vm756 = vcmp.eq.f32.partialorder %v746, inf
    %v757 = vsel %vm756, %v746, %v755
    %vm758 = vcmp.eq.f32.partialorder %v746, 0.0
    %v759 = vand.u32 %v746, 2147483648
    %v760 = vsel %vm758, %v759, %v757
    %v761 = vmul.f32 %v711, %v711
    %v762 = vmul.f32 %v718, %v718
    %v763 = vsel %vm272, %v761, 0.0
    %764 = vadd.xlane.f32.xlu0 %v763
    %v765 = vpop.xlane.xlu0 %764
    %v766 = vsel %vm272, %v762, 0.0
    %767 = vadd.xlane.f32.xlu0 %v766
    %v768 = vpop.xlane.xlu0 %767
    %v769 = vrsqrt.pop %v765
    %v770 = vmul.f32 %v765, %v769
    %vm771 = vcmp.eq.f32.partialorder %v765, inf
    %v772 = vsel %vm771, %v765, %v770
    %vm773 = vcmp.eq.f32.partialorder %v765, 0.0
    %v774 = vand.u32 %v765, 2147483648
    %v775 = vsel %vm773, %v774, %v772
    %v776 = vrsqrt.pop %v768
    %v777 = vmul.f32 %v768, %v776
    %vm778 = vcmp.eq.f32.partialorder %v768, inf
    %v779 = vsel %vm778, %v768, %v777
    %vm780 = vcmp.eq.f32.partialorder %v768, 0.0
    %v781 = vand.u32 %v768, 2147483648
    %v782 = vsel %vm780, %v781, %v779
    %v783 = vmax.f32 %v753, 1e-08
    %v784 = vmax.f32 %v760, 1e-08
    %v785 = vmax.f32 %v775, 1e-08
    %v786 = vmax.f32 %v782, 1e-08
    %v787 = vlaneseq
    %v788 = vshrl.u32 %v787, 7
    %v789 = vsub.s32 0, %v788
    %v790 = vrot.slane %v785, %v789
    %v791 = vlaneseq
    %v792 = vshrl.u32 %v791, 7
    %v793 = vsub.s32 0, %v792
    %v794 = vrot.slane %v786, %v793
    %v795 = vmul.f32 %v783, %v790
    %v796 = vmul.f32 %v784, %v794
    %v797 = vrcp.pop %v795
    %v798 = vmul.f32 %v735, %v797
    %v799 = vrcp.pop %v796
    %v800 = vmul.f32 %v738, %v799
    %802 = vset.pattern.permute.xlu0 16
    %803 = vperm.xlu0 %802, %v668
    %v804 = vpop.permute.xlu0 %803
    %v808 = vlaneseq
    %v809 = vshrl.u32 %v808, 7
    %v810 = vsub.s32 %v319, %v809
    %v811 = vrot.slane %v798, %v810
    %v812 = vlaneseq
    %v813 = vshrl.u32 %v812, 7
    %v814 = vsub.s32 %v319, %v813
    %v815 = vrot.slane %v800, %v814
    %v816 = vsel %vm328, %v815, %v811
    %v818 = vmul.f32 %v804, %v816
    %v819 = vsel %vm332, %v818, -inf
    %820 = vmax.xlane.f32.xlu0 %v819
    %v821 = vpop.xlane.xlu0 %820
    %v822 = vsub.f32 %v818, %v821
    %v823 = vmul.f32 %v822, 1.442695
    %v824 = vpow.pop %v823
    %v825 = vsel %vm332, %v824, 0.0
    %826 = vadd.xlane.f32.xlu0 %v825
    %v827 = vpop.xlane.xlu0 %826
    %v828 = vrcp.pop %v827
    %v829 = vmul.f32 %v824, %v828
    %831 = vset.pattern.permute.xlu0 17
    %832 = vperm.xlu0 %831, %v674
    %v833 = vpop.permute.xlu0 %832
    %v835 = vmul.f32 %v833, %v829
    %v836 = vsub.f32 1.0, %v674
    %838 = vset.pattern.permute.xlu0 17
    %839 = vperm.xlu0 %838, %v836
    %v840 = vpop.permute.xlu0 %839
    %v842 = vmul.f32 %v840, %v466
    %v843 = vadd.f32 %v835, %v842
    %v845 = vsel %vm358, %v843, 0
    %847 = vmatprep.subr.mxu0 0.0
    %848 = vmatpush1.msra.mxu0 %v74
    %849 = vmatprep.subr.mxu0 0.0
    %850 = vmatpush1.msra.mxu0 0.0
    %851 = vmatprep.subr.mxu0 0.0
    %852 = vmatpush1.msra.mxu0 0.0
    %853 = vmatprep.subr.mxu0 0.0
    %854 = vmatpush1.msra.mxu0 0.0
    %855 = vmatprep.subr.mxu0 0.0
    %856 = vmatpush1.msra.mxu0 0.0
    %857 = vmatprep.subr.mxu0 0.0
    %858 = vmatpush1.msra.mxu0 0.0
    %859 = vmatprep.subr.mxu0 0.0
    %860 = vmatpush1.msra.mxu0 0.0
    %861 = vmatprep.subr.mxu0 0.0
    %862 = vmatpush1.msra.mxu0 0.0
    %863 = vmatprep.subr.mxu0 0.0
    %864 = vmatpush1.msra.mxu0 0.0
    %865 = vmatprep.subr.mxu0 0.0
    %866 = vmatpush1.msra.mxu0 0.0
    %867 = vmatprep.subr.mxu0 0.0
    %868 = vmatpush1.msra.mxu0 0.0
    %869 = vmatprep.subr.mxu0 0.0
    %870 = vmatpush1.msra.mxu0 0.0
    %871 = vmatprep.subr.mxu0 0.0
    %872 = vmatpush1.msra.mxu0 0.0
    %873 = vmatprep.subr.mxu0 0.0
    %874 = vmatpush1.msra.mxu0 0.0
    %875 = vmatprep.subr.mxu0 0.0
    %876 = vmatpush1.msra.mxu0 0.0
    %877 = vmatprep.subr.mxu0 0.0
    %878 = vmatpush1.msra.mxu0 0.0
    %879 = vmatprep.subr.mxu0 0.0
    %880 = vmatpush1.msra.mxu0 0.0
    %881 = vmatprep.subr.mxu0 0.0
    %882 = vmatpush1.msra.mxu0 0.0
    %883 = vmatprep.subr.mxu0 0.0
    %884 = vmatpush1.msra.mxu0 0.0
    %885 = vmatprep.subr.mxu0 0.0
    %886 = vmatpush1.msra.mxu0 0.0
    %887 = vmatprep.subr.mxu0 0.0
    %888 = vmatpush1.msra.mxu0 0.0
    %889 = vmatprep.subr.mxu0 0.0
    %890 = vmatpush1.msra.mxu0 0.0
    %891 = vmatprep.subr.mxu0 0.0
    %892 = vmatpush1.msra.mxu0 0.0
    %893 = vmatprep.subr.mxu0 0.0
    %894 = vmatpush1.msra.mxu0 0.0
    %895 = vmatprep.subr.mxu0 0.0
    %896 = vmatpush1.msra.mxu0 0.0
    %897 = vmatprep.subr.mxu0 0.0
    %898 = vmatpush1.msra.mxu0 0.0
    %899 = vmatprep.subr.mxu0 0.0
    %900 = vmatpush1.msra.mxu0 0.0
    %901 = vmatprep.subr.mxu0 0.0
    %902 = vmatpush1.msra.mxu0 0.0
    %903 = vmatprep.subr.mxu0 0.0
    %904 = vmatpush1.msra.mxu0 0.0
    %905 = vmatprep.subr.mxu0 0.0
    %906 = vmatpush1.msra.mxu0 0.0
    %907 = vmatprep.subr.mxu0 0.0
    %908 = vmatpush1.msra.mxu0 0.0
    %909 = vmatprep.subr.mxu0 0.0
    %910 = vmatpush1.msra.mxu0 0.0
    %911 = vmatprep.mubr.f32.mxu0 0.0
    %912 = vmatmul.mubr.f32.gmra.mrb[0].mxu0 %v845
    %v913 = vpop.f32.mrb[0].mxu0
    %v914 = vadd.f32 0.0, %v913
    %v915 = vpop.f32.mrb[0].mxu0
    %916 = vdwg.mxu0
    %918 = vset.pattern.permute.xlu0 18
    %919 = vperm.xlu0 %918, %v690
    %v920 = vpop.permute.xlu0 %919
    %v922 = vmul.f32 %v914, %v920
    %923 = vset.pattern.permute.xlu0 19
    %924 = vperm.xlu0 %923, %v690
    %v925 = vpop.permute.xlu0 %924
    %v927 = vmul.f32 %v843, %v925
    %v928 = vadd.f32 %v922, %v927
    %929 = vset.pattern.permute.xlu0 20
    %930 = vperm.xlu0 %929, %v690
    %v931 = vpop.permute.xlu0 %930
    %v933 = vmul.f32 %v914, %v931
    %935 = vrot.lane.b32.xlu0 %v933, 120
    %v936 = vpop.permute.xlu0 %935
    %v938 = vadd.f32 %v928, %v936
    %v939 = vmax.f32 %v938, 0.0
    %941 = vset.pattern.permute.xlu0 21
    %942 = vperm.xlu0 %941, %v675
    %v943 = vpop.permute.xlu0 %942
    %v945 = vpow.f32 %v939, %v943
    %v946 = vsel %vm332, %v945, 0.0
    %947 = vadd.xlane.f32.xlu0 %v946
    %v948 = vpop.xlane.xlu0 %947
    %v949 = vadd.f32 %v948, 1e-16
    %v950 = vrcp.pop %v949
    %v951 = vmul.f32 %v945, %v950
    %s952 = scalar_lea.vmem [#allocation8], 2
    %953 = vst.msk [vmem:[%s952] sm:$0x3] %vm332, %v951
    %v954 = vlaneseq
    %v955 = vshrl.u32 %v954, 7
    %v956 = vsub.s32 0, %v955
    %v957 = vrot.slane %v951, %v956
    %959 = vbcast.lane.b32.xlu0 %v957, 256
    %v960 = vpop.permute.xlu0 %959
    %v961 = vlaneseq
    %v962 = vshrl.u32 %v961, 7
    %v963 = vsub.s32 1, %v962
    %v964 = vrot.slane %v951, %v963
    %966 = vbcast.lane.b32.xlu0 %v964, 256
    %v967 = vpop.permute.xlu0 %966
    %v969 = vunpack.c.l.s4 1966171168
    %v970 = vunpack.c.0.s8 %v969
    %v971 = vlaneseq
    %v972 = vshrl.u32 %v971, 7
    %v973 = vsub.s32 %v970, %v972
    %v974 = vrot.slane %v674, %v973
    %v975 = vcombine.high %v974, %v974
    %v977 = vunpack.c.l.s4 1966171168
    %v978 = vunpack.c.0.s8 %v977
    %v979 = vlaneseq
    %v980 = vshrl.u32 %v979, 7
    %v981 = vsub.s32 %v978, %v980
    %v982 = vrot.slane %v974, %v981
    %v984 = vunpack.c.l.s4 1966171168
    %v985 = vunpack.c.0.s8 %v984
    %v986 = vlaneseq
    %v987 = vshrl.u32 %v986, 7
    %v988 = vsub.s32 %v985, %v987
    %v989 = vrot.slane %v975, %v988
    %v990 = vlaneseq
    %v991 = vshrl.u32 %v990, 7
    %v992 = vsub.s32 0, %v991
    %v993 = vrot.slane %v982, %v992
    %v994 = vlaneseq
    %v995 = vshrl.u32 %v994, 7
    %v996 = vsub.s32 0, %v995
    %v997 = vrot.slane %v989, %v996
    %v1000 = vmul.f32 %v960, %v993
    %v1001 = vmul.f32 %v967, %v997
    %v1004 = vunpack.c.l.s4 1966171168
    %v1005 = vunpack.c.0.s8 %v1004
    %v1006 = vlaneseq
    %v1007 = vshrl.u32 %v1006, 7
    %v1008 = vsub.s32 %v1005, %v1007
    %v1009 = vrot.slane %v650, %v1008
    %v1010 = vcombine.high %v1009, %v1009
    %v1012 = vunpack.c.l.s4 1966171168
    %v1013 = vunpack.c.0.s8 %v1012
    %v1014 = vlaneseq
    %v1015 = vshrl.u32 %v1014, 7
    %v1016 = vsub.s32 %v1013, %v1015
    %v1017 = vrot.slane %v1009, %v1016
    %v1019 = vunpack.c.l.s4 1966171168
    %v1020 = vunpack.c.0.s8 %v1019
    %v1021 = vlaneseq
    %v1022 = vshrl.u32 %v1021, 7
    %v1023 = vsub.s32 %v1020, %v1022
    %v1024 = vrot.slane %v1010, %v1023
    %v1025 = vlaneseq
    %v1026 = vshrl.u32 %v1025, 7
    %v1027 = vsub.s32 0, %v1026
    %v1028 = vrot.slane %v1017, %v1027
    %v1029 = vlaneseq
    %v1030 = vshrl.u32 %v1029, 7
    %v1031 = vsub.s32 0, %v1030
    %v1032 = vrot.slane %v1024, %v1031
    %v1035 = vmul.f32 %v960, %v1028
    %v1036 = vmul.f32 %v967, %v1032
    %v1037 = vsub.f32 1.0, %v1000
    %v1038 = vsub.f32 1.0, %v1001
    %1041 = vrot.lane.b32.xlu0 %v1037, 96
    %v1042 = vpop.permute.xlu0 %1041
    %1043 = vrot.lane.b32.xlu0 %v1038, 96
    %v1044 = vpop.permute.xlu0 %1043
    %v1047 = vmul.f32 %v691, %v1042
    %v1048 = vmul.f32 %v692, %v1044
    %1051 = vrot.lane.b32.xlu0 %v1035, 80
    %v1052 = vpop.permute.xlu0 %1051
    %1053 = vrot.lane.b32.xlu0 %v1036, 80
    %v1054 = vpop.permute.xlu0 %1053
    %v1057 = vadd.f32 %v1047, %v1052
    %v1058 = vadd.f32 %v1048, %v1054
    %1059 = vst.msk [vmem:[#allocation9] sm:$0xff] %vm66, %v1057
    %1060 = vst.msk [vmem:[#allocation9 + $0x8] sm:$0xff] %vm66, %v1058
    %s1061 = scalar_lea.vmem %s0, 4
    %v1062 = vld [vmem:[%s1061] sm:$0x3]
    %v1064 = vsel %vm83, %v1062, 0
    %1066 = vmatprep.subr.mxu0 0.0
    %1067 = vmatpush1.msra.mxu0 %v69
    %1068 = vmatprep.subr.mxu0 0.0
    %1069 = vmatpush1.msra.mxu0 %v70
    %1070 = vmatprep.subr.mxu0 0.0
    %1071 = vmatpush1.msra.mxu0 %v71
    %1072 = vmatprep.subr.mxu0 0.0
    %1073 = vmatpush1.msra.mxu0 %v72
    %1074 = vmatprep.subr.mxu0 0.0
    %1075 = vmatpush1.msra.mxu0 0.0
    %1076 = vmatprep.subr.mxu0 0.0
    %1077 = vmatpush1.msra.mxu0 0.0
    %1078 = vmatprep.subr.mxu0 0.0
    %1079 = vmatpush1.msra.mxu0 0.0
    %1080 = vmatprep.subr.mxu0 0.0
    %1081 = vmatpush1.msra.mxu0 0.0
    %1082 = vmatprep.subr.mxu0 0.0
    %1083 = vmatpush1.msra.mxu0 0.0
    %1084 = vmatprep.subr.mxu0 0.0
    %1085 = vmatpush1.msra.mxu0 0.0
    %1086 = vmatprep.subr.mxu0 0.0
    %1087 = vmatpush1.msra.mxu0 0.0
    %1088 = vmatprep.subr.mxu0 0.0
    %1089 = vmatpush1.msra.mxu0 0.0
    %1090 = vmatprep.subr.mxu0 0.0
    %1091 = vmatpush1.msra.mxu0 0.0
    %1092 = vmatprep.subr.mxu0 0.0
    %1093 = vmatpush1.msra.mxu0 0.0
    %1094 = vmatprep.subr.mxu0 0.0
    %1095 = vmatpush1.msra.mxu0 0.0
    %1096 = vmatprep.subr.mxu0 0.0
    %1097 = vmatpush1.msra.mxu0 0.0
    %1098 = vmatprep.subr.mxu0 0.0
    %1099 = vmatpush1.msra.mxu0 0.0
    %1100 = vmatprep.subr.mxu0 0.0
    %1101 = vmatpush1.msra.mxu0 0.0
    %1102 = vmatprep.subr.mxu0 0.0
    %1103 = vmatpush1.msra.mxu0 0.0
    %1104 = vmatprep.subr.mxu0 0.0
    %1105 = vmatpush1.msra.mxu0 0.0
    %1106 = vmatprep.subr.mxu0 0.0
    %1107 = vmatpush1.msra.mxu0 0.0
    %1108 = vmatprep.subr.mxu0 0.0
    %1109 = vmatpush1.msra.mxu0 0.0
    %1110 = vmatprep.subr.mxu0 0.0
    %1111 = vmatpush1.msra.mxu0 0.0
    %1112 = vmatprep.subr.mxu0 0.0
    %1113 = vmatpush1.msra.mxu0 0.0
    %1114 = vmatprep.subr.mxu0 0.0
    %1115 = vmatpush1.msra.mxu0 0.0
    %1116 = vmatprep.subr.mxu0 0.0
    %1117 = vmatpush1.msra.mxu0 0.0
    %1118 = vmatprep.subr.mxu0 0.0
    %1119 = vmatpush1.msra.mxu0 0.0
    %1120 = vmatprep.subr.mxu0 0.0
    %1121 = vmatpush1.msra.mxu0 0.0
    %1122 = vmatprep.subr.mxu0 0.0
    %1123 = vmatpush1.msra.mxu0 0.0
    %1124 = vmatprep.subr.mxu0 0.0
    %1125 = vmatpush1.msra.mxu0 0.0
    %1126 = vmatprep.subr.mxu0 0.0
    %1127 = vmatpush1.msra.mxu0 0.0
    %1128 = vmatprep.subr.mxu0 0.0
    %1129 = vmatpush1.msra.mxu0 0.0
    %1130 = vmatprep.mubr.f32.mxu0 0.0
    %1131 = vmatmul.mubr.f32.gmra.mrb[0].mxu0 %v1064
    %v1132 = vpop.f32.mrb[0].mxu0
    %v1133 = vadd.f32 %v81, %v1132
    %v1134 = vpop.f32.mrb[0].mxu0
    %1135 = vdwg.mxu0
    %v1136 = vtanh.pop %v1133
    %v1137 = vmax.f32 %v1133, 0.0
    %vm1138 = vcmp.ne.f32.partialorder %v1133, %v1133
    %v1139 = vadd.f32 %v1133, 0.0
    %v1140 = vand.u32 2147483647, %v1133
    %v1141 = vsub.f32 0.0, %v1140
    %v1142 = vmul.f32 %v1141, 1.442695
    %v1143 = vpow.pop %v1142
    %v1144 = vadd.f32 %v1143, 1.0
    %v1145 = vlog2.pop %v1144
    %v1146 = vmul.f32 %v1145, 0.6931472
    %v1147 = vmul.f32 -0.5, %v1143
    %v1148 = vadd.f32 %v1147, 1.0
    %v1149 = vmul.f32 %v1148, %v1143
    %v1150 = vand.u32 2147483647, %v1143
    %vm1151 = vcmp.lt.f32.partialorder %v1150, 0.0004427343
    %v1152 = vsel %vm1151, %v1149, %v1146
    %v1153 = vadd.f32 %v1137, %v1152
    %v1154 = vsel %vm1138, %v1139, %v1153
    %v1155 = vxor.u32 %v1133, 2147483648
    %v1156 = vmul.f32 %v1155, 1.442695
    %v1157 = vpow.pop %v1156
    %v1158 = vadd.f32 %v1157, 1.0
    %v1159 = vrcp.pop %v1158
    %v1160 = vmul.f32 1.0, %v1159
    %v1161 = vadd.f32 %v1154, 1.0
    %v1162 = vsel %vm183, %v1133, -inf
    %1163 = vmax.xlane.f32.xlu0 %v1162
    %v1164 = vpop.xlane.xlu0 %1163
    %v1165 = vsub.f32 %v1133, %v1164
    %v1166 = vmul.f32 %v1165, 1.442695
    %v1167 = vpow.pop %v1166
    %1169 = vrot.lane.b32.xlu0 %v1167, 110
    %v1170 = vpop.permute.xlu0 %1169
    %v1172 = vsel %vm194, %v1170, 0.0
    %1173 = vadd.xlane.f32.xlu0 %v1172
    %v1174 = vpop.xlane.xlu0 %1173
    %v1175 = vrcp.pop %v1174
    %v1176 = vmul.f32 %v1167, %v1175
    %v1177 = vld [vmem:[#allocation9] sm:$0xff]
    %v1178 = vld [vmem:[#allocation9 + $0x8] sm:$0xff]
    %v1179 = vadd.f32 %v1177, 1e-16
    %v1180 = vadd.f32 %v1178, 1e-16
    %v1181 = vadd.f32 %v1136, 1e-16
    %v1184 = vunpack.c.l.s4 1966171168
    %v1185 = vunpack.c.0.s8 %v1184
    %v1186 = vlaneseq
    %v1187 = vshrl.u32 %v1186, 7
    %v1188 = vsub.s32 %v1185, %v1187
    %v1189 = vrot.slane %v1181, %v1188
    %v1190 = vcombine.high %v1189, %v1189
    %v1192 = vunpack.c.l.s4 1966171168
    %v1193 = vunpack.c.0.s8 %v1192
    %v1194 = vlaneseq
    %v1195 = vshrl.u32 %v1194, 7
    %v1196 = vsub.s32 %v1193, %v1195
    %v1197 = vrot.slane %v1189, %v1196
    %v1199 = vunpack.c.l.s4 1966171168
    %v1200 = vunpack.c.0.s8 %v1199
    %v1201 = vlaneseq
    %v1202 = vshrl.u32 %v1201, 7
    %v1203 = vsub.s32 %v1200, %v1202
    %v1204 = vrot.slane %v1190, %v1203
    %v1207 = vlaneseq
    %v1208 = vshrl.u32 %v1207, 7
    %v1209 = vsub.s32 0, %v1208
    %v1210 = vrot.slane %v1197, %v1209
    %v1211 = vlaneseq
    %v1212 = vshrl.u32 %v1211, 7
    %v1213 = vsub.s32 0, %v1212
    %v1214 = vrot.slane %v1204, %v1213
    %v1217 = vmul.f32 %v1179, %v1210
    %v1218 = vmul.f32 %v1180, %v1214
    %v1219 = vsel %vm66, %v1217, 0.0
    %1220 = vadd.xlane.f32.xlu0 %v1219
    %v1221 = vpop.xlane.xlu0 %1220
    %v1222 = vsel %vm66, %v1218, 0.0
    %1223 = vadd.xlane.f32.xlu0 %v1222
    %v1224 = vpop.xlane.xlu0 %1223
    %v1225 = vmul.f32 %v1179, %v1179
    %v1226 = vmul.f32 %v1180, %v1180
    %v1227 = vsel %vm66, %v1225, 0.0
    %1228 = vadd.xlane.f32.xlu0 %v1227
    %v1229 = vpop.xlane.xlu0 %1228
    %v1230 = vsel %vm66, %v1226, 0.0
    %1231 = vadd.xlane.f32.xlu0 %v1230
    %v1232 = vpop.xlane.xlu0 %1231
    %v1233 = vrsqrt.pop %v1229
    %v1234 = vmul.f32 %v1229, %v1233
    %vm1235 = vcmp.eq.f32.partialorder %v1229, inf
    %v1236 = vsel %vm1235, %v1229, %v1234
    %vm1237 = vcmp.eq.f32.partialorder %v1229, 0.0
    %v1238 = vand.u32 %v1229, 2147483648
    %v1239 = vsel %vm1237, %v1238, %v1236
    %v1240 = vrsqrt.pop %v1232
    %v1241 = vmul.f32 %v1232, %v1240
    %vm1242 = vcmp.eq.f32.partialorder %v1232, inf
    %v1243 = vsel %vm1242, %v1232, %v1241
    %vm1244 = vcmp.eq.f32.partialorder %v1232, 0.0
    %v1245 = vand.u32 %v1232, 2147483648
    %v1246 = vsel %vm1244, %v1245, %v1243
    %v1247 = vmul.f32 %v1197, %v1197
    %v1248 = vmul.f32 %v1204, %v1204
    %v1249 = vsel %vm272, %v1247, 0.0
    %1250 = vadd.xlane.f32.xlu0 %v1249
    %v1251 = vpop.xlane.xlu0 %1250
    %v1252 = vsel %vm272, %v1248, 0.0
    %1253 = vadd.xlane.f32.xlu0 %v1252
    %v1254 = vpop.xlane.xlu0 %1253
    %v1255 = vrsqrt.pop %v1251
    %v1256 = vmul.f32 %v1251, %v1255
    %vm1257 = vcmp.eq.f32.partialorder %v1251, inf
    %v1258 = vsel %vm1257, %v1251, %v1256
    %vm1259 = vcmp.eq.f32.partialorder %v1251, 0.0
    %v1260 = vand.u32 %v1251, 2147483648
    %v1261 = vsel %vm1259, %v1260, %v1258
    %v1262 = vrsqrt.pop %v1254
    %v1263 = vmul.f32 %v1254, %v1262
    %vm1264 = vcmp.eq.f32.partialorder %v1254, inf
    %v1265 = vsel %vm1264, %v1254, %v1263
    %vm1266 = vcmp.eq.f32.partialorder %v1254, 0.0
    %v1267 = vand.u32 %v1254, 2147483648
    %v1268 = vsel %vm1266, %v1267, %v1265
    %v1269 = vmax.f32 %v1239, 1e-08
    %v1270 = vmax.f32 %v1246, 1e-08
    %v1271 = vmax.f32 %v1261, 1e-08
    %v1272 = vmax.f32 %v1268, 1e-08
    %v1273 = vlaneseq
    %v1274 = vshrl.u32 %v1273, 7
    %v1275 = vsub.s32 0, %v1274
    %v1276 = vrot.slane %v1271, %v1275
    %v1277 = vlaneseq
    %v1278 = vshrl.u32 %v1277, 7
    %v1279 = vsub.s32 0, %v1278
    %v1280 = vrot.slane %v1272, %v1279
    %v1281 = vmul.f32 %v1269, %v1276
    %v1282 = vmul.f32 %v1270, %v1280
    %v1283 = vrcp.pop %v1281
    %v1284 = vmul.f32 %v1221, %v1283
    %v1285 = vrcp.pop %v1282
    %v1286 = vmul.f32 %v1224, %v1285
    %1288 = vset.pattern.permute.xlu0 16
    %1289 = vperm.xlu0 %1288, %v1154
    %v1290 = vpop.permute.xlu0 %1289
    %v1294 = vlaneseq
    %v1295 = vshrl.u32 %v1294, 7
    %v1296 = vsub.s32 %v319, %v1295
    %v1297 = vrot.slane %v1284, %v1296
    %v1298 = vlaneseq
    %v1299 = vshrl.u32 %v1298, 7
    %v1300 = vsub.s32 %v319, %v1299
    %v1301 = vrot.slane %v1286, %v1300
    %v1302 = vsel %vm328, %v1301, %v1297
    %v1304 = vmul.f32 %v1290, %v1302
    %v1305 = vsel %vm332, %v1304, -inf
    %1306 = vmax.xlane.f32.xlu0 %v1305
    %v1307 = vpop.xlane.xlu0 %1306
    %v1308 = vsub.f32 %v1304, %v1307
    %v1309 = vmul.f32 %v1308, 1.442695
    %v1310 = vpow.pop %v1309
    %v1311 = vsel %vm332, %v1310, 0.0
    %1312 = vadd.xlane.f32.xlu0 %v1311
    %v1313 = vpop.xlane.xlu0 %1312
    %v1314 = vrcp.pop %v1313
    %v1315 = vmul.f32 %v1310, %v1314
    %1317 = vset.pattern.permute.xlu0 17
    %1318 = vperm.xlu0 %1317, %v1160
    %v1319 = vpop.permute.xlu0 %1318
    %v1321 = vmul.f32 %v1319, %v1315
    %v1322 = vsub.f32 1.0, %v1160
    %1324 = vset.pattern.permute.xlu0 17
    %1325 = vperm.xlu0 %1324, %v1322
    %v1326 = vpop.permute.xlu0 %1325
    %v1328 = vmul.f32 %v1326, %v951
    %v1329 = vadd.f32 %v1321, %v1328
    %v1331 = vsel %vm358, %v1329, 0
    %1333 = vmatprep.subr.mxu0 0.0
    %1334 = vmatpush1.msra.mxu0 %v74
    %1335 = vmatprep.subr.mxu0 0.0
    %1336 = vmatpush1.msra.mxu0 0.0
    %1337 = vmatprep.subr.mxu0 0.0
    %1338 = vmatpush1.msra.mxu0 0.0
    %1339 = vmatprep.subr.mxu0 0.0
    %1340 = vmatpush1.msra.mxu0 0.0
    %1341 = vmatprep.subr.mxu0 0.0
    %1342 = vmatpush1.msra.mxu0 0.0
    %1343 = vmatprep.subr.mxu0 0.0
    %1344 = vmatpush1.msra.mxu0 0.0
    %1345 = vmatprep.subr.mxu0 0.0
    %1346 = vmatpush1.msra.mxu0 0.0
    %1347 = vmatprep.subr.mxu0 0.0
    %1348 = vmatpush1.msra.mxu0 0.0
    %1349 = vmatprep.subr.mxu0 0.0
    %1350 = vmatpush1.msra.mxu0 0.0
    %1351 = vmatprep.subr.mxu0 0.0
    %1352 = vmatpush1.msra.mxu0 0.0
    %1353 = vmatprep.subr.mxu0 0.0
    %1354 = vmatpush1.msra.mxu0 0.0
    %1355 = vmatprep.subr.mxu0 0.0
    %1356 = vmatpush1.msra.mxu0 0.0
    %1357 = vmatprep.subr.mxu0 0.0
    %1358 = vmatpush1.msra.mxu0 0.0
    %1359 = vmatprep.subr.mxu0 0.0
    %1360 = vmatpush1.msra.mxu0 0.0
    %1361 = vmatprep.subr.mxu0 0.0
    %1362 = vmatpush1.msra.mxu0 0.0
    %1363 = vmatprep.subr.mxu0 0.0
    %1364 = vmatpush1.msra.mxu0 0.0
    %1365 = vmatprep.subr.mxu0 0.0
    %1366 = vmatpush1.msra.mxu0 0.0
    %1367 = vmatprep.subr.mxu0 0.0
    %1368 = vmatpush1.msra.mxu0 0.0
    %1369 = vmatprep.subr.mxu0 0.0
    %1370 = vmatpush1.msra.mxu0 0.0
    %1371 = vmatprep.subr.mxu0 0.0
    %1372 = vmatpush1.msra.mxu0 0.0
    %1373 = vmatprep.subr.mxu0 0.0
    %1374 = vmatpush1.msra.mxu0 0.0
    %1375 = vmatprep.subr.mxu0 0.0
    %1376 = vmatpush1.msra.mxu0 0.0
    %1377 = vmatprep.subr.mxu0 0.0
    %1378 = vmatpush1.msra.mxu0 0.0
    %1379 = vmatprep.subr.mxu0 0.0
    %1380 = vmatpush1.msra.mxu0 0.0
    %1381 = vmatprep.subr.mxu0 0.0
    %1382 = vmatpush1.msra.mxu0 0.0
    %1383 = vmatprep.subr.mxu0 0.0
    %1384 = vmatpush1.msra.mxu0 0.0
    %1385 = vmatprep.subr.mxu0 0.0
    %1386 = vmatpush1.msra.mxu0 0.0
    %1387 = vmatprep.subr.mxu0 0.0
    %1388 = vmatpush1.msra.mxu0 0.0
    %1389 = vmatprep.subr.mxu0 0.0
    %1390 = vmatpush1.msra.mxu0 0.0
    %1391 = vmatprep.subr.mxu0 0.0
    %1392 = vmatpush1.msra.mxu0 0.0
    %1393 = vmatprep.subr.mxu0 0.0
    %1394 = vmatpush1.msra.mxu0 0.0
    %1395 = vmatprep.subr.mxu0 0.0
    %1396 = vmatpush1.msra.mxu0 0.0
    %1397 = vmatprep.mubr.f32.mxu0 0.0
    %1398 = vmatmul.mubr.f32.gmra.mrb[0].mxu0 %v1331
    %v1399 = vpop.f32.mrb[0].mxu0
    %v1400 = vadd.f32 0.0, %v1399
    %v1401 = vpop.f32.mrb[0].mxu0
    %1402 = vdwg.mxu0
    %1404 = vset.pattern.permute.xlu0 18
    %1405 = vperm.xlu0 %1404, %v1176
    %v1406 = vpop.permute.xlu0 %1405
    %v1408 = vmul.f32 %v1400, %v1406
    %1409 = vset.pattern.permute.xlu0 19
    %1410 = vperm.xlu0 %1409, %v1176
    %v1411 = vpop.permute.xlu0 %1410
    %v1413 = vmul.f32 %v1329, %v1411
    %v1414 = vadd.f32 %v1408, %v1413
    %1415 = vset.pattern.permute.xlu0 20
    %1416 = vperm.xlu0 %1415, %v1176
    %v1417 = vpop.permute.xlu0 %1416
    %v1419 = vmul.f32 %v1400, %v1417
    %1421 = vrot.lane.b32.xlu0 %v1419, 120
    %v1422 = vpop.permute.xlu0 %1421
    %v1424 = vadd.f32 %v1414, %v1422
    %v1425 = vmax.f32 %v1424, 0.0
    %1427 = vset.pattern.permute.xlu0 21
    %1428 = vperm.xlu0 %1427, %v1161
    %v1429 = vpop.permute.xlu0 %1428
    %v1431 = vpow.f32 %v1425, %v1429
    %v1432 = vsel %vm332, %v1431, 0.0
    %1433 = vadd.xlane.f32.xlu0 %v1432
    %v1434 = vpop.xlane.xlu0 %1433
    %v1435 = vadd.f32 %v1434, 1e-16
    %v1436 = vrcp.pop %v1435
    %v1437 = vmul.f32 %v1431, %v1436
    %s1438 = scalar_lea.vmem [#allocation8], 4
    %1439 = vst.msk [vmem:[%s1438] sm:$0x3] %vm332, %v1437
    %v1440 = vlaneseq
    %v1441 = vshrl.u32 %v1440, 7
    %v1442 = vsub.s32 0, %v1441
    %v1443 = vrot.slane %v1437, %v1442
    %1445 = vbcast.lane.b32.xlu0 %v1443, 256
    %v1446 = vpop.permute.xlu0 %1445
    %v1447 = vlaneseq
    %v1448 = vshrl.u32 %v1447, 7
    %v1449 = vsub.s32 1, %v1448
    %v1450 = vrot.slane %v1437, %v1449
    %1452 = vbcast.lane.b32.xlu0 %v1450, 256
    %v1453 = vpop.permute.xlu0 %1452
    %v1455 = vunpack.c.l.s4 1966171168
    %v1456 = vunpack.c.0.s8 %v1455
    %v1457 = vlaneseq
    %v1458 = vshrl.u32 %v1457, 7
    %v1459 = vsub.s32 %v1456, %v1458
    %v1460 = vrot.slane %v1160, %v1459
    %v1461 = vcombine.high %v1460, %v1460
    %v1463 = vunpack.c.l.s4 1966171168
    %v1464 = vunpack.c.0.s8 %v1463
    %v1465 = vlaneseq
    %v1466 = vshrl.u32 %v1465, 7
    %v1467 = vsub.s32 %v1464, %v1466
    %v1468 = vrot.slane %v1460, %v1467
    %v1470 = vunpack.c.l.s4 1966171168
    %v1471 = vunpack.c.0.s8 %v1470
    %v1472 = vlaneseq
    %v1473 = vshrl.u32 %v1472, 7
    %v1474 = vsub.s32 %v1471, %v1473
    %v1475 = vrot.slane %v1461, %v1474
    %v1476 = vlaneseq
    %v1477 = vshrl.u32 %v1476, 7
    %v1478 = vsub.s32 0, %v1477
    %v1479 = vrot.slane %v1468, %v1478
    %v1480 = vlaneseq
    %v1481 = vshrl.u32 %v1480, 7
    %v1482 = vsub.s32 0, %v1481
    %v1483 = vrot.slane %v1475, %v1482
    %v1486 = vmul.f32 %v1446, %v1479
    %v1487 = vmul.f32 %v1453, %v1483
    %v1490 = vunpack.c.l.s4 1966171168
    %v1491 = vunpack.c.0.s8 %v1490
    %v1492 = vlaneseq
    %v1493 = vshrl.u32 %v1492, 7
    %v1494 = vsub.s32 %v1491, %v1493
    %v1495 = vrot.slane %v1136, %v1494
    %v1496 = vcombine.high %v1495, %v1495
    %v1498 = vunpack.c.l.s4 1966171168
    %v1499 = vunpack.c.0.s8 %v1498
    %v1500 = vlaneseq
    %v1501 = vshrl.u32 %v1500, 7
    %v1502 = vsub.s32 %v1499, %v1501
    %v1503 = vrot.slane %v1495, %v1502
    %v1505 = vunpack.c.l.s4 1966171168
    %v1506 = vunpack.c.0.s8 %v1505
    %v1507 = vlaneseq
    %v1508 = vshrl.u32 %v1507, 7
    %v1509 = vsub.s32 %v1506, %v1508
    %v1510 = vrot.slane %v1496, %v1509
    %v1511 = vlaneseq
    %v1512 = vshrl.u32 %v1511, 7
    %v1513 = vsub.s32 0, %v1512
    %v1514 = vrot.slane %v1503, %v1513
    %v1515 = vlaneseq
    %v1516 = vshrl.u32 %v1515, 7
    %v1517 = vsub.s32 0, %v1516
    %v1518 = vrot.slane %v1510, %v1517
    %v1521 = vmul.f32 %v1446, %v1514
    %v1522 = vmul.f32 %v1453, %v1518
    %v1523 = vsub.f32 1.0, %v1486
    %v1524 = vsub.f32 1.0, %v1487
    %1527 = vrot.lane.b32.xlu0 %v1523, 96
    %v1528 = vpop.permute.xlu0 %1527
    %1529 = vrot.lane.b32.xlu0 %v1524, 96
    %v1530 = vpop.permute.xlu0 %1529
    %v1533 = vmul.f32 %v1177, %v1528
    %v1534 = vmul.f32 %v1178, %v1530
    %1537 = vrot.lane.b32.xlu0 %v1521, 80
    %v1538 = vpop.permute.xlu0 %1537
    %1539 = vrot.lane.b32.xlu0 %v1522, 80
    %v1540 = vpop.permute.xlu0 %1539
    %v1543 = vadd.f32 %v1533, %v1538
    %v1544 = vadd.f32 %v1534, %v1540
    %1545 = vst.msk [vmem:[#allocation9] sm:$0xff] %vm66, %v1543
    %1546 = vst.msk [vmem:[#allocation9 + $0x8] sm:$0xff] %vm66, %v1544
    %s1547 = scalar_lea.vmem %s0, 6
    %v1548 = vld [vmem:[%s1547] sm:$0x3]
    %v1550 = vsel %vm83, %v1548, 0
    %1552 = vmatprep.subr.mxu0 0.0
    %1553 = vmatpush1.msra.mxu0 %v69
    %1554 = vmatprep.subr.mxu0 0.0
    %1555 = vmatpush1.msra.mxu0 %v70
    %1556 = vmatprep.subr.mxu0 0.0
    %1557 = vmatpush1.msra.mxu0 %v71
    %1558 = vmatprep.subr.mxu0 0.0
    %1559 = vmatpush1.msra.mxu0 %v72
    %1560 = vmatprep.subr.mxu0 0.0
    %1561 = vmatpush1.msra.mxu0 0.0
    %1562 = vmatprep.subr.mxu0 0.0
    %1563 = vmatpush1.msra.mxu0 0.0
    %1564 = vmatprep.subr.mxu0 0.0
    %1565 = vmatpush1.msra.mxu0 0.0
    %1566 = vmatprep.subr.mxu0 0.0
    %1567 = vmatpush1.msra.mxu0 0.0
    %1568 = vmatprep.subr.mxu0 0.0
    %1569 = vmatpush1.msra.mxu0 0.0
    %1570 = vmatprep.subr.mxu0 0.0
    %1571 = vmatpush1.msra.mxu0 0.0
    %1572 = vmatprep.subr.mxu0 0.0
    %1573 = vmatpush1.msra.mxu0 0.0
    %1574 = vmatprep.subr.mxu0 0.0
    %1575 = vmatpush1.msra.mxu0 0.0
    %1576 = vmatprep.subr.mxu0 0.0
    %1577 = vmatpush1.msra.mxu0 0.0
    %1578 = vmatprep.subr.mxu0 0.0
    %1579 = vmatpush1.msra.mxu0 0.0
    %1580 = vmatprep.subr.mxu0 0.0
    %1581 = vmatpush1.msra.mxu0 0.0
    %1582 = vmatprep.subr.mxu0 0.0
    %1583 = vmatpush1.msra.mxu0 0.0
    %1584 = vmatprep.subr.mxu0 0.0
    %1585 = vmatpush1.msra.mxu0 0.0
    %1586 = vmatprep.subr.mxu0 0.0
    %1587 = vmatpush1.msra.mxu0 0.0
    %1588 = vmatprep.subr.mxu0 0.0
    %1589 = vmatpush1.msra.mxu0 0.0
    %1590 = vmatprep.subr.mxu0 0.0
    %1591 = vmatpush1.msra.mxu0 0.0
    %1592 = vmatprep.subr.mxu0 0.0
    %1593 = vmatpush1.msra.mxu0 0.0
    %1594 = vmatprep.subr.mxu0 0.0
    %1595 = vmatpush1.msra.mxu0 0.0
    %1596 = vmatprep.subr.mxu0 0.0
    %1597 = vmatpush1.msra.mxu0 0.0
    %1598 = vmatprep.subr.mxu0 0.0
    %1599 = vmatpush1.msra.mxu0 0.0
    %1600 = vmatprep.subr.mxu0 0.0
    %1601 = vmatpush1.msra.mxu0 0.0
    %1602 = vmatprep.subr.mxu0 0.0
    %1603 = vmatpush1.msra.mxu0 0.0
    %1604 = vmatprep.subr.mxu0 0.0
    %1605 = vmatpush1.msra.mxu0 0.0
    %1606 = vmatprep.subr.mxu0 0.0
    %1607 = vmatpush1.msra.mxu0 0.0
    %1608 = vmatprep.subr.mxu0 0.0
    %1609 = vmatpush1.msra.mxu0 0.0
    %1610 = vmatprep.subr.mxu0 0.0
    %1611 = vmatpush1.msra.mxu0 0.0
    %1612 = vmatprep.subr.mxu0 0.0
    %1613 = vmatpush1.msra.mxu0 0.0
    %1614 = vmatprep.subr.mxu0 0.0
    %1615 = vmatpush1.msra.mxu0 0.0
    %1616 = vmatprep.mubr.f32.mxu0 0.0
    %1617 = vmatmul.mubr.f32.gmra.mrb[0].mxu0 %v1550
    %v1618 = vpop.f32.mrb[0].mxu0
    %v1619 = vadd.f32 %v81, %v1618
    %v1620 = vpop.f32.mrb[0].mxu0
    %1621 = vdwg.mxu0
    %v1622 = vtanh.pop %v1619
    %v1623 = vmax.f32 %v1619, 0.0
    %vm1624 = vcmp.ne.f32.partialorder %v1619, %v1619
    %v1625 = vadd.f32 %v1619, 0.0
    %v1626 = vand.u32 2147483647, %v1619
    %v1627 = vsub.f32 0.0, %v1626
    %v1628 = vmul.f32 %v1627, 1.442695
    %v1629 = vpow.pop %v1628
    %v1630 = vadd.f32 %v1629, 1.0
    %v1631 = vlog2.pop %v1630
    %v1632 = vmul.f32 %v1631, 0.6931472
    %v1633 = vmul.f32 -0.5, %v1629
    %v1634 = vadd.f32 %v1633, 1.0
    %v1635 = vmul.f32 %v1634, %v1629
    %v1636 = vand.u32 2147483647, %v1629
    %vm1637 = vcmp.lt.f32.partialorder %v1636, 0.0004427343
    %v1638 = vsel %vm1637, %v1635, %v1632
    %v1639 = vadd.f32 %v1623, %v1638
    %v1640 = vsel %vm1624, %v1625, %v1639
    %v1641 = vxor.u32 %v1619, 2147483648
    %v1642 = vmul.f32 %v1641, 1.442695
    %v1643 = vpow.pop %v1642
    %v1644 = vadd.f32 %v1643, 1.0
    %v1645 = vrcp.pop %v1644
    %v1646 = vmul.f32 1.0, %v1645
    %v1647 = vadd.f32 %v1640, 1.0
    %v1648 = vsel %vm183, %v1619, -inf
    %1649 = vmax.xlane.f32.xlu0 %v1648
    %v1650 = vpop.xlane.xlu0 %1649
    %v1651 = vsub.f32 %v1619, %v1650
    %v1652 = vmul.f32 %v1651, 1.442695
    %v1653 = vpow.pop %v1652
    %1655 = vrot.lane.b32.xlu0 %v1653, 110
    %v1656 = vpop.permute.xlu0 %1655
    %v1658 = vsel %vm194, %v1656, 0.0
    %1659 = vadd.xlane.f32.xlu0 %v1658
    %v1660 = vpop.xlane.xlu0 %1659
    %v1661 = vrcp.pop %v1660
    %v1662 = vmul.f32 %v1653, %v1661
    %v1663 = vld [vmem:[#allocation9] sm:$0xff]
    %v1664 = vld [vmem:[#allocation9 + $0x8] sm:$0xff]
    %v1665 = vadd.f32 %v1663, 1e-16
    %v1666 = vadd.f32 %v1664, 1e-16
    %v1667 = vadd.f32 %v1622, 1e-16
    %v1670 = vunpack.c.l.s4 1966171168
    %v1671 = vunpack.c.0.s8 %v1670
    %v1672 = vlaneseq
    %v1673 = vshrl.u32 %v1672, 7
    %v1674 = vsub.s32 %v1671, %v1673
    %v1675 = vrot.slane %v1667, %v1674
    %v1676 = vcombine.high %v1675, %v1675
    %v1678 = vunpack.c.l.s4 1966171168
    %v1679 = vunpack.c.0.s8 %v1678
    %v1680 = vlaneseq
    %v1681 = vshrl.u32 %v1680, 7
    %v1682 = vsub.s32 %v1679, %v1681
    %v1683 = vrot.slane %v1675, %v1682
    %v1685 = vunpack.c.l.s4 1966171168
    %v1686 = vunpack.c.0.s8 %v1685
    %v1687 = vlaneseq
    %v1688 = vshrl.u32 %v1687, 7
    %v1689 = vsub.s32 %v1686, %v1688
    %v1690 = vrot.slane %v1676, %v1689
    %v1693 = vlaneseq
    %v1694 = vshrl.u32 %v1693, 7
    %v1695 = vsub.s32 0, %v1694
    %v1696 = vrot.slane %v1683, %v1695
    %v1697 = vlaneseq
    %v1698 = vshrl.u32 %v1697, 7
    %v1699 = vsub.s32 0, %v1698
    %v1700 = vrot.slane %v1690, %v1699
    %v1703 = vmul.f32 %v1665, %v1696
    %v1704 = vmul.f32 %v1666, %v1700
    %v1705 = vsel %vm66, %v1703, 0.0
    %1706 = vadd.xlane.f32.xlu0 %v1705
    %v1707 = vpop.xlane.xlu0 %1706
    %v1708 = vsel %vm66, %v1704, 0.0
    %1709 = vadd.xlane.f32.xlu0 %v1708
    %v1710 = vpop.xlane.xlu0 %1709
    %v1711 = vmul.f32 %v1665, %v1665
    %v1712 = vmul.f32 %v1666, %v1666
    %v1713 = vsel %vm66, %v1711, 0.0
    %1714 = vadd.xlane.f32.xlu0 %v1713
    %v1715 = vpop.xlane.xlu0 %1714
    %v1716 = vsel %vm66, %v1712, 0.0
    %1717 = vadd.xlane.f32.xlu0 %v1716
    %v1718 = vpop.xlane.xlu0 %1717
    %v1719 = vrsqrt.pop %v1715
    %v1720 = vmul.f32 %v1715, %v1719
    %vm1721 = vcmp.eq.f32.partialorder %v1715, inf
    %v1722 = vsel %vm1721, %v1715, %v1720
    %vm1723 = vcmp.eq.f32.partialorder %v1715, 0.0
    %v1724 = vand.u32 %v1715, 2147483648
    %v1725 = vsel %vm1723, %v1724, %v1722
    %v1726 = vrsqrt.pop %v1718
    %v1727 = vmul.f32 %v1718, %v1726
    %vm1728 = vcmp.eq.f32.partialorder %v1718, inf
    %v1729 = vsel %vm1728, %v1718, %v1727
    %vm1730 = vcmp.eq.f32.partialorder %v1718, 0.0
    %v1731 = vand.u32 %v1718, 2147483648
    %v1732 = vsel %vm1730, %v1731, %v1729
    %v1733 = vmul.f32 %v1683, %v1683
    %v1734 = vmul.f32 %v1690, %v1690
    %v1735 = vsel %vm272, %v1733, 0.0
    %1736 = vadd.xlane.f32.xlu0 %v1735
    %v1737 = vpop.xlane.xlu0 %1736
    %v1738 = vsel %vm272, %v1734, 0.0
    %1739 = vadd.xlane.f32.xlu0 %v1738
    %v1740 = vpop.xlane.xlu0 %1739
    %v1741 = vrsqrt.pop %v1737
    %v1742 = vmul.f32 %v1737, %v1741
    %vm1743 = vcmp.eq.f32.partialorder %v1737, inf
    %v1744 = vsel %vm1743, %v1737, %v1742
    %vm1745 = vcmp.eq.f32.partialorder %v1737, 0.0
    %v1746 = vand.u32 %v1737, 2147483648
    %v1747 = vsel %vm1745, %v1746, %v1744
    %v1748 = vrsqrt.pop %v1740
    %v1749 = vmul.f32 %v1740, %v1748
    %vm1750 = vcmp.eq.f32.partialorder %v1740, inf
    %v1751 = vsel %vm1750, %v1740, %v1749
    %vm1752 = vcmp.eq.f32.partialorder %v1740, 0.0
    %v1753 = vand.u32 %v1740, 2147483648
    %v1754 = vsel %vm1752, %v1753, %v1751
    %v1755 = vmax.f32 %v1725, 1e-08
    %v1756 = vmax.f32 %v1732, 1e-08
    %v1757 = vmax.f32 %v1747, 1e-08
    %v1758 = vmax.f32 %v1754, 1e-08
    %v1759 = vlaneseq
    %v1760 = vshrl.u32 %v1759, 7
    %v1761 = vsub.s32 0, %v1760
    %v1762 = vrot.slane %v1757, %v1761
    %v1763 = vlaneseq
    %v1764 = vshrl.u32 %v1763, 7
    %v1765 = vsub.s32 0, %v1764
    %v1766 = vrot.slane %v1758, %v1765
    %v1767 = vmul.f32 %v1755, %v1762
    %v1768 = vmul.f32 %v1756, %v1766
    %v1769 = vrcp.pop %v1767
    %v1770 = vmul.f32 %v1707, %v1769
    %v1771 = vrcp.pop %v1768
    %v1772 = vmul.f32 %v1710, %v1771
    %1774 = vset.pattern.permute.xlu0 16
    %1775 = vperm.xlu0 %1774, %v1640
    %v1776 = vpop.permute.xlu0 %1775
    %v1780 = vlaneseq
    %v1781 = vshrl.u32 %v1780, 7
    %v1782 = vsub.s32 %v319, %v1781
    %v1783 = vrot.slane %v1770, %v1782
    %v1784 = vlaneseq
    %v1785 = vshrl.u32 %v1784, 7
    %v1786 = vsub.s32 %v319, %v1785
    %v1787 = vrot.slane %v1772, %v1786
    %v1788 = vsel %vm328, %v1787, %v1783
    %v1790 = vmul.f32 %v1776, %v1788
    %v1791 = vsel %vm332, %v1790, -inf
    %1792 = vmax.xlane.f32.xlu0 %v1791
    %v1793 = vpop.xlane.xlu0 %1792
    %v1794 = vsub.f32 %v1790, %v1793
    %v1795 = vmul.f32 %v1794, 1.442695
    %v1796 = vpow.pop %v1795
    %v1797 = vsel %vm332, %v1796, 0.0
    %1798 = vadd.xlane.f32.xlu0 %v1797
    %v1799 = vpop.xlane.xlu0 %1798
    %v1800 = vrcp.pop %v1799
    %v1801 = vmul.f32 %v1796, %v1800
    %1803 = vset.pattern.permute.xlu0 17
    %1804 = vperm.xlu0 %1803, %v1646
    %v1805 = vpop.permute.xlu0 %1804
    %v1807 = vmul.f32 %v1805, %v1801
    %v1808 = vsub.f32 1.0, %v1646
    %1810 = vset.pattern.permute.xlu0 17
    %1811 = vperm.xlu0 %1810, %v1808
    %v1812 = vpop.permute.xlu0 %1811
    %v1814 = vmul.f32 %v1812, %v1437
    %v1815 = vadd.f32 %v1807, %v1814
    %v1817 = vsel %vm358, %v1815, 0
    %1819 = vmatprep.subr.mxu0 0.0
    %1820 = vmatpush1.msra.mxu0 %v74
    %1821 = vmatprep.subr.mxu0 0.0
    %1822 = vmatpush1.msra.mxu0 0.0
    %1823 = vmatprep.subr.mxu0 0.0
    %1824 = vmatpush1.msra.mxu0 0.0
    %1825 = vmatprep.subr.mxu0 0.0
    %1826 = vmatpush1.msra.mxu0 0.0
    %1827 = vmatprep.subr.mxu0 0.0
    %1828 = vmatpush1.msra.mxu0 0.0
    %1829 = vmatprep.subr.mxu0 0.0
    %1830 = vmatpush1.msra.mxu0 0.0
    %1831 = vmatprep.subr.mxu0 0.0
    %1832 = vmatpush1.msra.mxu0 0.0
    %1833 = vmatprep.subr.mxu0 0.0
    %1834 = vmatpush1.msra.mxu0 0.0
    %1835 = vmatprep.subr.mxu0 0.0
    %1836 = vmatpush1.msra.mxu0 0.0
    %1837 = vmatprep.subr.mxu0 0.0
    %1838 = vmatpush1.msra.mxu0 0.0
    %1839 = vmatprep.subr.mxu0 0.0
    %1840 = vmatpush1.msra.mxu0 0.0
    %1841 = vmatprep.subr.mxu0 0.0
    %1842 = vmatpush1.msra.mxu0 0.0
    %1843 = vmatprep.subr.mxu0 0.0
    %1844 = vmatpush1.msra.mxu0 0.0
    %1845 = vmatprep.subr.mxu0 0.0
    %1846 = vmatpush1.msra.mxu0 0.0
    %1847 = vmatprep.subr.mxu0 0.0
    %1848 = vmatpush1.msra.mxu0 0.0
    %1849 = vmatprep.subr.mxu0 0.0
    %1850 = vmatpush1.msra.mxu0 0.0
    %1851 = vmatprep.subr.mxu0 0.0
    %1852 = vmatpush1.msra.mxu0 0.0
    %1853 = vmatprep.subr.mxu0 0.0
    %1854 = vmatpush1.msra.mxu0 0.0
    %1855 = vmatprep.subr.mxu0 0.0
    %1856 = vmatpush1.msra.mxu0 0.0
    %1857 = vmatprep.subr.mxu0 0.0
    %1858 = vmatpush1.msra.mxu0 0.0
    %1859 = vmatprep.subr.mxu0 0.0
    %1860 = vmatpush1.msra.mxu0 0.0
    %1861 = vmatprep.subr.mxu0 0.0
    %1862 = vmatpush1.msra.mxu0 0.0
    %1863 = vmatprep.subr.mxu0 0.0
    %1864 = vmatpush1.msra.mxu0 0.0
    %1865 = vmatprep.subr.mxu0 0.0
    %1866 = vmatpush1.msra.mxu0 0.0
    %1867 = vmatprep.subr.mxu0 0.0
    %1868 = vmatpush1.msra.mxu0 0.0
    %1869 = vmatprep.subr.mxu0 0.0
    %1870 = vmatpush1.msra.mxu0 0.0
    %1871 = vmatprep.subr.mxu0 0.0
    %1872 = vmatpush1.msra.mxu0 0.0
    %1873 = vmatprep.subr.mxu0 0.0
    %1874 = vmatpush1.msra.mxu0 0.0
    %1875 = vmatprep.subr.mxu0 0.0
    %1876 = vmatpush1.msra.mxu0 0.0
    %1877 = vmatprep.subr.mxu0 0.0
    %1878 = vmatpush1.msra.mxu0 0.0
    %1879 = vmatprep.subr.mxu0 0.0
    %1880 = vmatpush1.msra.mxu0 0.0
    %1881 = vmatprep.subr.mxu0 0.0
    %1882 = vmatpush1.msra.mxu0 0.0
    %1883 = vmatprep.mubr.f32.mxu0 0.0
    %1884 = vmatmul.mubr.f32.gmra.mrb[0].mxu0 %v1817
    %v1885 = vpop.f32.mrb[0].mxu0
    %v1886 = vadd.f32 0.0, %v1885
    %v1887 = vpop.f32.mrb[0].mxu0
    %1888 = vdwg.mxu0
    %1890 = vset.pattern.permute.xlu0 18
    %1891 = vperm.xlu0 %1890, %v1662
    %v1892 = vpop.permute.xlu0 %1891
    %v1894 = vmul.f32 %v1886, %v1892
    %1895 = vset.pattern.permute.xlu0 19
    %1896 = vperm.xlu0 %1895, %v1662
    %v1897 = vpop.permute.xlu0 %1896
    %v1899 = vmul.f32 %v1815, %v1897
    %v1900 = vadd.f32 %v1894, %v1899
    %1901 = vset.pattern.permute.xlu0 20
    %1902 = vperm.xlu0 %1901, %v1662
    %v1903 = vpop.permute.xlu0 %1902
    %v1905 = vmul.f32 %v1886, %v1903
    %1907 = vrot.lane.b32.xlu0 %v1905, 120
    %v1908 = vpop.permute.xlu0 %1907
    %v1910 = vadd.f32 %v1900, %v1908
    %v1911 = vmax.f32 %v1910, 0.0
    %1913 = vset.pattern.permute.xlu0 21
    %1914 = vperm.xlu0 %1913, %v1647
    %v1915 = vpop.permute.xlu0 %1914
    %v1917 = vpow.f32 %v1911, %v1915
    %v1918 = vsel %vm332, %v1917, 0.0
    %1919 = vadd.xlane.f32.xlu0 %v1918
    %v1920 = vpop.xlane.xlu0 %1919
    %v1921 = vadd.f32 %v1920, 1e-16
    %v1922 = vrcp.pop %v1921
    %v1923 = vmul.f32 %v1917, %v1922
    %s1924 = scalar_lea.vmem [#allocation8], 6
    %1925 = vst.msk [vmem:[%s1924] sm:$0x3] %vm332, %v1923
    %v1926 = vlaneseq
    %v1927 = vshrl.u32 %v1926, 7
    %v1928 = vsub.s32 0, %v1927
    %v1929 = vrot.slane %v1923, %v1928
    %1931 = vbcast.lane.b32.xlu0 %v1929, 256
    %v1932 = vpop.permute.xlu0 %1931
    %v1933 = vlaneseq
    %v1934 = vshrl.u32 %v1933, 7
    %v1935 = vsub.s32 1, %v1934
    %v1936 = vrot.slane %v1923, %v1935
    %1938 = vbcast.lane.b32.xlu0 %v1936, 256
    %v1939 = vpop.permute.xlu0 %1938
    %v1941 = vunpack.c.l.s4 1966171168
    %v1942 = vunpack.c.0.s8 %v1941
    %v1943 = vlaneseq
    %v1944 = vshrl.u32 %v1943, 7
    %v1945 = vsub.s32 %v1942, %v1944
    %v1946 = vrot.slane %v1646, %v1945
    %v1947 = vcombine.high %v1946, %v1946
    %v1949 = vunpack.c.l.s4 1966171168
    %v1950 = vunpack.c.0.s8 %v1949
    %v1951 = vlaneseq
    %v1952 = vshrl.u32 %v1951, 7
    %v1953 = vsub.s32 %v1950, %v1952
    %v1954 = vrot.slane %v1946, %v1953
    %v1956 = vunpack.c.l.s4 1966171168
    %v1957 = vunpack.c.0.s8 %v1956
    %v1958 = vlaneseq
    %v1959 = vshrl.u32 %v1958, 7
    %v1960 = vsub.s32 %v1957, %v1959
    %v1961 = vrot.slane %v1947, %v1960
    %v1962 = vlaneseq
    %v1963 = vshrl.u32 %v1962, 7
    %v1964 = vsub.s32 0, %v1963
    %v1965 = vrot.slane %v1954, %v1964
    %v1966 = vlaneseq
    %v1967 = vshrl.u32 %v1966, 7
    %v1968 = vsub.s32 0, %v1967
    %v1969 = vrot.slane %v1961, %v1968
    %v1972 = vmul.f32 %v1932, %v1965
    %v1973 = vmul.f32 %v1939, %v1969
    %v1976 = vunpack.c.l.s4 1966171168
    %v1977 = vunpack.c.0.s8 %v1976
    %v1978 = vlaneseq
    %v1979 = vshrl.u32 %v1978, 7
    %v1980 = vsub.s32 %v1977, %v1979
    %v1981 = vrot.slane %v1622, %v1980
    %v1982 = vcombine.high %v1981, %v1981
    %v1984 = vunpack.c.l.s4 1966171168
    %v1985 = vunpack.c.0.s8 %v1984
    %v1986 = vlaneseq
    %v1987 = vshrl.u32 %v1986, 7
    %v1988 = vsub.s32 %v1985, %v1987
    %v1989 = vrot.slane %v1981, %v1988
    %v1991 = vunpack.c.l.s4 1966171168
    %v1992 = vunpack.c.0.s8 %v1991
    %v1993 = vlaneseq
    %v1994 = vshrl.u32 %v1993, 7
    %v1995 = vsub.s32 %v1992, %v1994
    %v1996 = vrot.slane %v1982, %v1995
    %v1997 = vlaneseq
    %v1998 = vshrl.u32 %v1997, 7
    %v1999 = vsub.s32 0, %v1998
    %v2000 = vrot.slane %v1989, %v1999
    %v2001 = vlaneseq
    %v2002 = vshrl.u32 %v2001, 7
    %v2003 = vsub.s32 0, %v2002
    %v2004 = vrot.slane %v1996, %v2003
    %v2007 = vmul.f32 %v1932, %v2000
    %v2008 = vmul.f32 %v1939, %v2004
    %v2009 = vsub.f32 1.0, %v1972
    %v2010 = vsub.f32 1.0, %v1973
    %2013 = vrot.lane.b32.xlu0 %v2009, 96
    %v2014 = vpop.permute.xlu0 %2013
    %2015 = vrot.lane.b32.xlu0 %v2010, 96
    %v2016 = vpop.permute.xlu0 %2015
    %v2019 = vmul.f32 %v1663, %v2014
    %v2020 = vmul.f32 %v1664, %v2016
    %2023 = vrot.lane.b32.xlu0 %v2007, 80
    %v2024 = vpop.permute.xlu0 %2023
    %2025 = vrot.lane.b32.xlu0 %v2008, 80
    %v2026 = vpop.permute.xlu0 %2025
    %v2029 = vadd.f32 %v2019, %v2024
    %v2030 = vadd.f32 %v2020, %v2026
    %2031 = vst.msk [vmem:[#allocation9] sm:$0xff] %vm66, %v2029
    %2032 = vst.msk [vmem:[#allocation9 + $0x8] sm:$0xff] %vm66, %v2030
    %s2033 = scalar_lea.vmem %s0, 8
    %v2034 = vld [vmem:[%s2033] sm:$0x3]
    %v2036 = vsel %vm83, %v2034, 0
    %2038 = vmatprep.subr.mxu0 0.0
    %2039 = vmatpush1.msra.mxu0 %v69
    %2040 = vmatprep.subr.mxu0 0.0
    %2041 = vmatpush1.msra.mxu0 %v70
    %2042 = vmatprep.subr.mxu0 0.0
    %2043 = vmatpush1.msra.mxu0 %v71
    %2044 = vmatprep.subr.mxu0 0.0
    %2045 = vmatpush1.msra.mxu0 %v72
    %2046 = vmatprep.subr.mxu0 0.0
    %2047 = vmatpush1.msra.mxu0 0.0
    %2048 = vmatprep.subr.mxu0 0.0
    %2049 = vmatpush1.msra.mxu0 0.0
    %2050 = vmatprep.subr.mxu0 0.0
    %2051 = vmatpush1.msra.mxu0 0.0
    %2052 = vmatprep.subr.mxu0 0.0
    %2053 = vmatpush1.msra.mxu0 0.0
    %2054 = vmatprep.subr.mxu0 0.0
    %2055 = vmatpush1.msra.mxu0 0.0
    %2056 = vmatprep.subr.mxu0 0.0
    %2057 = vmatpush1.msra.mxu0 0.0
    %2058 = vmatprep.subr.mxu0 0.0
    %2059 = vmatpush1.msra.mxu0 0.0
    %2060 = vmatprep.subr.mxu0 0.0
    %2061 = vmatpush1.msra.mxu0 0.0
    %2062 = vmatprep.subr.mxu0 0.0
    %2063 = vmatpush1.msra.mxu0 0.0
    %2064 = vmatprep.subr.mxu0 0.0
    %2065 = vmatpush1.msra.mxu0 0.0
    %2066 = vmatprep.subr.mxu0 0.0
    %2067 = vmatpush1.msra.mxu0 0.0
    %2068 = vmatprep.subr.mxu0 0.0
    %2069 = vmatpush1.msra.mxu0 0.0
    %2070 = vmatprep.subr.mxu0 0.0
    %2071 = vmatpush1.msra.mxu0 0.0
    %2072 = vmatprep.subr.mxu0 0.0
    %2073 = vmatpush1.msra.mxu0 0.0
    %2074 = vmatprep.subr.mxu0 0.0
    %2075 = vmatpush1.msra.mxu0 0.0
    %2076 = vmatprep.subr.mxu0 0.0
    %2077 = vmatpush1.msra.mxu0 0.0
    %2078 = vmatprep.subr.mxu0 0.0
    %2079 = vmatpush1.msra.mxu0 0.0
    %2080 = vmatprep.subr.mxu0 0.0
    %2081 = vmatpush1.msra.mxu0 0.0
    %2082 = vmatprep.subr.mxu0 0.0
    %2083 = vmatpush1.msra.mxu0 0.0
    %2084 = vmatprep.subr.mxu0 0.0
    %2085 = vmatpush1.msra.mxu0 0.0
    %2086 = vmatprep.subr.mxu0 0.0
    %2087 = vmatpush1.msra.mxu0 0.0
    %2088 = vmatprep.subr.mxu0 0.0
    %2089 = vmatpush1.msra.mxu0 0.0
    %2090 = vmatprep.subr.mxu0 0.0
    %2091 = vmatpush1.msra.mxu0 0.0
    %2092 = vmatprep.subr.mxu0 0.0
    %2093 = vmatpush1.msra.mxu0 0.0
    %2094 = vmatprep.subr.mxu0 0.0
    %2095 = vmatpush1.msra.mxu0 0.0
    %2096 = vmatprep.subr.mxu0 0.0
    %2097 = vmatpush1.msra.mxu0 0.0
    %2098 = vmatprep.subr.mxu0 0.0
    %2099 = vmatpush1.msra.mxu0 0.0
    %2100 = vmatprep.subr.mxu0 0.0
    %2101 = vmatpush1.msra.mxu0 0.0
    %2102 = vmatprep.mubr.f32.mxu0 0.0
    %2103 = vmatmul.mubr.f32.gmra.mrb[0].mxu0 %v2036
    %v2104 = vpop.f32.mrb[0].mxu0
    %v2105 = vadd.f32 %v81, %v2104
    %v2106 = vpop.f32.mrb[0].mxu0
    %2107 = vdwg.mxu0
    %v2108 = vtanh.pop %v2105
    %v2109 = vmax.f32 %v2105, 0.0
    %vm2110 = vcmp.ne.f32.partialorder %v2105, %v2105
    %v2111 = vadd.f32 %v2105, 0.0
    %v2112 = vand.u32 2147483647, %v2105
    %v2113 = vsub.f32 0.0, %v2112
    %v2114 = vmul.f32 %v2113, 1.442695
    %v2115 = vpow.pop %v2114
    %v2116 = vadd.f32 %v2115, 1.0
    %v2117 = vlog2.pop %v2116
    %v2118 = vmul.f32 %v2117, 0.6931472
    %v2119 = vmul.f32 -0.5, %v2115
    %v2120 = vadd.f32 %v2119, 1.0
    %v2121 = vmul.f32 %v2120, %v2115
    %v2122 = vand.u32 2147483647, %v2115
    %vm2123 = vcmp.lt.f32.partialorder %v2122, 0.0004427343
    %v2124 = vsel %vm2123, %v2121, %v2118
    %v2125 = vadd.f32 %v2109, %v2124
    %v2126 = vsel %vm2110, %v2111, %v2125
    %v2127 = vxor.u32 %v2105, 2147483648
    %v2128 = vmul.f32 %v2127, 1.442695
    %v2129 = vpow.pop %v2128
    %v2130 = vadd.f32 %v2129, 1.0
    %v2131 = vrcp.pop %v2130
    %v2132 = vmul.f32 1.0, %v2131
    %v2133 = vadd.f32 %v2126, 1.0
    %v2134 = vsel %vm183, %v2105, -inf
    %2135 = vmax.xlane.f32.xlu0 %v2134
    %v2136 = vpop.xlane.xlu0 %2135
    %v2137 = vsub.f32 %v2105, %v2136
    %v2138 = vmul.f32 %v2137, 1.442695
    %v2139 = vpow.pop %v2138
    %2141 = vrot.lane.b32.xlu0 %v2139, 110
    %v2142 = vpop.permute.xlu0 %2141
    %v2144 = vsel %vm194, %v2142, 0.0
    %2145 = vadd.xlane.f32.xlu0 %v2144
    %v2146 = vpop.xlane.xlu0 %2145
    %v2147 = vrcp.pop %v2146
    %v2148 = vmul.f32 %v2139, %v2147
    %v2149 = vld [vmem:[#allocation9] sm:$0xff]
    %v2150 = vld [vmem:[#allocation9 + $0x8] sm:$0xff]
    %v2151 = vadd.f32 %v2149, 1e-16
    %v2152 = vadd.f32 %v2150, 1e-16
    %v2153 = vadd.f32 %v2108, 1e-16
    %v2156 = vunpack.c.l.s4 1966171168
    %v2157 = vunpack.c.0.s8 %v2156
    %v2158 = vlaneseq
    %v2159 = vshrl.u32 %v2158, 7
    %v2160 = vsub.s32 %v2157, %v2159
    %v2161 = vrot.slane %v2153, %v2160
    %v2162 = vcombine.high %v2161, %v2161
    %v2164 = vunpack.c.l.s4 1966171168
    %v2165 = vunpack.c.0.s8 %v2164
    %v2166 = vlaneseq
    %v2167 = vshrl.u32 %v2166, 7
    %v2168 = vsub.s32 %v2165, %v2167
    %v2169 = vrot.slane %v2161, %v2168
    %v2171 = vunpack.c.l.s4 1966171168
    %v2172 = vunpack.c.0.s8 %v2171
    %v2173 = vlaneseq
    %v2174 = vshrl.u32 %v2173, 7
    %v2175 = vsub.s32 %v2172, %v2174
    %v2176 = vrot.slane %v2162, %v2175
    %v2179 = vlaneseq
    %v2180 = vshrl.u32 %v2179, 7
    %v2181 = vsub.s32 0, %v2180
    %v2182 = vrot.slane %v2169, %v2181
    %v2183 = vlaneseq
    %v2184 = vshrl.u32 %v2183, 7
    %v2185 = vsub.s32 0, %v2184
    %v2186 = vrot.slane %v2176, %v2185
    %v2189 = vmul.f32 %v2151, %v2182
    %v2190 = vmul.f32 %v2152, %v2186
    %v2191 = vsel %vm66, %v2189, 0.0
    %2192 = vadd.xlane.f32.xlu0 %v2191
    %v2193 = vpop.xlane.xlu0 %2192
    %v2194 = vsel %vm66, %v2190, 0.0
    %2195 = vadd.xlane.f32.xlu0 %v2194
    %v2196 = vpop.xlane.xlu0 %2195
    %v2197 = vmul.f32 %v2151, %v2151
    %v2198 = vmul.f32 %v2152, %v2152
    %v2199 = vsel %vm66, %v2197, 0.0
    %2200 = vadd.xlane.f32.xlu0 %v2199
    %v2201 = vpop.xlane.xlu0 %2200
    %v2202 = vsel %vm66, %v2198, 0.0
    %2203 = vadd.xlane.f32.xlu0 %v2202
    %v2204 = vpop.xlane.xlu0 %2203
    %v2205 = vrsqrt.pop %v2201
    %v2206 = vmul.f32 %v2201, %v2205
    %vm2207 = vcmp.eq.f32.partialorder %v2201, inf
    %v2208 = vsel %vm2207, %v2201, %v2206
    %vm2209 = vcmp.eq.f32.partialorder %v2201, 0.0
    %v2210 = vand.u32 %v2201, 2147483648
    %v2211 = vsel %vm2209, %v2210, %v2208
    %v2212 = vrsqrt.pop %v2204
    %v2213 = vmul.f32 %v2204, %v2212
    %vm2214 = vcmp.eq.f32.partialorder %v2204, inf
    %v2215 = vsel %vm2214, %v2204, %v2213
    %vm2216 = vcmp.eq.f32.partialorder %v2204, 0.0
    %v2217 = vand.u32 %v2204, 2147483648
    %v2218 = vsel %vm2216, %v2217, %v2215
    %v2219 = vmul.f32 %v2169, %v2169
    %v2220 = vmul.f32 %v2176, %v2176
    %v2221 = vsel %vm272, %v2219, 0.0
    %2222 = vadd.xlane.f32.xlu0 %v2221
    %v2223 = vpop.xlane.xlu0 %2222
    %v2224 = vsel %vm272, %v2220, 0.0
    %2225 = vadd.xlane.f32.xlu0 %v2224
    %v2226 = vpop.xlane.xlu0 %2225
    %v2227 = vrsqrt.pop %v2223
    %v2228 = vmul.f32 %v2223, %v2227
    %vm2229 = vcmp.eq.f32.partialorder %v2223, inf
    %v2230 = vsel %vm2229, %v2223, %v2228
    %vm2231 = vcmp.eq.f32.partialorder %v2223, 0.0
    %v2232 = vand.u32 %v2223, 2147483648
    %v2233 = vsel %vm2231, %v2232, %v2230
    %v2234 = vrsqrt.pop %v2226
    %v2235 = vmul.f32 %v2226, %v2234
    %vm2236 = vcmp.eq.f32.partialorder %v2226, inf
    %v2237 = vsel %vm2236, %v2226, %v2235
    %vm2238 = vcmp.eq.f32.partialorder %v2226, 0.0
    %v2239 = vand.u32 %v2226, 2147483648
    %v2240 = vsel %vm2238, %v2239, %v2237
    %v2241 = vmax.f32 %v2211, 1e-08
    %v2242 = vmax.f32 %v2218, 1e-08
    %v2243 = vmax.f32 %v2233, 1e-08
    %v2244 = vmax.f32 %v2240, 1e-08
    %v2245 = vlaneseq
    %v2246 = vshrl.u32 %v2245, 7
    %v2247 = vsub.s32 0, %v2246
    %v2248 = vrot.slane %v2243, %v2247
    %v2249 = vlaneseq
    %v2250 = vshrl.u32 %v2249, 7
    %v2251 = vsub.s32 0, %v2250
    %v2252 = vrot.slane %v2244, %v2251
    %v2253 = vmul.f32 %v2241, %v2248
    %v2254 = vmul.f32 %v2242, %v2252
    %v2255 = vrcp.pop %v2253
    %v2256 = vmul.f32 %v2193, %v2255
    %v2257 = vrcp.pop %v2254
    %v2258 = vmul.f32 %v2196, %v2257
    %2260 = vset.pattern.permute.xlu0 16
    %2261 = vperm.xlu0 %2260, %v2126
    %v2262 = vpop.permute.xlu0 %2261
    %v2266 = vlaneseq
    %v2267 = vshrl.u32 %v2266, 7
    %v2268 = vsub.s32 %v319, %v2267
    %v2269 = vrot.slane %v2256, %v2268
    %v2270 = vlaneseq
    %v2271 = vshrl.u32 %v2270, 7
    %v2272 = vsub.s32 %v319, %v2271
    %v2273 = vrot.slane %v2258, %v2272
    %v2274 = vsel %vm328, %v2273, %v2269
    %v2276 = vmul.f32 %v2262, %v2274
    %v2277 = vsel %vm332, %v2276, -inf
    %2278 = vmax.xlane.f32.xlu0 %v2277
    %v2279 = vpop.xlane.xlu0 %2278
    %v2280 = vsub.f32 %v2276, %v2279
    %v2281 = vmul.f32 %v2280, 1.442695
    %v2282 = vpow.pop %v2281
    %v2283 = vsel %vm332, %v2282, 0.0
    %2284 = vadd.xlane.f32.xlu0 %v2283
    %v2285 = vpop.xlane.xlu0 %2284
    %v2286 = vrcp.pop %v2285
    %v2287 = vmul.f32 %v2282, %v2286
    %2289 = vset.pattern.permute.xlu0 17
    %2290 = vperm.xlu0 %2289, %v2132
    %v2291 = vpop.permute.xlu0 %2290
    %v2293 = vmul.f32 %v2291, %v2287
    %v2294 = vsub.f32 1.0, %v2132
    %2296 = vset.pattern.permute.xlu0 17
    %2297 = vperm.xlu0 %2296, %v2294
    %v2298 = vpop.permute.xlu0 %2297
    %v2300 = vmul.f32 %v2298, %v1923
    %v2301 = vadd.f32 %v2293, %v2300
    %v2303 = vsel %vm358, %v2301, 0
    %2305 = vmatprep.subr.mxu0 0.0
    %2306 = vmatpush1.msra.mxu0 %v74
    %2307 = vmatprep.subr.mxu0 0.0
    %2308 = vmatpush1.msra.mxu0 0.0
    %2309 = vmatprep.subr.mxu0 0.0
    %2310 = vmatpush1.msra.mxu0 0.0
    %2311 = vmatprep.subr.mxu0 0.0
    %2312 = vmatpush1.msra.mxu0 0.0
    %2313 = vmatprep.subr.mxu0 0.0
    %2314 = vmatpush1.msra.mxu0 0.0
    %2315 = vmatprep.subr.mxu0 0.0
    %2316 = vmatpush1.msra.mxu0 0.0
    %2317 = vmatprep.subr.mxu0 0.0
    %2318 = vmatpush1.msra.mxu0 0.0
    %2319 = vmatprep.subr.mxu0 0.0
    %2320 = vmatpush1.msra.mxu0 0.0
    %2321 = vmatprep.subr.mxu0 0.0
    %2322 = vmatpush1.msra.mxu0 0.0
    %2323 = vmatprep.subr.mxu0 0.0
    %2324 = vmatpush1.msra.mxu0 0.0
    %2325 = vmatprep.subr.mxu0 0.0
    %2326 = vmatpush1.msra.mxu0 0.0
    %2327 = vmatprep.subr.mxu0 0.0
    %2328 = vmatpush1.msra.mxu0 0.0
    %2329 = vmatprep.subr.mxu0 0.0
    %2330 = vmatpush1.msra.mxu0 0.0
    %2331 = vmatprep.subr.mxu0 0.0
    %2332 = vmatpush1.msra.mxu0 0.0
    %2333 = vmatprep.subr.mxu0 0.0
    %2334 = vmatpush1.msra.mxu0 0.0
    %2335 = vmatprep.subr.mxu0 0.0
    %2336 = vmatpush1.msra.mxu0 0.0
    %2337 = vmatprep.subr.mxu0 0.0
    %2338 = vmatpush1.msra.mxu0 0.0
    %2339 = vmatprep.subr.mxu0 0.0
    %2340 = vmatpush1.msra.mxu0 0.0
    %2341 = vmatprep.subr.mxu0 0.0
    %2342 = vmatpush1.msra.mxu0 0.0
    %2343 = vmatprep.subr.mxu0 0.0
    %2344 = vmatpush1.msra.mxu0 0.0
    %2345 = vmatprep.subr.mxu0 0.0
    %2346 = vmatpush1.msra.mxu0 0.0
    %2347 = vmatprep.subr.mxu0 0.0
    %2348 = vmatpush1.msra.mxu0 0.0
    %2349 = vmatprep.subr.mxu0 0.0
    %2350 = vmatpush1.msra.mxu0 0.0
    %2351 = vmatprep.subr.mxu0 0.0
    %2352 = vmatpush1.msra.mxu0 0.0
    %2353 = vmatprep.subr.mxu0 0.0
    %2354 = vmatpush1.msra.mxu0 0.0
    %2355 = vmatprep.subr.mxu0 0.0
    %2356 = vmatpush1.msra.mxu0 0.0
    %2357 = vmatprep.subr.mxu0 0.0
    %2358 = vmatpush1.msra.mxu0 0.0
    %2359 = vmatprep.subr.mxu0 0.0
    %2360 = vmatpush1.msra.mxu0 0.0
    %2361 = vmatprep.subr.mxu0 0.0
    %2362 = vmatpush1.msra.mxu0 0.0
    %2363 = vmatprep.subr.mxu0 0.0
    %2364 = vmatpush1.msra.mxu0 0.0
    %2365 = vmatprep.subr.mxu0 0.0
    %2366 = vmatpush1.msra.mxu0 0.0
    %2367 = vmatprep.subr.mxu0 0.0
    %2368 = vmatpush1.msra.mxu0 0.0
    %2369 = vmatprep.mubr.f32.mxu0 0.0
    %2370 = vmatmul.mubr.f32.gmra.mrb[0].mxu0 %v2303
    %v2371 = vpop.f32.mrb[0].mxu0
    %v2372 = vadd.f32 0.0, %v2371
    %v2373 = vpop.f32.mrb[0].mxu0
    %2374 = vdwg.mxu0
    %2376 = vset.pattern.permute.xlu0 18
    %2377 = vperm.xlu0 %2376, %v2148
    %v2378 = vpop.permute.xlu0 %2377
    %v2380 = vmul.f32 %v2372, %v2378
    %2381 = vset.pattern.permute.xlu0 19
    %2382 = vperm.xlu0 %2381, %v2148
    %v2383 = vpop.permute.xlu0 %2382
    %v2385 = vmul.f32 %v2301, %v2383
    %v2386 = vadd.f32 %v2380, %v2385
    %2387 = vset.pattern.permute.xlu0 20
    %2388 = vperm.xlu0 %2387, %v2148
    %v2389 = vpop.permute.xlu0 %2388
    %v2391 = vmul.f32 %v2372, %v2389
    %2393 = vrot.lane.b32.xlu0 %v2391, 120
    %v2394 = vpop.permute.xlu0 %2393
    %v2396 = vadd.f32 %v2386, %v2394
    %v2397 = vmax.f32 %v2396, 0.0
    %2399 = vset.pattern.permute.xlu0 21
    %2400 = vperm.xlu0 %2399, %v2133
    %v2401 = vpop.permute.xlu0 %2400
    %v2403 = vpow.f32 %v2397, %v2401
    %v2404 = vsel %vm332, %v2403, 0.0
    %2405 = vadd.xlane.f32.xlu0 %v2404
    %v2406 = vpop.xlane.xlu0 %2405
    %v2407 = vadd.f32 %v2406, 1e-16
    %v2408 = vrcp.pop %v2407
    %v2409 = vmul.f32 %v2403, %v2408
    %s2410 = scalar_lea.vmem [#allocation8], 8
    %2411 = vst.msk [vmem:[%s2410] sm:$0x3] %vm332, %v2409
    %v2412 = vlaneseq
    %v2413 = vshrl.u32 %v2412, 7
    %v2414 = vsub.s32 0, %v2413
    %v2415 = vrot.slane %v2409, %v2414
    %2417 = vbcast.lane.b32.xlu0 %v2415, 256
    %v2418 = vpop.permute.xlu0 %2417
    %v2419 = vlaneseq
    %v2420 = vshrl.u32 %v2419, 7
    %v2421 = vsub.s32 1, %v2420
    %v2422 = vrot.slane %v2409, %v2421
    %2424 = vbcast.lane.b32.xlu0 %v2422, 256
    %v2425 = vpop.permute.xlu0 %2424
    %v2427 = vunpack.c.l.s4 1966171168
    %v2428 = vunpack.c.0.s8 %v2427
    %v2429 = vlaneseq
    %v2430 = vshrl.u32 %v2429, 7
    %v2431 = vsub.s32 %v2428, %v2430
    %v2432 = vrot.slane %v2132, %v2431
    %v2433 = vcombine.high %v2432, %v2432
    %v2435 = vunpack.c.l.s4 1966171168
    %v2436 = vunpack.c.0.s8 %v2435
    %v2437 = vlaneseq
    %v2438 = vshrl.u32 %v2437, 7
    %v2439 = vsub.s32 %v2436, %v2438
    %v2440 = vrot.slane %v2432, %v2439
    %v2442 = vunpack.c.l.s4 1966171168
    %v2443 = vunpack.c.0.s8 %v2442
    %v2444 = vlaneseq
    %v2445 = vshrl.u32 %v2444, 7
    %v2446 = vsub.s32 %v2443, %v2445
    %v2447 = vrot.slane %v2433, %v2446
    %v2448 = vlaneseq
    %v2449 = vshrl.u32 %v2448, 7
    %v2450 = vsub.s32 0, %v2449
    %v2451 = vrot.slane %v2440, %v2450
    %v2452 = vlaneseq
    %v2453 = vshrl.u32 %v2452, 7
    %v2454 = vsub.s32 0, %v2453
    %v2455 = vrot.slane %v2447, %v2454
    %v2458 = vmul.f32 %v2418, %v2451
    %v2459 = vmul.f32 %v2425, %v2455
    %v2462 = vunpack.c.l.s4 1966171168
    %v2463 = vunpack.c.0.s8 %v2462
    %v2464 = vlaneseq
    %v2465 = vshrl.u32 %v2464, 7
    %v2466 = vsub.s32 %v2463, %v2465
    %v2467 = vrot.slane %v2108, %v2466
    %v2468 = vcombine.high %v2467, %v2467
    %v2470 = vunpack.c.l.s4 1966171168
    %v2471 = vunpack.c.0.s8 %v2470
    %v2472 = vlaneseq
    %v2473 = vshrl.u32 %v2472, 7
    %v2474 = vsub.s32 %v2471, %v2473
    %v2475 = vrot.slane %v2467, %v2474
    %v2477 = vunpack.c.l.s4 1966171168
    %v2478 = vunpack.c.0.s8 %v2477
    %v2479 = vlaneseq
    %v2480 = vshrl.u32 %v2479, 7
    %v2481 = vsub.s32 %v2478, %v2480
    %v2482 = vrot.slane %v2468, %v2481
    %v2483 = vlaneseq
    %v2484 = vshrl.u32 %v2483, 7
    %v2485 = vsub.s32 0, %v2484
    %v2486 = vrot.slane %v2475, %v2485
    %v2487 = vlaneseq
    %v2488 = vshrl.u32 %v2487, 7
    %v2489 = vsub.s32 0, %v2488
    %v2490 = vrot.slane %v2482, %v2489
    %v2493 = vmul.f32 %v2418, %v2486
    %v2494 = vmul.f32 %v2425, %v2490
    %v2495 = vsub.f32 1.0, %v2458
    %v2496 = vsub.f32 1.0, %v2459
    %2499 = vrot.lane.b32.xlu0 %v2495, 96
    %v2500 = vpop.permute.xlu0 %2499
    %2501 = vrot.lane.b32.xlu0 %v2496, 96
    %v2502 = vpop.permute.xlu0 %2501
    %v2505 = vmul.f32 %v2149, %v2500
    %v2506 = vmul.f32 %v2150, %v2502
    %2509 = vrot.lane.b32.xlu0 %v2493, 80
    %v2510 = vpop.permute.xlu0 %2509
    %2511 = vrot.lane.b32.xlu0 %v2494, 80
    %v2512 = vpop.permute.xlu0 %2511
    %v2515 = vadd.f32 %v2505, %v2510
    %v2516 = vadd.f32 %v2506, %v2512
    %2517 = vst.msk [vmem:[#allocation9] sm:$0xff] %vm66, %v2515
    %2518 = vst.msk [vmem:[#allocation9 + $0x8] sm:$0xff] %vm66, %v2516
    %s2519 = scalar_lea.vmem %s0, 10
    %v2520 = vld [vmem:[%s2519] sm:$0x3]
    %v2522 = vsel %vm83, %v2520, 0
    %2524 = vmatprep.subr.mxu0 0.0
    %2525 = vmatpush1.msra.mxu0 %v69
    %2526 = vmatprep.subr.mxu0 0.0
    %2527 = vmatpush1.msra.mxu0 %v70
    %2528 = vmatprep.subr.mxu0 0.0
    %2529 = vmatpush1.msra.mxu0 %v71
    %2530 = vmatprep.subr.mxu0 0.0
    %2531 = vmatpush1.msra.mxu0 %v72
    %2532 = vmatprep.subr.mxu0 0.0
    %2533 = vmatpush1.msra.mxu0 0.0
    %2534 = vmatprep.subr.mxu0 0.0
    %2535 = vmatpush1.msra.mxu0 0.0
    %2536 = vmatprep.subr.mxu0 0.0
    %2537 = vmatpush1.msra.mxu0 0.0
    %2538 = vmatprep.subr.mxu0 0.0
    %2539 = vmatpush1.msra.mxu0 0.0
    %2540 = vmatprep.subr.mxu0 0.0
    %2541 = vmatpush1.msra.mxu0 0.0
    %2542 = vmatprep.subr.mxu0 0.0
    %2543 = vmatpush1.msra.mxu0 0.0
    %2544 = vmatprep.subr.mxu0 0.0
    %2545 = vmatpush1.msra.mxu0 0.0
    %2546 = vmatprep.subr.mxu0 0.0
    %2547 = vmatpush1.msra.mxu0 0.0
    %2548 = vmatprep.subr.mxu0 0.0
    %2549 = vmatpush1.msra.mxu0 0.0
    %2550 = vmatprep.subr.mxu0 0.0
    %2551 = vmatpush1.msra.mxu0 0.0
    %2552 = vmatprep.subr.mxu0 0.0
    %2553 = vmatpush1.msra.mxu0 0.0
    %2554 = vmatprep.subr.mxu0 0.0
    %2555 = vmatpush1.msra.mxu0 0.0
    %2556 = vmatprep.subr.mxu0 0.0
    %2557 = vmatpush1.msra.mxu0 0.0
    %2558 = vmatprep.subr.mxu0 0.0
    %2559 = vmatpush1.msra.mxu0 0.0
    %2560 = vmatprep.subr.mxu0 0.0
    %2561 = vmatpush1.msra.mxu0 0.0
    %2562 = vmatprep.subr.mxu0 0.0
    %2563 = vmatpush1.msra.mxu0 0.0
    %2564 = vmatprep.subr.mxu0 0.0
    %2565 = vmatpush1.msra.mxu0 0.0
    %2566 = vmatprep.subr.mxu0 0.0
    %2567 = vmatpush1.msra.mxu0 0.0
    %2568 = vmatprep.subr.mxu0 0.0
    %2569 = vmatpush1.msra.mxu0 0.0
    %2570 = vmatprep.subr.mxu0 0.0
    %2571 = vmatpush1.msra.mxu0 0.0
    %2572 = vmatprep.subr.mxu0 0.0
    %2573 = vmatpush1.msra.mxu0 0.0
    %2574 = vmatprep.subr.mxu0 0.0
    %2575 = vmatpush1.msra.mxu0 0.0
    %2576 = vmatprep.subr.mxu0 0.0
    %2577 = vmatpush1.msra.mxu0 0.0
    %2578 = vmatprep.subr.mxu0 0.0
    %2579 = vmatpush1.msra.mxu0 0.0
    %2580 = vmatprep.subr.mxu0 0.0
    %2581 = vmatpush1.msra.mxu0 0.0
    %2582 = vmatprep.subr.mxu0 0.0
    %2583 = vmatpush1.msra.mxu0 0.0
    %2584 = vmatprep.subr.mxu0 0.0
    %2585 = vmatpush1.msra.mxu0 0.0
    %2586 = vmatprep.subr.mxu0 0.0
    %2587 = vmatpush1.msra.mxu0 0.0
    %2588 = vmatprep.mubr.f32.mxu0 0.0
    %2589 = vmatmul.mubr.f32.gmra.mrb[0].mxu0 %v2522
    %v2590 = vpop.f32.mrb[0].mxu0
    %v2591 = vadd.f32 %v81, %v2590
    %v2592 = vpop.f32.mrb[0].mxu0
    %2593 = vdwg.mxu0
    %v2594 = vtanh.pop %v2591
    %v2595 = vmax.f32 %v2591, 0.0
    %vm2596 = vcmp.ne.f32.partialorder %v2591, %v2591
    %v2597 = vadd.f32 %v2591, 0.0
    %v2598 = vand.u32 2147483647, %v2591
    %v2599 = vsub.f32 0.0, %v2598
    %v2600 = vmul.f32 %v2599, 1.442695
    %v2601 = vpow.pop %v2600
    %v2602 = vadd.f32 %v2601, 1.0
    %v2603 = vlog2.pop %v2602
    %v2604 = vmul.f32 %v2603, 0.6931472
    %v2605 = vmul.f32 -0.5, %v2601
    %v2606 = vadd.f32 %v2605, 1.0
    %v2607 = vmul.f32 %v2606, %v2601
    %v2608 = vand.u32 2147483647, %v2601
    %vm2609 = vcmp.lt.f32.partialorder %v2608, 0.0004427343
    %v2610 = vsel %vm2609, %v2607, %v2604
    %v2611 = vadd.f32 %v2595, %v2610
    %v2612 = vsel %vm2596, %v2597, %v2611
    %v2613 = vxor.u32 %v2591, 2147483648
    %v2614 = vmul.f32 %v2613, 1.442695
    %v2615 = vpow.pop %v2614
    %v2616 = vadd.f32 %v2615, 1.0
    %v2617 = vrcp.pop %v2616
    %v2618 = vmul.f32 1.0, %v2617
    %v2619 = vadd.f32 %v2612, 1.0
    %v2620 = vsel %vm183, %v2591, -inf
    %2621 = vmax.xlane.f32.xlu0 %v2620
    %v2622 = vpop.xlane.xlu0 %2621
    %v2623 = vsub.f32 %v2591, %v2622
    %v2624 = vmul.f32 %v2623, 1.442695
    %v2625 = vpow.pop %v2624
    %2627 = vrot.lane.b32.xlu0 %v2625, 110
    %v2628 = vpop.permute.xlu0 %2627
    %v2630 = vsel %vm194, %v2628, 0.0
    %2631 = vadd.xlane.f32.xlu0 %v2630
    %v2632 = vpop.xlane.xlu0 %2631
    %v2633 = vrcp.pop %v2632
    %v2634 = vmul.f32 %v2625, %v2633
    %v2635 = vld [vmem:[#allocation9] sm:$0xff]
    %v2636 = vld [vmem:[#allocation9 + $0x8] sm:$0xff]
    %v2637 = vadd.f32 %v2635, 1e-16
    %v2638 = vadd.f32 %v2636, 1e-16
    %v2639 = vadd.f32 %v2594, 1e-16
    %v2642 = vunpack.c.l.s4 1966171168
    %v2643 = vunpack.c.0.s8 %v2642
    %v2644 = vlaneseq
    %v2645 = vshrl.u32 %v2644, 7
    %v2646 = vsub.s32 %v2643, %v2645
    %v2647 = vrot.slane %v2639, %v2646
    %v2648 = vcombine.high %v2647, %v2647
    %v2650 = vunpack.c.l.s4 1966171168
    %v2651 = vunpack.c.0.s8 %v2650
    %v2652 = vlaneseq
    %v2653 = vshrl.u32 %v2652, 7
    %v2654 = vsub.s32 %v2651, %v2653
    %v2655 = vrot.slane %v2647, %v2654
    %v2657 = vunpack.c.l.s4 1966171168
    %v2658 = vunpack.c.0.s8 %v2657
    %v2659 = vlaneseq
    %v2660 = vshrl.u32 %v2659, 7
    %v2661 = vsub.s32 %v2658, %v2660
    %v2662 = vrot.slane %v2648, %v2661
    %v2665 = vlaneseq
    %v2666 = vshrl.u32 %v2665, 7
    %v2667 = vsub.s32 0, %v2666
    %v2668 = vrot.slane %v2655, %v2667
    %v2669 = vlaneseq
    %v2670 = vshrl.u32 %v2669, 7
    %v2671 = vsub.s32 0, %v2670
    %v2672 = vrot.slane %v2662, %v2671
    %v2675 = vmul.f32 %v2637, %v2668
    %v2676 = vmul.f32 %v2638, %v2672
    %v2677 = vsel %vm66, %v2675, 0.0
    %2678 = vadd.xlane.f32.xlu0 %v2677
    %v2679 = vpop.xlane.xlu0 %2678
    %v2680 = vsel %vm66, %v2676, 0.0
    %2681 = vadd.xlane.f32.xlu0 %v2680
    %v2682 = vpop.xlane.xlu0 %2681
    %v2683 = vmul.f32 %v2637, %v2637
    %v2684 = vmul.f32 %v2638, %v2638
    %v2685 = vsel %vm66, %v2683, 0.0
    %2686 = vadd.xlane.f32.xlu0 %v2685
    %v2687 = vpop.xlane.xlu0 %2686
    %v2688 = vsel %vm66, %v2684, 0.0
    %2689 = vadd.xlane.f32.xlu0 %v2688
    %v2690 = vpop.xlane.xlu0 %2689
    %v2691 = vrsqrt.pop %v2687
    %v2692 = vmul.f32 %v2687, %v2691
    %vm2693 = vcmp.eq.f32.partialorder %v2687, inf
    %v2694 = vsel %vm2693, %v2687, %v2692
    %vm2695 = vcmp.eq.f32.partialorder %v2687, 0.0
    %v2696 = vand.u32 %v2687, 2147483648
    %v2697 = vsel %vm2695, %v2696, %v2694
    %v2698 = vrsqrt.pop %v2690
    %v2699 = vmul.f32 %v2690, %v2698
    %vm2700 = vcmp.eq.f32.partialorder %v2690, inf
    %v2701 = vsel %vm2700, %v2690, %v2699
    %vm2702 = vcmp.eq.f32.partialorder %v2690, 0.0
    %v2703 = vand.u32 %v2690, 2147483648
    %v2704 = vsel %vm2702, %v2703, %v2701
    %v2705 = vmul.f32 %v2655, %v2655
    %v2706 = vmul.f32 %v2662, %v2662
    %v2707 = vsel %vm272, %v2705, 0.0
    %2708 = vadd.xlane.f32.xlu0 %v2707
    %v2709 = vpop.xlane.xlu0 %2708
    %v2710 = vsel %vm272, %v2706, 0.0
    %2711 = vadd.xlane.f32.xlu0 %v2710
    %v2712 = vpop.xlane.xlu0 %2711
    %v2713 = vrsqrt.pop %v2709
    %v2714 = vmul.f32 %v2709, %v2713
    %vm2715 = vcmp.eq.f32.partialorder %v2709, inf
    %v2716 = vsel %vm2715, %v2709, %v2714
    %vm2717 = vcmp.eq.f32.partialorder %v2709, 0.0
    %v2718 = vand.u32 %v2709, 2147483648
    %v2719 = vsel %vm2717, %v2718, %v2716
    %v2720 = vrsqrt.pop %v2712
    %v2721 = vmul.f32 %v2712, %v2720
    %vm2722 = vcmp.eq.f32.partialorder %v2712, inf
    %v2723 = vsel %vm2722, %v2712, %v2721
    %vm2724 = vcmp.eq.f32.partialorder %v2712, 0.0
    %v2725 = vand.u32 %v2712, 2147483648
    %v2726 = vsel %vm2724, %v2725, %v2723
    %v2727 = vmax.f32 %v2697, 1e-08
    %v2728 = vmax.f32 %v2704, 1e-08
    %v2729 = vmax.f32 %v2719, 1e-08
    %v2730 = vmax.f32 %v2726, 1e-08
    %v2731 = vlaneseq
    %v2732 = vshrl.u32 %v2731, 7
    %v2733 = vsub.s32 0, %v2732
    %v2734 = vrot.slane %v2729, %v2733
    %v2735 = vlaneseq
    %v2736 = vshrl.u32 %v2735, 7
    %v2737 = vsub.s32 0, %v2736
    %v2738 = vrot.slane %v2730, %v2737
    %v2739 = vmul.f32 %v2727, %v2734
    %v2740 = vmul.f32 %v2728, %v2738
    %v2741 = vrcp.pop %v2739
    %v2742 = vmul.f32 %v2679, %v2741
    %v2743 = vrcp.pop %v2740
    %v2744 = vmul.f32 %v2682, %v2743
    %2746 = vset.pattern.permute.xlu0 16
    %2747 = vperm.xlu0 %2746, %v2612
    %v2748 = vpop.permute.xlu0 %2747
    %v2752 = vlaneseq
    %v2753 = vshrl.u32 %v2752, 7
    %v2754 = vsub.s32 %v319, %v2753
    %v2755 = vrot.slane %v2742, %v2754
    %v2756 = vlaneseq
    %v2757 = vshrl.u32 %v2756, 7
    %v2758 = vsub.s32 %v319, %v2757
    %v2759 = vrot.slane %v2744, %v2758
    %v2760 = vsel %vm328, %v2759, %v2755
    %v2762 = vmul.f32 %v2748, %v2760
    %v2763 = vsel %vm332, %v2762, -inf
    %2764 = vmax.xlane.f32.xlu0 %v2763
    %v2765 = vpop.xlane.xlu0 %2764
    %v2766 = vsub.f32 %v2762, %v2765
    %v2767 = vmul.f32 %v2766, 1.442695
    %v2768 = vpow.pop %v2767
    %v2769 = vsel %vm332, %v2768, 0.0
    %2770 = vadd.xlane.f32.xlu0 %v2769
    %v2771 = vpop.xlane.xlu0 %2770
    %v2772 = vrcp.pop %v2771
    %v2773 = vmul.f32 %v2768, %v2772
    %2775 = vset.pattern.permute.xlu0 17
    %2776 = vperm.xlu0 %2775, %v2618
    %v2777 = vpop.permute.xlu0 %2776
    %v2779 = vmul.f32 %v2777, %v2773
    %v2780 = vsub.f32 1.0, %v2618
    %2782 = vset.pattern.permute.xlu0 17
    %2783 = vperm.xlu0 %2782, %v2780
    %v2784 = vpop.permute.xlu0 %2783
    %v2786 = vmul.f32 %v2784, %v2409
    %v2787 = vadd.f32 %v2779, %v2786
    %v2789 = vsel %vm358, %v2787, 0
    %2791 = vmatprep.subr.mxu0 0.0
    %2792 = vmatpush1.msra.mxu0 %v74
    %2793 = vmatprep.subr.mxu0 0.0
    %2794 = vmatpush1.msra.mxu0 0.0
    %2795 = vmatprep.subr.mxu0 0.0
    %2796 = vmatpush1.msra.mxu0 0.0
    %2797 = vmatprep.subr.mxu0 0.0
    %2798 = vmatpush1.msra.mxu0 0.0
    %2799 = vmatprep.subr.mxu0 0.0
    %2800 = vmatpush1.msra.mxu0 0.0
    %2801 = vmatprep.subr.mxu0 0.0
    %2802 = vmatpush1.msra.mxu0 0.0
    %2803 = vmatprep.subr.mxu0 0.0
    %2804 = vmatpush1.msra.mxu0 0.0
    %2805 = vmatprep.subr.mxu0 0.0
    %2806 = vmatpush1.msra.mxu0 0.0
    %2807 = vmatprep.subr.mxu0 0.0
    %2808 = vmatpush1.msra.mxu0 0.0
    %2809 = vmatprep.subr.mxu0 0.0
    %2810 = vmatpush1.msra.mxu0 0.0
    %2811 = vmatprep.subr.mxu0 0.0
    %2812 = vmatpush1.msra.mxu0 0.0
    %2813 = vmatprep.subr.mxu0 0.0
    %2814 = vmatpush1.msra.mxu0 0.0
    %2815 = vmatprep.subr.mxu0 0.0
    %2816 = vmatpush1.msra.mxu0 0.0
    %2817 = vmatprep.subr.mxu0 0.0
    %2818 = vmatpush1.msra.mxu0 0.0
    %2819 = vmatprep.subr.mxu0 0.0
    %2820 = vmatpush1.msra.mxu0 0.0
    %2821 = vmatprep.subr.mxu0 0.0
    %2822 = vmatpush1.msra.mxu0 0.0
    %2823 = vmatprep.subr.mxu0 0.0
    %2824 = vmatpush1.msra.mxu0 0.0
    %2825 = vmatprep.subr.mxu0 0.0
    %2826 = vmatpush1.msra.mxu0 0.0
    %2827 = vmatprep.subr.mxu0 0.0
    %2828 = vmatpush1.msra.mxu0 0.0
    %2829 = vmatprep.subr.mxu0 0.0
    %2830 = vmatpush1.msra.mxu0 0.0
    %2831 = vmatprep.subr.mxu0 0.0
    %2832 = vmatpush1.msra.mxu0 0.0
    %2833 = vmatprep.subr.mxu0 0.0
    %2834 = vmatpush1.msra.mxu0 0.0
    %2835 = vmatprep.subr.mxu0 0.0
    %2836 = vmatpush1.msra.mxu0 0.0
    %2837 = vmatprep.subr.mxu0 0.0
    %2838 = vmatpush1.msra.mxu0 0.0
    %2839 = vmatprep.subr.mxu0 0.0
    %2840 = vmatpush1.msra.mxu0 0.0
    %2841 = vmatprep.subr.mxu0 0.0
    %2842 = vmatpush1.msra.mxu0 0.0
    %2843 = vmatprep.subr.mxu0 0.0
    %2844 = vmatpush1.msra.mxu0 0.0
    %2845 = vmatprep.subr.mxu0 0.0
    %2846 = vmatpush1.msra.mxu0 0.0
    %2847 = vmatprep.subr.mxu0 0.0
    %2848 = vmatpush1.msra.mxu0 0.0
    %2849 = vmatprep.subr.mxu0 0.0
    %2850 = vmatpush1.msra.mxu0 0.0
    %2851 = vmatprep.subr.mxu0 0.0
    %2852 = vmatpush1.msra.mxu0 0.0
    %2853 = vmatprep.subr.mxu0 0.0
    %2854 = vmatpush1.msra.mxu0 0.0
    %2855 = vmatprep.mubr.f32.mxu0 0.0
    %2856 = vmatmul.mubr.f32.gmra.mrb[0].mxu0 %v2789
    %v2857 = vpop.f32.mrb[0].mxu0
    %v2858 = vadd.f32 0.0, %v2857
    %v2859 = vpop.f32.mrb[0].mxu0
    %2860 = vdwg.mxu0
    %2862 = vset.pattern.permute.xlu0 18
    %2863 = vperm.xlu0 %2862, %v2634
    %v2864 = vpop.permute.xlu0 %2863
    %v2866 = vmul.f32 %v2858, %v2864
    %2867 = vset.pattern.permute.xlu0 19
    %2868 = vperm.xlu0 %2867, %v2634
    %v2869 = vpop.permute.xlu0 %2868
    %v2871 = vmul.f32 %v2787, %v2869
    %v2872 = vadd.f32 %v2866, %v2871
    %2873 = vset.pattern.permute.xlu0 20
    %2874 = vperm.xlu0 %2873, %v2634
    %v2875 = vpop.permute.xlu0 %2874
    %v2877 = vmul.f32 %v2858, %v2875
    %2879 = vrot.lane.b32.xlu0 %v2877, 120
    %v2880 = vpop.permute.xlu0 %2879
    %v2882 = vadd.f32 %v2872, %v2880
    %v2883 = vmax.f32 %v2882, 0.0
    %2885 = vset.pattern.permute.xlu0 21
    %2886 = vperm.xlu0 %2885, %v2619
    %v2887 = vpop.permute.xlu0 %2886
    %v2889 = vpow.f32 %v2883, %v2887
    %v2890 = vsel %vm332, %v2889, 0.0
    %2891 = vadd.xlane.f32.xlu0 %v2890
    %v2892 = vpop.xlane.xlu0 %2891
    %v2893 = vadd.f32 %v2892, 1e-16
    %v2894 = vrcp.pop %v2893
    %v2895 = vmul.f32 %v2889, %v2894
    %s2896 = scalar_lea.vmem [#allocation8], 10
    %2897 = vst.msk [vmem:[%s2896] sm:$0x3] %vm332, %v2895
    %v2898 = vlaneseq
    %v2899 = vshrl.u32 %v2898, 7
    %v2900 = vsub.s32 0, %v2899
    %v2901 = vrot.slane %v2895, %v2900
    %2903 = vbcast.lane.b32.xlu0 %v2901, 256
    %v2904 = vpop.permute.xlu0 %2903
    %v2905 = vlaneseq
    %v2906 = vshrl.u32 %v2905, 7
    %v2907 = vsub.s32 1, %v2906
    %v2908 = vrot.slane %v2895, %v2907
    %2910 = vbcast.lane.b32.xlu0 %v2908, 256
    %v2911 = vpop.permute.xlu0 %2910
    %v2913 = vunpack.c.l.s4 1966171168
    %v2914 = vunpack.c.0.s8 %v2913
    %v2915 = vlaneseq
    %v2916 = vshrl.u32 %v2915, 7
    %v2917 = vsub.s32 %v2914, %v2916
    %v2918 = vrot.slane %v2618, %v2917
    %v2919 = vcombine.high %v2918, %v2918
    %v2921 = vunpack.c.l.s4 1966171168
    %v2922 = vunpack.c.0.s8 %v2921
    %v2923 = vlaneseq
    %v2924 = vshrl.u32 %v2923, 7
    %v2925 = vsub.s32 %v2922, %v2924
    %v2926 = vrot.slane %v2918, %v2925
    %v2928 = vunpack.c.l.s4 1966171168
    %v2929 = vunpack.c.0.s8 %v2928
    %v2930 = vlaneseq
    %v2931 = vshrl.u32 %v2930, 7
    %v2932 = vsub.s32 %v2929, %v2931
    %v2933 = vrot.slane %v2919, %v2932
    %v2934 = vlaneseq
    %v2935 = vshrl.u32 %v2934, 7
    %v2936 = vsub.s32 0, %v2935
    %v2937 = vrot.slane %v2926, %v2936
    %v2938 = vlaneseq
    %v2939 = vshrl.u32 %v2938, 7
    %v2940 = vsub.s32 0, %v2939
    %v2941 = vrot.slane %v2933, %v2940
    %v2944 = vmul.f32 %v2904, %v2937
    %v2945 = vmul.f32 %v2911, %v2941
    %v2948 = vunpack.c.l.s4 1966171168
    %v2949 = vunpack.c.0.s8 %v2948
    %v2950 = vlaneseq
    %v2951 = vshrl.u32 %v2950, 7
    %v2952 = vsub.s32 %v2949, %v2951
    %v2953 = vrot.slane %v2594, %v2952
    %v2954 = vcombine.high %v2953, %v2953
    %v2956 = vunpack.c.l.s4 1966171168
    %v2957 = vunpack.c.0.s8 %v2956
    %v2958 = vlaneseq
    %v2959 = vshrl.u32 %v2958, 7
    %v2960 = vsub.s32 %v2957, %v2959
    %v2961 = vrot.slane %v2953, %v2960
    %v2963 = vunpack.c.l.s4 1966171168
    %v2964 = vunpack.c.0.s8 %v2963
    %v2965 = vlaneseq
    %v2966 = vshrl.u32 %v2965, 7
    %v2967 = vsub.s32 %v2964, %v2966
    %v2968 = vrot.slane %v2954, %v2967
    %v2969 = vlaneseq
    %v2970 = vshrl.u32 %v2969, 7
    %v2971 = vsub.s32 0, %v2970
    %v2972 = vrot.slane %v2961, %v2971
    %v2973 = vlaneseq
    %v2974 = vshrl.u32 %v2973, 7
    %v2975 = vsub.s32 0, %v2974
    %v2976 = vrot.slane %v2968, %v2975
    %v2979 = vmul.f32 %v2904, %v2972
    %v2980 = vmul.f32 %v2911, %v2976
    %v2981 = vsub.f32 1.0, %v2944
    %v2982 = vsub.f32 1.0, %v2945
    %2985 = vrot.lane.b32.xlu0 %v2981, 96
    %v2986 = vpop.permute.xlu0 %2985
    %2987 = vrot.lane.b32.xlu0 %v2982, 96
    %v2988 = vpop.permute.xlu0 %2987
    %v2991 = vmul.f32 %v2635, %v2986
    %v2992 = vmul.f32 %v2636, %v2988
    %2995 = vrot.lane.b32.xlu0 %v2979, 80
    %v2996 = vpop.permute.xlu0 %2995
    %2997 = vrot.lane.b32.xlu0 %v2980, 80
    %v2998 = vpop.permute.xlu0 %2997
    %v3001 = vadd.f32 %v2991, %v2996
    %v3002 = vadd.f32 %v2992, %v2998
    %3003 = vst.msk [vmem:[#allocation9] sm:$0xff] %vm66, %v3001
    %3004 = vst.msk [vmem:[#allocation9 + $0x8] sm:$0xff] %vm66, %v3002
    %s3005 = scalar_lea.vmem %s0, 12
    %v3006 = vld [vmem:[%s3005] sm:$0x3]
    %v3008 = vsel %vm83, %v3006, 0
    %3010 = vmatprep.subr.mxu0 0.0
    %3011 = vmatpush1.msra.mxu0 %v69
    %3012 = vmatprep.subr.mxu0 0.0
    %3013 = vmatpush1.msra.mxu0 %v70
    %3014 = vmatprep.subr.mxu0 0.0
    %3015 = vmatpush1.msra.mxu0 %v71
    %3016 = vmatprep.subr.mxu0 0.0
    %3017 = vmatpush1.msra.mxu0 %v72
    %3018 = vmatprep.subr.mxu0 0.0
    %3019 = vmatpush1.msra.mxu0 0.0
    %3020 = vmatprep.subr.mxu0 0.0
    %3021 = vmatpush1.msra.mxu0 0.0
    %3022 = vmatprep.subr.mxu0 0.0
    %3023 = vmatpush1.msra.mxu0 0.0
    %3024 = vmatprep.subr.mxu0 0.0
    %3025 = vmatpush1.msra.mxu0 0.0
    %3026 = vmatprep.subr.mxu0 0.0
    %3027 = vmatpush1.msra.mxu0 0.0
    %3028 = vmatprep.subr.mxu0 0.0
    %3029 = vmatpush1.msra.mxu0 0.0
    %3030 = vmatprep.subr.mxu0 0.0
    %3031 = vmatpush1.msra.mxu0 0.0
    %3032 = vmatprep.subr.mxu0 0.0
    %3033 = vmatpush1.msra.mxu0 0.0
    %3034 = vmatprep.subr.mxu0 0.0
    %3035 = vmatpush1.msra.mxu0 0.0
    %3036 = vmatprep.subr.mxu0 0.0
    %3037 = vmatpush1.msra.mxu0 0.0
    %3038 = vmatprep.subr.mxu0 0.0
    %3039 = vmatpush1.msra.mxu0 0.0
    %3040 = vmatprep.subr.mxu0 0.0
    %3041 = vmatpush1.msra.mxu0 0.0
    %3042 = vmatprep.subr.mxu0 0.0
    %3043 = vmatpush1.msra.mxu0 0.0
    %3044 = vmatprep.subr.mxu0 0.0
    %3045 = vmatpush1.msra.mxu0 0.0
    %3046 = vmatprep.subr.mxu0 0.0
    %3047 = vmatpush1.msra.mxu0 0.0
    %3048 = vmatprep.subr.mxu0 0.0
    %3049 = vmatpush1.msra.mxu0 0.0
    %3050 = vmatprep.subr.mxu0 0.0
    %3051 = vmatpush1.msra.mxu0 0.0
    %3052 = vmatprep.subr.mxu0 0.0
    %3053 = vmatpush1.msra.mxu0 0.0
    %3054 = vmatprep.subr.mxu0 0.0
    %3055 = vmatpush1.msra.mxu0 0.0
    %3056 = vmatprep.subr.mxu0 0.0
    %3057 = vmatpush1.msra.mxu0 0.0
    %3058 = vmatprep.subr.mxu0 0.0
    %3059 = vmatpush1.msra.mxu0 0.0
    %3060 = vmatprep.subr.mxu0 0.0
    %3061 = vmatpush1.msra.mxu0 0.0
    %3062 = vmatprep.subr.mxu0 0.0
    %3063 = vmatpush1.msra.mxu0 0.0
    %3064 = vmatprep.subr.mxu0 0.0
    %3065 = vmatpush1.msra.mxu0 0.0
    %3066 = vmatprep.subr.mxu0 0.0
    %3067 = vmatpush1.msra.mxu0 0.0
    %3068 = vmatprep.subr.mxu0 0.0
    %3069 = vmatpush1.msra.mxu0 0.0
    %3070 = vmatprep.subr.mxu0 0.0
    %3071 = vmatpush1.msra.mxu0 0.0
    %3072 = vmatprep.subr.mxu0 0.0
    %3073 = vmatpush1.msra.mxu0 0.0
    %3074 = vmatprep.mubr.f32.mxu0 0.0
    %3075 = vmatmul.mubr.f32.gmra.mrb[0].mxu0 %v3008
    %v3076 = vpop.f32.mrb[0].mxu0
    %v3077 = vadd.f32 %v81, %v3076
    %v3078 = vpop.f32.mrb[0].mxu0
    %3079 = vdwg.mxu0
    %v3080 = vtanh.pop %v3077
    %v3081 = vmax.f32 %v3077, 0.0
    %vm3082 = vcmp.ne.f32.partialorder %v3077, %v3077
    %v3083 = vadd.f32 %v3077, 0.0
    %v3084 = vand.u32 2147483647, %v3077
    %v3085 = vsub.f32 0.0, %v3084
    %v3086 = vmul.f32 %v3085, 1.442695
    %v3087 = vpow.pop %v3086
    %v3088 = vadd.f32 %v3087, 1.0
    %v3089 = vlog2.pop %v3088
    %v3090 = vmul.f32 %v3089, 0.6931472
    %v3091 = vmul.f32 -0.5, %v3087
    %v3092 = vadd.f32 %v3091, 1.0
    %v3093 = vmul.f32 %v3092, %v3087
    %v3094 = vand.u32 2147483647, %v3087
    %vm3095 = vcmp.lt.f32.partialorder %v3094, 0.0004427343
    %v3096 = vsel %vm3095, %v3093, %v3090
    %v3097 = vadd.f32 %v3081, %v3096
    %v3098 = vsel %vm3082, %v3083, %v3097
    %v3099 = vxor.u32 %v3077, 2147483648
    %v3100 = vmul.f32 %v3099, 1.442695
    %v3101 = vpow.pop %v3100
    %v3102 = vadd.f32 %v3101, 1.0
    %v3103 = vrcp.pop %v3102
    %v3104 = vmul.f32 1.0, %v3103
    %v3105 = vadd.f32 %v3098, 1.0
    %v3106 = vsel %vm183, %v3077, -inf
    %3107 = vmax.xlane.f32.xlu0 %v3106
    %v3108 = vpop.xlane.xlu0 %3107
    %v3109 = vsub.f32 %v3077, %v3108
    %v3110 = vmul.f32 %v3109, 1.442695
    %v3111 = vpow.pop %v3110
    %3113 = vrot.lane.b32.xlu0 %v3111, 110
    %v3114 = vpop.permute.xlu0 %3113
    %v3116 = vsel %vm194, %v3114, 0.0
    %3117 = vadd.xlane.f32.xlu0 %v3116
    %v3118 = vpop.xlane.xlu0 %3117
    %v3119 = vrcp.pop %v3118
    %v3120 = vmul.f32 %v3111, %v3119
    %v3121 = vld [vmem:[#allocation9] sm:$0xff]
    %v3122 = vld [vmem:[#allocation9 + $0x8] sm:$0xff]
    %v3123 = vadd.f32 %v3121, 1e-16
    %v3124 = vadd.f32 %v3122, 1e-16
    %v3125 = vadd.f32 %v3080, 1e-16
    %v3128 = vunpack.c.l.s4 1966171168
    %v3129 = vunpack.c.0.s8 %v3128
    %v3130 = vlaneseq
    %v3131 = vshrl.u32 %v3130, 7
    %v3132 = vsub.s32 %v3129, %v3131
    %v3133 = vrot.slane %v3125, %v3132
    %v3134 = vcombine.high %v3133, %v3133
    %v3136 = vunpack.c.l.s4 1966171168
    %v3137 = vunpack.c.0.s8 %v3136
    %v3138 = vlaneseq
    %v3139 = vshrl.u32 %v3138, 7
    %v3140 = vsub.s32 %v3137, %v3139
    %v3141 = vrot.slane %v3133, %v3140
    %v3143 = vunpack.c.l.s4 1966171168
    %v3144 = vunpack.c.0.s8 %v3143
    %v3145 = vlaneseq
    %v3146 = vshrl.u32 %v3145, 7
    %v3147 = vsub.s32 %v3144, %v3146
    %v3148 = vrot.slane %v3134, %v3147
    %v3151 = vlaneseq
    %v3152 = vshrl.u32 %v3151, 7
    %v3153 = vsub.s32 0, %v3152
    %v3154 = vrot.slane %v3141, %v3153
    %v3155 = vlaneseq
    %v3156 = vshrl.u32 %v3155, 7
    %v3157 = vsub.s32 0, %v3156
    %v3158 = vrot.slane %v3148, %v3157
    %v3161 = vmul.f32 %v3123, %v3154
    %v3162 = vmul.f32 %v3124, %v3158
    %v3163 = vsel %vm66, %v3161, 0.0
    %3164 = vadd.xlane.f32.xlu0 %v3163
    %v3165 = vpop.xlane.xlu0 %3164
    %v3166 = vsel %vm66, %v3162, 0.0
    %3167 = vadd.xlane.f32.xlu0 %v3166
    %v3168 = vpop.xlane.xlu0 %3167
    %v3169 = vmul.f32 %v3123, %v3123
    %v3170 = vmul.f32 %v3124, %v3124
    %v3171 = vsel %vm66, %v3169, 0.0
    %3172 = vadd.xlane.f32.xlu0 %v3171
    %v3173 = vpop.xlane.xlu0 %3172
    %v3174 = vsel %vm66, %v3170, 0.0
    %3175 = vadd.xlane.f32.xlu0 %v3174
    %v3176 = vpop.xlane.xlu0 %3175
    %v3177 = vrsqrt.pop %v3173
    %v3178 = vmul.f32 %v3173, %v3177
    %vm3179 = vcmp.eq.f32.partialorder %v3173, inf
    %v3180 = vsel %vm3179, %v3173, %v3178
    %vm3181 = vcmp.eq.f32.partialorder %v3173, 0.0
    %v3182 = vand.u32 %v3173, 2147483648
    %v3183 = vsel %vm3181, %v3182, %v3180
    %v3184 = vrsqrt.pop %v3176
    %v3185 = vmul.f32 %v3176, %v3184
    %vm3186 = vcmp.eq.f32.partialorder %v3176, inf
    %v3187 = vsel %vm3186, %v3176, %v3185
    %vm3188 = vcmp.eq.f32.partialorder %v3176, 0.0
    %v3189 = vand.u32 %v3176, 2147483648
    %v3190 = vsel %vm3188, %v3189, %v3187
    %v3191 = vmul.f32 %v3141, %v3141
    %v3192 = vmul.f32 %v3148, %v3148
    %v3193 = vsel %vm272, %v3191, 0.0
    %3194 = vadd.xlane.f32.xlu0 %v3193
    %v3195 = vpop.xlane.xlu0 %3194
    %v3196 = vsel %vm272, %v3192, 0.0
    %3197 = vadd.xlane.f32.xlu0 %v3196
    %v3198 = vpop.xlane.xlu0 %3197
    %v3199 = vrsqrt.pop %v3195
    %v3200 = vmul.f32 %v3195, %v3199
    %vm3201 = vcmp.eq.f32.partialorder %v3195, inf
    %v3202 = vsel %vm3201, %v3195, %v3200
    %vm3203 = vcmp.eq.f32.partialorder %v3195, 0.0
    %v3204 = vand.u32 %v3195, 2147483648
    %v3205 = vsel %vm3203, %v3204, %v3202
    %v3206 = vrsqrt.pop %v3198
    %v3207 = vmul.f32 %v3198, %v3206
    %vm3208 = vcmp.eq.f32.partialorder %v3198, inf
    %v3209 = vsel %vm3208, %v3198, %v3207
    %vm3210 = vcmp.eq.f32.partialorder %v3198, 0.0
    %v3211 = vand.u32 %v3198, 2147483648
    %v3212 = vsel %vm3210, %v3211, %v3209
    %v3213 = vmax.f32 %v3183, 1e-08
    %v3214 = vmax.f32 %v3190, 1e-08
    %v3215 = vmax.f32 %v3205, 1e-08
    %v3216 = vmax.f32 %v3212, 1e-08
    %v3217 = vlaneseq
    %v3218 = vshrl.u32 %v3217, 7
    %v3219 = vsub.s32 0, %v3218
    %v3220 = vrot.slane %v3215, %v3219
    %v3221 = vlaneseq
    %v3222 = vshrl.u32 %v3221, 7
    %v3223 = vsub.s32 0, %v3222
    %v3224 = vrot.slane %v3216, %v3223
    %v3225 = vmul.f32 %v3213, %v3220
    %v3226 = vmul.f32 %v3214, %v3224
    %v3227 = vrcp.pop %v3225
    %v3228 = vmul.f32 %v3165, %v3227
    %v3229 = vrcp.pop %v3226
    %v3230 = vmul.f32 %v3168, %v3229
    %3232 = vset.pattern.permute.xlu0 16
    %3233 = vperm.xlu0 %3232, %v3098
    %v3234 = vpop.permute.xlu0 %3233
    %v3238 = vlaneseq
    %v3239 = vshrl.u32 %v3238, 7
    %v3240 = vsub.s32 %v319, %v3239
    %v3241 = vrot.slane %v3228, %v3240
    %v3242 = vlaneseq
    %v3243 = vshrl.u32 %v3242, 7
    %v3244 = vsub.s32 %v319, %v3243
    %v3245 = vrot.slane %v3230, %v3244
    %v3246 = vsel %vm328, %v3245, %v3241
    %v3248 = vmul.f32 %v3234, %v3246
    %v3249 = vsel %vm332, %v3248, -inf
    %3250 = vmax.xlane.f32.xlu0 %v3249
    %v3251 = vpop.xlane.xlu0 %3250
    %v3252 = vsub.f32 %v3248, %v3251
    %v3253 = vmul.f32 %v3252, 1.442695
    %v3254 = vpow.pop %v3253
    %v3255 = vsel %vm332, %v3254, 0.0
    %3256 = vadd.xlane.f32.xlu0 %v3255
    %v3257 = vpop.xlane.xlu0 %3256
    %v3258 = vrcp.pop %v3257
    %v3259 = vmul.f32 %v3254, %v3258
    %3261 = vset.pattern.permute.xlu0 17
    %3262 = vperm.xlu0 %3261, %v3104
    %v3263 = vpop.permute.xlu0 %3262
    %v3265 = vmul.f32 %v3263, %v3259
    %v3266 = vsub.f32 1.0, %v3104
    %3268 = vset.pattern.permute.xlu0 17
    %3269 = vperm.xlu0 %3268, %v3266
    %v3270 = vpop.permute.xlu0 %3269
    %v3272 = vmul.f32 %v3270, %v2895
    %v3273 = vadd.f32 %v3265, %v3272
    %v3275 = vsel %vm358, %v3273, 0
    %3277 = vmatprep.subr.mxu0 0.0
    %3278 = vmatpush1.msra.mxu0 %v74
    %3279 = vmatprep.subr.mxu0 0.0
    %3280 = vmatpush1.msra.mxu0 0.0
    %3281 = vmatprep.subr.mxu0 0.0
    %3282 = vmatpush1.msra.mxu0 0.0
    %3283 = vmatprep.subr.mxu0 0.0
    %3284 = vmatpush1.msra.mxu0 0.0
    %3285 = vmatprep.subr.mxu0 0.0
    %3286 = vmatpush1.msra.mxu0 0.0
    %3287 = vmatprep.subr.mxu0 0.0
    %3288 = vmatpush1.msra.mxu0 0.0
    %3289 = vmatprep.subr.mxu0 0.0
    %3290 = vmatpush1.msra.mxu0 0.0
    %3291 = vmatprep.subr.mxu0 0.0
    %3292 = vmatpush1.msra.mxu0 0.0
    %3293 = vmatprep.subr.mxu0 0.0
    %3294 = vmatpush1.msra.mxu0 0.0
    %3295 = vmatprep.subr.mxu0 0.0
    %3296 = vmatpush1.msra.mxu0 0.0
    %3297 = vmatprep.subr.mxu0 0.0
    %3298 = vmatpush1.msra.mxu0 0.0
    %3299 = vmatprep.subr.mxu0 0.0
    %3300 = vmatpush1.msra.mxu0 0.0
    %3301 = vmatprep.subr.mxu0 0.0
    %3302 = vmatpush1.msra.mxu0 0.0
    %3303 = vmatprep.subr.mxu0 0.0
    %3304 = vmatpush1.msra.mxu0 0.0
    %3305 = vmatprep.subr.mxu0 0.0
    %3306 = vmatpush1.msra.mxu0 0.0
    %3307 = vmatprep.subr.mxu0 0.0
    %3308 = vmatpush1.msra.mxu0 0.0
    %3309 = vmatprep.subr.mxu0 0.0
    %3310 = vmatpush1.msra.mxu0 0.0
    %3311 = vmatprep.subr.mxu0 0.0
    %3312 = vmatpush1.msra.mxu0 0.0
    %3313 = vmatprep.subr.mxu0 0.0
    %3314 = vmatpush1.msra.mxu0 0.0
    %3315 = vmatprep.subr.mxu0 0.0
    %3316 = vmatpush1.msra.mxu0 0.0
    %3317 = vmatprep.subr.mxu0 0.0
    %3318 = vmatpush1.msra.mxu0 0.0
    %3319 = vmatprep.subr.mxu0 0.0
    %3320 = vmatpush1.msra.mxu0 0.0
    %3321 = vmatprep.subr.mxu0 0.0
    %3322 = vmatpush1.msra.mxu0 0.0
    %3323 = vmatprep.subr.mxu0 0.0
    %3324 = vmatpush1.msra.mxu0 0.0
    %3325 = vmatprep.subr.mxu0 0.0
    %3326 = vmatpush1.msra.mxu0 0.0
    %3327 = vmatprep.subr.mxu0 0.0
    %3328 = vmatpush1.msra.mxu0 0.0
    %3329 = vmatprep.subr.mxu0 0.0
    %3330 = vmatpush1.msra.mxu0 0.0
    %3331 = vmatprep.subr.mxu0 0.0
    %3332 = vmatpush1.msra.mxu0 0.0
    %3333 = vmatprep.subr.mxu0 0.0
    %3334 = vmatpush1.msra.mxu0 0.0
    %3335 = vmatprep.subr.mxu0 0.0
    %3336 = vmatpush1.msra.mxu0 0.0
    %3337 = vmatprep.subr.mxu0 0.0
    %3338 = vmatpush1.msra.mxu0 0.0
    %3339 = vmatprep.subr.mxu0 0.0
    %3340 = vmatpush1.msra.mxu0 0.0
    %3341 = vmatprep.mubr.f32.mxu0 0.0
    %3342 = vmatmul.mubr.f32.gmra.mrb[0].mxu0 %v3275
    %v3343 = vpop.f32.mrb[0].mxu0
    %v3344 = vadd.f32 0.0, %v3343
    %v3345 = vpop.f32.mrb[0].mxu0
    %3346 = vdwg.mxu0
    %3348 = vset.pattern.permute.xlu0 18
    %3349 = vperm.xlu0 %3348, %v3120
    %v3350 = vpop.permute.xlu0 %3349
    %v3352 = vmul.f32 %v3344, %v3350
    %3353 = vset.pattern.permute.xlu0 19
    %3354 = vperm.xlu0 %3353, %v3120
    %v3355 = vpop.permute.xlu0 %3354
    %v3357 = vmul.f32 %v3273, %v3355
    %v3358 = vadd.f32 %v3352, %v3357
    %3359 = vset.pattern.permute.xlu0 20
    %3360 = vperm.xlu0 %3359, %v3120
    %v3361 = vpop.permute.xlu0 %3360
    %v3363 = vmul.f32 %v3344, %v3361
    %3365 = vrot.lane.b32.xlu0 %v3363, 120
    %v3366 = vpop.permute.xlu0 %3365
    %v3368 = vadd.f32 %v3358, %v3366
    %v3369 = vmax.f32 %v3368, 0.0
    %3371 = vset.pattern.permute.xlu0 21
    %3372 = vperm.xlu0 %3371, %v3105
    %v3373 = vpop.permute.xlu0 %3372
    %v3375 = vpow.f32 %v3369, %v3373
    %v3376 = vsel %vm332, %v3375, 0.0
    %3377 = vadd.xlane.f32.xlu0 %v3376
    %v3378 = vpop.xlane.xlu0 %3377
    %v3379 = vadd.f32 %v3378, 1e-16
    %v3380 = vrcp.pop %v3379
    %v3381 = vmul.f32 %v3375, %v3380
    %s3382 = scalar_lea.vmem [#allocation8], 12
    %3383 = vst.msk [vmem:[%s3382] sm:$0x3] %vm332, %v3381
    %v3384 = vlaneseq
    %v3385 = vshrl.u32 %v3384, 7
    %v3386 = vsub.s32 0, %v3385
    %v3387 = vrot.slane %v3381, %v3386
    %3389 = vbcast.lane.b32.xlu0 %v3387, 256
    %v3390 = vpop.permute.xlu0 %3389
    %v3391 = vlaneseq
    %v3392 = vshrl.u32 %v3391, 7
    %v3393 = vsub.s32 1, %v3392
    %v3394 = vrot.slane %v3381, %v3393
    %3396 = vbcast.lane.b32.xlu0 %v3394, 256
    %v3397 = vpop.permute.xlu0 %3396
    %v3399 = vunpack.c.l.s4 1966171168
    %v3400 = vunpack.c.0.s8 %v3399
    %v3401 = vlaneseq
    %v3402 = vshrl.u32 %v3401, 7
    %v3403 = vsub.s32 %v3400, %v3402
    %v3404 = vrot.slane %v3104, %v3403
    %v3405 = vcombine.high %v3404, %v3404
    %v3407 = vunpack.c.l.s4 1966171168
    %v3408 = vunpack.c.0.s8 %v3407
    %v3409 = vlaneseq
    %v3410 = vshrl.u32 %v3409, 7
    %v3411 = vsub.s32 %v3408, %v3410
    %v3412 = vrot.slane %v3404, %v3411
    %v3414 = vunpack.c.l.s4 1966171168
    %v3415 = vunpack.c.0.s8 %v3414
    %v3416 = vlaneseq
    %v3417 = vshrl.u32 %v3416, 7
    %v3418 = vsub.s32 %v3415, %v3417
    %v3419 = vrot.slane %v3405, %v3418
    %v3420 = vlaneseq
    %v3421 = vshrl.u32 %v3420, 7
    %v3422 = vsub.s32 0, %v3421
    %v3423 = vrot.slane %v3412, %v3422
    %v3424 = vlaneseq
    %v3425 = vshrl.u32 %v3424, 7
    %v3426 = vsub.s32 0, %v3425
    %v3427 = vrot.slane %v3419, %v3426
    %v3430 = vmul.f32 %v3390, %v3423
    %v3431 = vmul.f32 %v3397, %v3427
    %v3434 = vunpack.c.l.s4 1966171168
    %v3435 = vunpack.c.0.s8 %v3434
    %v3436 = vlaneseq
    %v3437 = vshrl.u32 %v3436, 7
    %v3438 = vsub.s32 %v3435, %v3437
    %v3439 = vrot.slane %v3080, %v3438
    %v3440 = vcombine.high %v3439, %v3439
    %v3442 = vunpack.c.l.s4 1966171168
    %v3443 = vunpack.c.0.s8 %v3442
    %v3444 = vlaneseq
    %v3445 = vshrl.u32 %v3444, 7
    %v3446 = vsub.s32 %v3443, %v3445
    %v3447 = vrot.slane %v3439, %v3446
    %v3449 = vunpack.c.l.s4 1966171168
    %v3450 = vunpack.c.0.s8 %v3449
    %v3451 = vlaneseq
    %v3452 = vshrl.u32 %v3451, 7
    %v3453 = vsub.s32 %v3450, %v3452
    %v3454 = vrot.slane %v3440, %v3453
    %v3455 = vlaneseq
    %v3456 = vshrl.u32 %v3455, 7
    %v3457 = vsub.s32 0, %v3456
    %v3458 = vrot.slane %v3447, %v3457
    %v3459 = vlaneseq
    %v3460 = vshrl.u32 %v3459, 7
    %v3461 = vsub.s32 0, %v3460
    %v3462 = vrot.slane %v3454, %v3461
    %v3465 = vmul.f32 %v3390, %v3458
    %v3466 = vmul.f32 %v3397, %v3462
    %v3467 = vsub.f32 1.0, %v3430
    %v3468 = vsub.f32 1.0, %v3431
    %3471 = vrot.lane.b32.xlu0 %v3467, 96
    %v3472 = vpop.permute.xlu0 %3471
    %3473 = vrot.lane.b32.xlu0 %v3468, 96
    %v3474 = vpop.permute.xlu0 %3473
    %v3477 = vmul.f32 %v3121, %v3472
    %v3478 = vmul.f32 %v3122, %v3474
    %3481 = vrot.lane.b32.xlu0 %v3465, 80
    %v3482 = vpop.permute.xlu0 %3481
    %3483 = vrot.lane.b32.xlu0 %v3466, 80
    %v3484 = vpop.permute.xlu0 %3483
    %v3487 = vadd.f32 %v3477, %v3482
    %v3488 = vadd.f32 %v3478, %v3484
    %3489 = vst.msk [vmem:[#allocation9] sm:$0xff] %vm66, %v3487
    %3490 = vst.msk [vmem:[#allocation9 + $0x8] sm:$0xff] %vm66, %v3488
    %s3491 = scalar_lea.vmem %s0, 14
    %v3492 = vld [vmem:[%s3491] sm:$0x3]
    %v3494 = vsel %vm83, %v3492, 0
    %3496 = vmatprep.subr.mxu0 0.0
    %3497 = vmatpush1.msra.mxu0 %v69
    %3498 = vmatprep.subr.mxu0 0.0
    %3499 = vmatpush1.msra.mxu0 %v70
    %3500 = vmatprep.subr.mxu0 0.0
    %3501 = vmatpush1.msra.mxu0 %v71
    %3502 = vmatprep.subr.mxu0 0.0
    %3503 = vmatpush1.msra.mxu0 %v72
    %3504 = vmatprep.subr.mxu0 0.0
    %3505 = vmatpush1.msra.mxu0 0.0
    %3506 = vmatprep.subr.mxu0 0.0
    %3507 = vmatpush1.msra.mxu0 0.0
    %3508 = vmatprep.subr.mxu0 0.0
    %3509 = vmatpush1.msra.mxu0 0.0
    %3510 = vmatprep.subr.mxu0 0.0
    %3511 = vmatpush1.msra.mxu0 0.0
    %3512 = vmatprep.subr.mxu0 0.0
    %3513 = vmatpush1.msra.mxu0 0.0
    %3514 = vmatprep.subr.mxu0 0.0
    %3515 = vmatpush1.msra.mxu0 0.0
    %3516 = vmatprep.subr.mxu0 0.0
    %3517 = vmatpush1.msra.mxu0 0.0
    %3518 = vmatprep.subr.mxu0 0.0
    %3519 = vmatpush1.msra.mxu0 0.0
    %3520 = vmatprep.subr.mxu0 0.0
    %3521 = vmatpush1.msra.mxu0 0.0
    %3522 = vmatprep.subr.mxu0 0.0
    %3523 = vmatpush1.msra.mxu0 0.0
    %3524 = vmatprep.subr.mxu0 0.0
    %3525 = vmatpush1.msra.mxu0 0.0
    %3526 = vmatprep.subr.mxu0 0.0
    %3527 = vmatpush1.msra.mxu0 0.0
    %3528 = vmatprep.subr.mxu0 0.0
    %3529 = vmatpush1.msra.mxu0 0.0
    %3530 = vmatprep.subr.mxu0 0.0
    %3531 = vmatpush1.msra.mxu0 0.0
    %3532 = vmatprep.subr.mxu0 0.0
    %3533 = vmatpush1.msra.mxu0 0.0
    %3534 = vmatprep.subr.mxu0 0.0
    %3535 = vmatpush1.msra.mxu0 0.0
    %3536 = vmatprep.subr.mxu0 0.0
    %3537 = vmatpush1.msra.mxu0 0.0
    %3538 = vmatprep.subr.mxu0 0.0
    %3539 = vmatpush1.msra.mxu0 0.0
    %3540 = vmatprep.subr.mxu0 0.0
    %3541 = vmatpush1.msra.mxu0 0.0
    %3542 = vmatprep.subr.mxu0 0.0
    %3543 = vmatpush1.msra.mxu0 0.0
    %3544 = vmatprep.subr.mxu0 0.0
    %3545 = vmatpush1.msra.mxu0 0.0
    %3546 = vmatprep.subr.mxu0 0.0
    %3547 = vmatpush1.msra.mxu0 0.0
    %3548 = vmatprep.subr.mxu0 0.0
    %3549 = vmatpush1.msra.mxu0 0.0
    %3550 = vmatprep.subr.mxu0 0.0
    %3551 = vmatpush1.msra.mxu0 0.0
    %3552 = vmatprep.subr.mxu0 0.0
    %3553 = vmatpush1.msra.mxu0 0.0
    %3554 = vmatprep.subr.mxu0 0.0
    %3555 = vmatpush1.msra.mxu0 0.0
    %3556 = vmatprep.subr.mxu0 0.0
    %3557 = vmatpush1.msra.mxu0 0.0
    %3558 = vmatprep.subr.mxu0 0.0
    %3559 = vmatpush1.msra.mxu0 0.0
    %3560 = vmatprep.mubr.f32.mxu0 0.0
    %3561 = vmatmul.mubr.f32.gmra.mrb[0].mxu0 %v3494
    %v3562 = vpop.f32.mrb[0].mxu0
    %v3563 = vadd.f32 %v81, %v3562
    %v3564 = vpop.f32.mrb[0].mxu0
    %3565 = vdwg.mxu0
    %v3566 = vtanh.pop %v3563
    %v3567 = vmax.f32 %v3563, 0.0
    %vm3568 = vcmp.ne.f32.partialorder %v3563, %v3563
    %v3569 = vadd.f32 %v3563, 0.0
    %v3570 = vand.u32 2147483647, %v3563
    %v3571 = vsub.f32 0.0, %v3570
    %v3572 = vmul.f32 %v3571, 1.442695
    %v3573 = vpow.pop %v3572
    %v3574 = vadd.f32 %v3573, 1.0
    %v3575 = vlog2.pop %v3574
    %v3576 = vmul.f32 %v3575, 0.6931472
    %v3577 = vmul.f32 -0.5, %v3573
    %v3578 = vadd.f32 %v3577, 1.0
    %v3579 = vmul.f32 %v3578, %v3573
    %v3580 = vand.u32 2147483647, %v3573
    %vm3581 = vcmp.lt.f32.partialorder %v3580, 0.0004427343
    %v3582 = vsel %vm3581, %v3579, %v3576
    %v3583 = vadd.f32 %v3567, %v3582
    %v3584 = vsel %vm3568, %v3569, %v3583
    %v3585 = vxor.u32 %v3563, 2147483648
    %v3586 = vmul.f32 %v3585, 1.442695
    %v3587 = vpow.pop %v3586
    %v3588 = vadd.f32 %v3587, 1.0
    %v3589 = vrcp.pop %v3588
    %v3590 = vmul.f32 1.0, %v3589
    %v3591 = vadd.f32 %v3584, 1.0
    %v3592 = vsel %vm183, %v3563, -inf
    %3593 = vmax.xlane.f32.xlu0 %v3592
    %v3594 = vpop.xlane.xlu0 %3593
    %v3595 = vsub.f32 %v3563, %v3594
    %v3596 = vmul.f32 %v3595, 1.442695
    %v3597 = vpow.pop %v3596
    %3599 = vrot.lane.b32.xlu0 %v3597, 110
    %v3600 = vpop.permute.xlu0 %3599
    %v3602 = vsel %vm194, %v3600, 0.0
    %3603 = vadd.xlane.f32.xlu0 %v3602
    %v3604 = vpop.xlane.xlu0 %3603
    %v3605 = vrcp.pop %v3604
    %v3606 = vmul.f32 %v3597, %v3605
    %v3607 = vld [vmem:[#allocation9] sm:$0xff]
    %v3608 = vld [vmem:[#allocation9 + $0x8] sm:$0xff]
    %v3609 = vadd.f32 %v3607, 1e-16
    %v3610 = vadd.f32 %v3608, 1e-16
    %v3611 = vadd.f32 %v3566, 1e-16
    %v3614 = vunpack.c.l.s4 1966171168
    %v3615 = vunpack.c.0.s8 %v3614
    %v3616 = vlaneseq
    %v3617 = vshrl.u32 %v3616, 7
    %v3618 = vsub.s32 %v3615, %v3617
    %v3619 = vrot.slane %v3611, %v3618
    %v3620 = vcombine.high %v3619, %v3619
    %v3622 = vunpack.c.l.s4 1966171168
    %v3623 = vunpack.c.0.s8 %v3622
    %v3624 = vlaneseq
    %v3625 = vshrl.u32 %v3624, 7
    %v3626 = vsub.s32 %v3623, %v3625
    %v3627 = vrot.slane %v3619, %v3626
    %v3629 = vunpack.c.l.s4 1966171168
    %v3630 = vunpack.c.0.s8 %v3629
    %v3631 = vlaneseq
    %v3632 = vshrl.u32 %v3631, 7
    %v3633 = vsub.s32 %v3630, %v3632
    %v3634 = vrot.slane %v3620, %v3633
    %v3637 = vlaneseq
    %v3638 = vshrl.u32 %v3637, 7
    %v3639 = vsub.s32 0, %v3638
    %v3640 = vrot.slane %v3627, %v3639
    %v3641 = vlaneseq
    %v3642 = vshrl.u32 %v3641, 7
    %v3643 = vsub.s32 0, %v3642
    %v3644 = vrot.slane %v3634, %v3643
    %v3647 = vmul.f32 %v3609, %v3640
    %v3648 = vmul.f32 %v3610, %v3644
    %v3649 = vsel %vm66, %v3647, 0.0
    %3650 = vadd.xlane.f32.xlu0 %v3649
    %v3651 = vpop.xlane.xlu0 %3650
    %v3652 = vsel %vm66, %v3648, 0.0
    %3653 = vadd.xlane.f32.xlu0 %v3652
    %v3654 = vpop.xlane.xlu0 %3653
    %v3655 = vmul.f32 %v3609, %v3609
    %v3656 = vmul.f32 %v3610, %v3610
    %v3657 = vsel %vm66, %v3655, 0.0
    %3658 = vadd.xlane.f32.xlu0 %v3657
    %v3659 = vpop.xlane.xlu0 %3658
    %v3660 = vsel %vm66, %v3656, 0.0
    %3661 = vadd.xlane.f32.xlu0 %v3660
    %v3662 = vpop.xlane.xlu0 %3661
    %v3663 = vrsqrt.pop %v3659
    %v3664 = vmul.f32 %v3659, %v3663
    %vm3665 = vcmp.eq.f32.partialorder %v3659, inf
    %v3666 = vsel %vm3665, %v3659, %v3664
    %vm3667 = vcmp.eq.f32.partialorder %v3659, 0.0
    %v3668 = vand.u32 %v3659, 2147483648
    %v3669 = vsel %vm3667, %v3668, %v3666
    %v3670 = vrsqrt.pop %v3662
    %v3671 = vmul.f32 %v3662, %v3670
    %vm3672 = vcmp.eq.f32.partialorder %v3662, inf
    %v3673 = vsel %vm3672, %v3662, %v3671
    %vm3674 = vcmp.eq.f32.partialorder %v3662, 0.0
    %v3675 = vand.u32 %v3662, 2147483648
    %v3676 = vsel %vm3674, %v3675, %v3673
    %v3677 = vmul.f32 %v3627, %v3627
    %v3678 = vmul.f32 %v3634, %v3634
    %v3679 = vsel %vm272, %v3677, 0.0
    %3680 = vadd.xlane.f32.xlu0 %v3679
    %v3681 = vpop.xlane.xlu0 %3680
    %v3682 = vsel %vm272, %v3678, 0.0
    %3683 = vadd.xlane.f32.xlu0 %v3682
    %v3684 = vpop.xlane.xlu0 %3683
    %v3685 = vrsqrt.pop %v3681
    %v3686 = vmul.f32 %v3681, %v3685
    %vm3687 = vcmp.eq.f32.partialorder %v3681, inf
    %v3688 = vsel %vm3687, %v3681, %v3686
    %vm3689 = vcmp.eq.f32.partialorder %v3681, 0.0
    %v3690 = vand.u32 %v3681, 2147483648
    %v3691 = vsel %vm3689, %v3690, %v3688
    %v3692 = vrsqrt.pop %v3684
    %v3693 = vmul.f32 %v3684, %v3692
    %vm3694 = vcmp.eq.f32.partialorder %v3684, inf
    %v3695 = vsel %vm3694, %v3684, %v3693
    %vm3696 = vcmp.eq.f32.partialorder %v3684, 0.0
    %v3697 = vand.u32 %v3684, 2147483648
    %v3698 = vsel %vm3696, %v3697, %v3695
    %v3699 = vmax.f32 %v3669, 1e-08
    %v3700 = vmax.f32 %v3676, 1e-08
    %v3701 = vmax.f32 %v3691, 1e-08
    %v3702 = vmax.f32 %v3698, 1e-08
    %v3703 = vlaneseq
    %v3704 = vshrl.u32 %v3703, 7
    %v3705 = vsub.s32 0, %v3704
    %v3706 = vrot.slane %v3701, %v3705
    %v3707 = vlaneseq
    %v3708 = vshrl.u32 %v3707, 7
    %v3709 = vsub.s32 0, %v3708
    %v3710 = vrot.slane %v3702, %v3709
    %v3711 = vmul.f32 %v3699, %v3706
    %v3712 = vmul.f32 %v3700, %v3710
    %v3713 = vrcp.pop %v3711
    %v3714 = vmul.f32 %v3651, %v3713
    %v3715 = vrcp.pop %v3712
    %v3716 = vmul.f32 %v3654, %v3715
    %3718 = vset.pattern.permute.xlu0 16
    %3719 = vperm.xlu0 %3718, %v3584
    %v3720 = vpop.permute.xlu0 %3719
    %v3724 = vlaneseq
    %v3725 = vshrl.u32 %v3724, 7
    %v3726 = vsub.s32 %v319, %v3725
    %v3727 = vrot.slane %v3714, %v3726
    %v3728 = vlaneseq
    %v3729 = vshrl.u32 %v3728, 7
    %v3730 = vsub.s32 %v319, %v3729
    %v3731 = vrot.slane %v3716, %v3730
    %v3732 = vsel %vm328, %v3731, %v3727
    %v3734 = vmul.f32 %v3720, %v3732
    %v3735 = vsel %vm332, %v3734, -inf
    %3736 = vmax.xlane.f32.xlu0 %v3735
    %v3737 = vpop.xlane.xlu0 %3736
    %v3738 = vsub.f32 %v3734, %v3737
    %v3739 = vmul.f32 %v3738, 1.442695
    %v3740 = vpow.pop %v3739
    %v3741 = vsel %vm332, %v3740, 0.0
    %3742 = vadd.xlane.f32.xlu0 %v3741
    %v3743 = vpop.xlane.xlu0 %3742
    %v3744 = vrcp.pop %v3743
    %v3745 = vmul.f32 %v3740, %v3744
    %3747 = vset.pattern.permute.xlu0 17
    %3748 = vperm.xlu0 %3747, %v3590
    %v3749 = vpop.permute.xlu0 %3748
    %v3751 = vmul.f32 %v3749, %v3745
    %v3752 = vsub.f32 1.0, %v3590
    %3754 = vset.pattern.permute.xlu0 17
    %3755 = vperm.xlu0 %3754, %v3752
    %v3756 = vpop.permute.xlu0 %3755
    %v3758 = vmul.f32 %v3756, %v3381
    %v3759 = vadd.f32 %v3751, %v3758
    %v3761 = vsel %vm358, %v3759, 0
    %3763 = vmatprep.subr.mxu0 0.0
    %3764 = vmatpush1.msra.mxu0 %v74
    %3765 = vmatprep.subr.mxu0 0.0
    %3766 = vmatpush1.msra.mxu0 0.0
    %3767 = vmatprep.subr.mxu0 0.0
    %3768 = vmatpush1.msra.mxu0 0.0
    %3769 = vmatprep.subr.mxu0 0.0
    %3770 = vmatpush1.msra.mxu0 0.0
    %3771 = vmatprep.subr.mxu0 0.0
    %3772 = vmatpush1.msra.mxu0 0.0
    %3773 = vmatprep.subr.mxu0 0.0
    %3774 = vmatpush1.msra.mxu0 0.0
    %3775 = vmatprep.subr.mxu0 0.0
    %3776 = vmatpush1.msra.mxu0 0.0
    %3777 = vmatprep.subr.mxu0 0.0
    %3778 = vmatpush1.msra.mxu0 0.0
    %3779 = vmatprep.subr.mxu0 0.0
    %3780 = vmatpush1.msra.mxu0 0.0
    %3781 = vmatprep.subr.mxu0 0.0
    %3782 = vmatpush1.msra.mxu0 0.0
    %3783 = vmatprep.subr.mxu0 0.0
    %3784 = vmatpush1.msra.mxu0 0.0
    %3785 = vmatprep.subr.mxu0 0.0
    %3786 = vmatpush1.msra.mxu0 0.0
    %3787 = vmatprep.subr.mxu0 0.0
    %3788 = vmatpush1.msra.mxu0 0.0
    %3789 = vmatprep.subr.mxu0 0.0
    %3790 = vmatpush1.msra.mxu0 0.0
    %3791 = vmatprep.subr.mxu0 0.0
    %3792 = vmatpush1.msra.mxu0 0.0
    %3793 = vmatprep.subr.mxu0 0.0
    %3794 = vmatpush1.msra.mxu0 0.0
    %3795 = vmatprep.subr.mxu0 0.0
    %3796 = vmatpush1.msra.mxu0 0.0
    %3797 = vmatprep.subr.mxu0 0.0
    %3798 = vmatpush1.msra.mxu0 0.0
    %3799 = vmatprep.subr.mxu0 0.0
    %3800 = vmatpush1.msra.mxu0 0.0
    %3801 = vmatprep.subr.mxu0 0.0
    %3802 = vmatpush1.msra.mxu0 0.0
    %3803 = vmatprep.subr.mxu0 0.0
    %3804 = vmatpush1.msra.mxu0 0.0
    %3805 = vmatprep.subr.mxu0 0.0
    %3806 = vmatpush1.msra.mxu0 0.0
    %3807 = vmatprep.subr.mxu0 0.0
    %3808 = vmatpush1.msra.mxu0 0.0
    %3809 = vmatprep.subr.mxu0 0.0
    %3810 = vmatpush1.msra.mxu0 0.0
    %3811 = vmatprep.subr.mxu0 0.0
    %3812 = vmatpush1.msra.mxu0 0.0
    %3813 = vmatprep.subr.mxu0 0.0
    %3814 = vmatpush1.msra.mxu0 0.0
    %3815 = vmatprep.subr.mxu0 0.0
    %3816 = vmatpush1.msra.mxu0 0.0
    %3817 = vmatprep.subr.mxu0 0.0
    %3818 = vmatpush1.msra.mxu0 0.0
    %3819 = vmatprep.subr.mxu0 0.0
    %3820 = vmatpush1.msra.mxu0 0.0
    %3821 = vmatprep.subr.mxu0 0.0
    %3822 = vmatpush1.msra.mxu0 0.0
    %3823 = vmatprep.subr.mxu0 0.0
    %3824 = vmatpush1.msra.mxu0 0.0
    %3825 = vmatprep.subr.mxu0 0.0
    %3826 = vmatpush1.msra.mxu0 0.0
    %3827 = vmatprep.mubr.f32.mxu0 0.0
    %3828 = vmatmul.mubr.f32.gmra.mrb[0].mxu0 %v3761
    %v3829 = vpop.f32.mrb[0].mxu0
    %v3830 = vadd.f32 0.0, %v3829
    %v3831 = vpop.f32.mrb[0].mxu0
    %3832 = vdwg.mxu0
    %3834 = vset.pattern.permute.xlu0 18
    %3835 = vperm.xlu0 %3834, %v3606
    %v3836 = vpop.permute.xlu0 %3835
    %v3838 = vmul.f32 %v3830, %v3836
    %3839 = vset.pattern.permute.xlu0 19
    %3840 = vperm.xlu0 %3839, %v3606
    %v3841 = vpop.permute.xlu0 %3840
    %v3843 = vmul.f32 %v3759, %v3841
    %v3844 = vadd.f32 %v3838, %v3843
    %3845 = vset.pattern.permute.xlu0 20
    %3846 = vperm.xlu0 %3845, %v3606
    %v3847 = vpop.permute.xlu0 %3846
    %v3849 = vmul.f32 %v3830, %v3847
    %3851 = vrot.lane.b32.xlu0 %v3849, 120
    %v3852 = vpop.permute.xlu0 %3851
    %v3854 = vadd.f32 %v3844, %v3852
    %v3855 = vmax.f32 %v3854, 0.0
    %3857 = vset.pattern.permute.xlu0 21
    %3858 = vperm.xlu0 %3857, %v3591
    %v3859 = vpop.permute.xlu0 %3858
    %v3861 = vpow.f32 %v3855, %v3859
    %v3862 = vsel %vm332, %v3861, 0.0
    %3863 = vadd.xlane.f32.xlu0 %v3862
    %v3864 = vpop.xlane.xlu0 %3863
    %v3865 = vadd.f32 %v3864, 1e-16
    %v3866 = vrcp.pop %v3865
    %v3867 = vmul.f32 %v3861, %v3866
    %s3868 = scalar_lea.vmem [#allocation8], 14
    %3869 = vst.msk [vmem:[%s3868] sm:$0x3] %vm332, %v3867
    %v3870 = vlaneseq
    %v3871 = vshrl.u32 %v3870, 7
    %v3872 = vsub.s32 0, %v3871
    %v3873 = vrot.slane %v3867, %v3872
    %3875 = vbcast.lane.b32.xlu0 %v3873, 256
    %v3876 = vpop.permute.xlu0 %3875
    %v3877 = vlaneseq
    %v3878 = vshrl.u32 %v3877, 7
    %v3879 = vsub.s32 1, %v3878
    %v3880 = vrot.slane %v3867, %v3879
    %3882 = vbcast.lane.b32.xlu0 %v3880, 256
    %v3883 = vpop.permute.xlu0 %3882
    %v3885 = vunpack.c.l.s4 1966171168
    %v3886 = vunpack.c.0.s8 %v3885
    %v3887 = vlaneseq
    %v3888 = vshrl.u32 %v3887, 7
    %v3889 = vsub.s32 %v3886, %v3888
    %v3890 = vrot.slane %v3590, %v3889
    %v3891 = vcombine.high %v3890, %v3890
    %v3893 = vunpack.c.l.s4 1966171168
    %v3894 = vunpack.c.0.s8 %v3893
    %v3895 = vlaneseq
    %v3896 = vshrl.u32 %v3895, 7
    %v3897 = vsub.s32 %v3894, %v3896
    %v3898 = vrot.slane %v3890, %v3897
    %v3900 = vunpack.c.l.s4 1966171168
    %v3901 = vunpack.c.0.s8 %v3900
    %v3902 = vlaneseq
    %v3903 = vshrl.u32 %v3902, 7
    %v3904 = vsub.s32 %v3901, %v3903
    %v3905 = vrot.slane %v3891, %v3904
    %v3906 = vlaneseq
    %v3907 = vshrl.u32 %v3906, 7
    %v3908 = vsub.s32 0, %v3907
    %v3909 = vrot.slane %v3898, %v3908
    %v3910 = vlaneseq
    %v3911 = vshrl.u32 %v3910, 7
    %v3912 = vsub.s32 0, %v3911
    %v3913 = vrot.slane %v3905, %v3912
    %v3916 = vmul.f32 %v3876, %v3909
    %v3917 = vmul.f32 %v3883, %v3913
    %v3920 = vunpack.c.l.s4 1966171168
    %v3921 = vunpack.c.0.s8 %v3920
    %v3922 = vlaneseq
    %v3923 = vshrl.u32 %v3922, 7
    %v3924 = vsub.s32 %v3921, %v3923
    %v3925 = vrot.slane %v3566, %v3924
    %v3926 = vcombine.high %v3925, %v3925
    %v3928 = vunpack.c.l.s4 1966171168
    %v3929 = vunpack.c.0.s8 %v3928
    %v3930 = vlaneseq
    %v3931 = vshrl.u32 %v3930, 7
    %v3932 = vsub.s32 %v3929, %v3931
    %v3933 = vrot.slane %v3925, %v3932
    %v3935 = vunpack.c.l.s4 1966171168
    %v3936 = vunpack.c.0.s8 %v3935
    %v3937 = vlaneseq
    %v3938 = vshrl.u32 %v3937, 7
    %v3939 = vsub.s32 %v3936, %v3938
    %v3940 = vrot.slane %v3926, %v3939
    %v3941 = vlaneseq
    %v3942 = vshrl.u32 %v3941, 7
    %v3943 = vsub.s32 0, %v3942
    %v3944 = vrot.slane %v3933, %v3943
    %v3945 = vlaneseq
    %v3946 = vshrl.u32 %v3945, 7
    %v3947 = vsub.s32 0, %v3946
    %v3948 = vrot.slane %v3940, %v3947
    %v3951 = vmul.f32 %v3876, %v3944
    %v3952 = vmul.f32 %v3883, %v3948
    %v3953 = vsub.f32 1.0, %v3916
    %v3954 = vsub.f32 1.0, %v3917
    %3957 = vrot.lane.b32.xlu0 %v3953, 96
    %v3958 = vpop.permute.xlu0 %3957
    %3959 = vrot.lane.b32.xlu0 %v3954, 96
    %v3960 = vpop.permute.xlu0 %3959
    %v3963 = vmul.f32 %v3607, %v3958
    %v3964 = vmul.f32 %v3608, %v3960
    %3967 = vrot.lane.b32.xlu0 %v3951, 80
    %v3968 = vpop.permute.xlu0 %3967
    %3969 = vrot.lane.b32.xlu0 %v3952, 80
    %v3970 = vpop.permute.xlu0 %3969
    %v3973 = vadd.f32 %v3963, %v3968
    %v3974 = vadd.f32 %v3964, %v3970
    %3975 = vst.msk [vmem:[#allocation9] sm:$0xff] %vm66, %v3973
    %3976 = vst.msk [vmem:[#allocation9 + $0x8] sm:$0xff] %vm66, %v3974
    // Predicated region
    $region38: #{tpu_custom_call.1} parent=1 // pred_check
      _
    $region39: #{tpu_custom_call.1} parent=1 // pred_check_branch
      %3978 = sbr.rel (0) target = $region41
    $region40: #{tpu_custom_call.1} parent=1 // pred_region
      %s3980 = ssub.s32 256, 256
      %3981 = vsyncadd [#allocation4], %s3980
      %s3982 = sshll.u32 [#allocation8], 4
      %s3983 = int_to_ptr.vmem [resolvable:$true] %s3982
      %3988 = dma.vmem_to_hbm [thread:$0]  %s3983, 256, %s6, [#allocation4], 32, 32, 2
    $region41: #{tpu_custom_call.1} parent=1 // pred_fallthru
      _
    // Predicated region
    $region42: #{tpu_custom_call.1} parent=1 // pred_check
      _
    $region43: #{tpu_custom_call.1} parent=1 // pred_check_branch
      %3990 = sbr.rel (0) target = $region45
    $region44: #{tpu_custom_call.1} parent=1 // pred_region
      %s3992 = ssub.s32 256, 256
      %3993 = vsyncadd [#allocation10], %s3992
      %s3994 = sshll.u32 [#allocation9], 4
      %s3995 = int_to_ptr.vmem [resolvable:$true] %s3994
      %4000 = dma.vmem_to_hbm [thread:$0]  %s3995, 256, %s7, [#allocation10], 128, 128, 8
    $region45: #{tpu_custom_call.1} parent=1 // pred_fallthru
      _
    // Predicated region
    $region46: #{tpu_custom_call.1} parent=1 // pred_check
      _
    $region47: #{tpu_custom_call.1} parent=1 // pred_check_branch
      %4002 = sbr.rel (0) target = $region49
    $region48: #{tpu_custom_call.1} parent=1 // pred_region
      %4003 = dma.done [#allocation4], 256
    $region49: #{tpu_custom_call.1} parent=1 // pred_fallthru
      _
    // Predicated region
    $region50: #{tpu_custom_call.1} parent=1 // pred_check
      _
    $region51: #{tpu_custom_call.1} parent=1 // pred_check_branch
      %4005 = sbr.rel (0) target = $region53
    $region52: #{tpu_custom_call.1} parent=1 // pred_region
      %4006 = dma.done [#allocation10], 256
    $region53: #{tpu_custom_call.1} parent=1 // pred_fallthru
      _
    %4007 = vsyncpa [#allocation3], 1
    %4008 = vsyncpa [#allocation6], 1
    %4009 = vsyncpa [#allocation4], 1
    %4010 = vsyncpa [#allocation10], 1

</llo_original>
